<compile_context>
chip_gen: v7x
topology: tpu7x:2x2x1
jax: 0.10.0
libtpu: 0.0.40
codegen_flags: <defaults>
</compile_context>

<pallas_src>
import jax
import jax.numpy as jnp
from jax.experimental import pallas as pl
from jax.experimental.pallas import tpu as pltpu

EMB_DIM = 50          # word embedding dim (BiLSTM.embedding_dim)
HID = 20              # LSTM hidden size
META_HID = 16
NCLASS = 6


# ---------------------------------------------------------------------------
# Pallas kernel: embedding gathers + LSTM recurrence + meta MLP + conj + softmax
# ---------------------------------------------------------------------------
def mixed_lstm_kernel(tok_sm, meta_sm,                 # scalar-prefetch (SMEM)
                      word_emb_hbm,                    # (V, 50)   HBM (pl.ANY)
                      w_ih, b_lstm,                    # (50, 80), (1, 80)
                      whh_i, whh_f, whh_g, whh_o,      # (20, 20) each
                      spk_tab, st_tab, pt_tab,         # meta embedding tables
                      mw1_spk, mw1_st, mw1_pt, mb1,    # meta Linear(32,16) split
                      mw2, mb2,                        # meta Linear(16,16)
                      cw1_h, cw1_m, cb1,               # conj Linear(36,16) split
                      cw2, cb2,                        # conj Linear(16,6)
                      out_ref,                         # (1, 6)
                      x_buf, dma_sems):                # scratch: (T,50) VMEM, DMA sems (T,)
    T = x_buf.shape[0]

    # ---- 1. DMA-gather the T word-embedding rows (HBM -> VMEM scratch). ----
    copies = []
    for t in range(T):                                 # static -> unrolled issue
        cp = pltpu.make_async_copy(word_emb_hbm.at[tok_sm[t]],
                                   x_buf.at[t],
                                   dma_sems.at[t])
        cp.start()
        copies.append(cp)

    # ---- 2. meta MLP (independent of the LSTM): overlaps the gather DMAs. ---
    spk = spk_tab[pl.ds(meta_sm[0], 1), :]             # (1, 20)
    st = st_tab[pl.ds(meta_sm[1], 1), :]               # (1, 8)
    pt = pt_tab[pl.ds(meta_sm[2], 1), :]               # (1, 4)
    # concat(spk, st, pt) @ mw1  ==  spk@mw1_spk + st@mw1_st + pt@mw1_pt
    m1 = jnp.maximum(
        jnp.dot(spk, mw1_spk[...], preferred_element_type=jnp.float32)
        + jnp.dot(st, mw1_st[...], preferred_element_type=jnp.float32)
        + jnp.dot(pt, mw1_pt[...], preferred_element_type=jnp.float32)
        + mb1[...], 0.0)
    m2 = jnp.maximum(
        jnp.dot(m1, mw2[...], preferred_element_type=jnp.float32) + mb2[...],
        0.0)
    # m2-dependent half of the conj first layer, also hoisted above the loop.
    m2c = jnp.dot(m2, cw1_m[...], preferred_element_type=jnp.float32) + cb1[...]

    # ---- 3. Wait for the gather; hoisted input projection (one matmul). -----
    for cp in copies:
        cp.wait()
    xp = (jnp.dot(x_buf[...], w_ih[...], preferred_element_type=jnp.float32)
          + b_lstm[...])                               # (T, 80)
    # Split once (off the critical path) -> no per-step 20/40/60 lane slices.
    xp_i = xp[:, 0 * HID:1 * HID]
    xp_f = xp[:, 1 * HID:2 * HID]
    xp_g = xp[:, 2 * HID:3 * HID]
    xp_o = xp[:, 3 * HID:4 * HID]

    whi = whh_i[...]
    whf = whh_f[...]
    whg = whh_g[...]
    who = whh_o[...]

    # ---- 4. LSTM recurrence, fully unrolled (T is static). ------------------
    # Per step only the tiny h @ W_hh_gate dots remain; gate order i,f,g,o
    # matches PyTorch.
    h = jnp.zeros((1, HID), jnp.float32)
    c = jnp.zeros((1, HID), jnp.float32)
    for t in range(T):
        ig = jax.nn.sigmoid(
            xp_i[t:t + 1, :] + jnp.dot(h, whi, preferred_element_type=jnp.float32))
        fg = jax.nn.sigmoid(
            xp_f[t:t + 1, :] + jnp.dot(h, whf, preferred_element_type=jnp.float32))
        gg = jnp.tanh(
            xp_g[t:t + 1, :] + jnp.dot(h, whg, preferred_element_type=jnp.float32))
        og = jax.nn.sigmoid(
            xp_o[t:t + 1, :] + jnp.dot(h, who, preferred_element_type=jnp.float32))
        c = fg * c + ig * gg
        h = og * jnp.tanh(c)

    # ---- 5. conj head + softmax (only the h-dependent work remains). --------
    c1 = jnp.maximum(
        jnp.dot(h, cw1_h[...], preferred_element_type=jnp.float32) + m2c, 0.0)
    logits = jnp.dot(c1, cw2[...], preferred_element_type=jnp.float32) + cb2[...]
    mx = jnp.max(logits, axis=-1, keepdims=True)
    e = jnp.exp(logits - mx)
    denom = jnp.sum(e, axis=-1, keepdims=True)
    out_ref[...] = e * pl.reciprocal(denom, approx=True)


# ---------------------------------------------------------------------------
# Wrapper: single pallas_call, all gathers fused into the kernel
# ---------------------------------------------------------------------------
def mixed_lstm_forward(params, X, t_lens=None):
    tokens, speaker, state, party = X
    T = tokens.shape[1]

    tok_ids = tokens.reshape(-1).astype(jnp.int32)                    # (T,)
    meta_ids = jnp.concatenate(
        [speaker.reshape(-1), state.reshape(-1), party.reshape(-1)]
    ).astype(jnp.int32)                                               # (3,)

    def vmem_spec(shape):
        zeros = (0,) * len(shape)
        return pl.BlockSpec(shape, lambda i, *_: zeros)               # full block

    vmem_args = (params['w_ih_t'], params['b_lstm'],
                 params['whh_i'], params['whh_f'],
                 params['whh_g'], params['whh_o'],
                 params['speaker_emb'], params['state_emb'], params['party_emb'],
                 params['mw1_spk'], params['mw1_st'], params['mw1_pt'],
                 params['mb1'], params['mw2'], params['mb2'],
                 params['cw1_h'], params['cw1_m'], params['cb1'],
                 params['cw2'], params['cb2'])

    grid_spec = pltpu.PrefetchScalarGridSpec(
        num_scalar_prefetch=2,                     # tok_ids, meta_ids -> SMEM
        grid=(1,),
        in_specs=[pl.BlockSpec(memory_space=pl.ANY)]   # word_emb stays in HBM
                 + [vmem_spec(a.shape) for a in vmem_args],
        out_specs=pl.BlockSpec((1, NCLASS), lambda i, *_: (0, 0)),
        scratch_shapes=[pltpu.VMEM((T, EMB_DIM), jnp.float32),
                        pltpu.SemaphoreType.DMA((T,))],
    )

    out = pl.pallas_call(
        mixed_lstm_kernel,
        out_shape=jax.ShapeDtypeStruct((1, NCLASS), jnp.float32),
        grid_spec=grid_spec,
        compiler_params=pltpu.CompilerParams(
            dimension_semantics=("arbitrary",)),
    )(tok_ids, meta_ids, params['word_emb'], *vmem_args)

    # PyTorch output shape: (1, 1, 6)
    return out.reshape(1, 1, NCLASS)


# ---------------------------------------------------------------------------
# Deterministic parameter init (shapes follow the nn.Module __init__)
# ---------------------------------------------------------------------------
def init_params(key, vocab_size, speakers, states, parties):
    ks = jax.random.split(key, 16)

    def u(k, shape, scale=0.2):
        return jax.random.uniform(k, shape, jnp.float32, -scale, scale)

    # word embedding ("weights" arg), padding row 0 zeroed
    word_emb = u(ks[0], (vocab_size, EMB_DIM), 0.5).at[0].set(0.0)
    speaker_emb = u(ks[1], (speakers + 1, 20), 0.5)
    state_emb = u(ks[2], (states + 1, 8), 0.5)
    party_emb = u(ks[3], (parties + 1, 4), 0.5)

    # LSTM params in PyTorch layout
    w_ih = u(ks[4], (4 * HID, EMB_DIM))     # weight_ih_l0
    w_hh = u(ks[5], (4 * HID, HID))         # weight_hh_l0
    b_ih = u(ks[6], (4 * HID,))
    b_hh = u(ks[7], (4 * HID,))

    # meta: Linear(32,16), Linear(16,16) ; conj: Linear(36,16), Linear(16,6)
    mw1 = u(ks[8], (20 + 8 + 4, META_HID))
    mb1 = u(ks[9], (1, META_HID))
    mw2 = u(ks[10], (META_HID, META_HID))
    mb2 = u(ks[11], (1, META_HID))
    cw1 = u(ks[12], (HID + META_HID, META_HID))
    cb1 = u(ks[13], (1, META_HID))
    cw2 = u(ks[14], (META_HID, NCLASS))
    cb2 = u(ks[15], (1, NCLASS))

    w_ih_t = w_ih.T                          # (50, 80)
    w_hh_t = w_hh.T                          # (20, 80)
    b_lstm = (b_ih + b_hh).reshape(1, 4 * HID)

    return dict(
        word_emb=word_emb, speaker_emb=speaker_emb,
        state_emb=state_emb, party_emb=party_emb,
        # combined layouts (used by the pure-JAX reference)
        w_ih_t=w_ih_t, w_hh_t=w_hh_t, b_lstm=b_lstm, mw1=mw1,
        # per-gate / per-field splits (kernel fast path)
        whh_i=w_hh_t[:, 0 * HID:1 * HID], whh_f=w_hh_t[:, 1 * HID:2 * HID],
        whh_g=w_hh_t[:, 2 * HID:3 * HID], whh_o=w_hh_t[:, 3 * HID:4 * HID],
        mw1_spk=mw1[:20], mw1_st=mw1[20:28], mw1_pt=mw1[28:],
        mb1=mb1, mw2=mw2, mb2=mb2,
        cw1_h=cw1[:HID], cw1_m=cw1[HID:], cb1=cb1,
        cw2=cw2, cb2=cb2,
    )


# ---------------------------------------------------------------------------
# Pure-JAX reference (mirrors the PyTorch forward) for a correctness check
# ---------------------------------------------------------------------------
def reference_forward(params, X):
    tokens, speaker, state, party = X
    x_seq = jnp.take(params['word_emb'], tokens[0], axis=0)
    w_ih, w_hh, b = params['w_ih_t'], params['w_hh_t'], params['b_lstm']
    h = jnp.zeros((1, HID), jnp.float32)
    c = jnp.zeros((1, HID), jnp.float32)
    for t in range(x_seq.shape[0]):
        gates = x_seq[t:t + 1] @ w_ih + h @ w_hh + b
        i = jax.nn.sigmoid(gates[:, :HID])
        f = jax.nn.sigmoid(gates[:, HID:2 * HID])
        g = jnp.tanh(gates[:, 2 * HID:3 * HID])
        o = jax.nn.sigmoid(gates[:, 3 * HID:])
        c = f * c + i * g
        h = o * jnp.tanh(c)
    spk = jnp.take(params['speaker_emb'], speaker.reshape(-1), axis=0)
    st = jnp.take(params['state_emb'], state.reshape(-1), axis=0)
    pt = jnp.take(params['party_emb'], party.reshape(-1), axis=0)
    meta_in = jnp.concatenate([spk, st, pt], axis=-1)
    m1 = jnp.maximum(meta_in @ params['mw1'] + params['mb1'], 0.0)
    m2 = jnp.maximum(m1 @ params['mw2'] + params['mb2'], 0.0)
    c1 = jnp.maximum(h @ params['cw1_h'] + m2 @ params['cw1_m'] + params['cb1'], 0.0)
    logits = c1 @ params['cw2'] + params['cb2']
    return jax.nn.softmax(logits, axis=-1).reshape(1, 1, NCLASS)


if __name__ == "__main__":
    key = jax.random.PRNGKey(0)
    kp, kd = jax.random.split(key)

    vocab_size, speakers, states, parties = 30, 10, 5, 3
    T = 8  # statement length

    params = init_params(kp, vocab_size, speakers, states, parties)

    kt, ksp, kst, kpa = jax.random.split(kd, 4)
    tokens = jax.random.randint(kt, (1, T), 1, vocab_size)       # X[0]
    speaker = jax.random.randint(ksp, (1, 1), 0, speakers + 1)   # X[1]
    state = jax.random.randint(kst, (1, 1), 0, states + 1)       # X[2]
    party = jax.random.randint(kpa, (1, 1), 0, parties + 1)      # X[3]
    t_lens = jnp.array([T], jnp.int32)                           # unused (as in PyTorch)

    X = (tokens, speaker, state, party)
    out = mixed_lstm_forward(params, X, t_lens)
    jax.block_until_ready(out)

    ref = reference_forward(params, X)
    assert out.shape == (1, 1, NCLASS)
    # pl.reciprocal(approx=True) in the softmax trades a few ULPs for latency;
    # compare against the exact-division reference at a relaxed tolerance.
    assert jnp.allclose(out, ref, atol=2e-3, rtol=2e-3), (out, ref)
    assert jnp.allclose(jnp.sum(out, axis=-1), 1.0, atol=2e-3)

    print("KERNEL_OK")
</pallas_src>

<mosaic_0001>
module attributes {stable_mosaic.version = 11 : i64} {
  func.func @mixed_lstm_kernel(%arg0: i32, %arg1: memref<8xi32, #tpu.memory_space<smem>>, %arg2: memref<3xi32, #tpu.memory_space<smem>>, %arg3: memref<30x50xf32, #tpu.memory_space<any>>, %arg4: memref<50x80xf32, #tpu.memory_space<vmem>>, %arg5: memref<1x80xf32, #tpu.memory_space<vmem>>, %arg6: memref<20x20xf32, #tpu.memory_space<vmem>>, %arg7: memref<20x20xf32, #tpu.memory_space<vmem>>, %arg8: memref<20x20xf32, #tpu.memory_space<vmem>>, %arg9: memref<20x20xf32, #tpu.memory_space<vmem>>, %arg10: memref<11x20xf32, #tpu.memory_space<vmem>>, %arg11: memref<6x8xf32, #tpu.memory_space<vmem>>, %arg12: memref<4x4xf32, #tpu.memory_space<vmem>>, %arg13: memref<20x16xf32, #tpu.memory_space<vmem>>, %arg14: memref<8x16xf32, #tpu.memory_space<vmem>>, %arg15: memref<4x16xf32, #tpu.memory_space<vmem>>, %arg16: memref<1x16xf32, #tpu.memory_space<vmem>>, %arg17: memref<16x16xf32, #tpu.memory_space<vmem>>, %arg18: memref<1x16xf32, #tpu.memory_space<vmem>>, %arg19: memref<20x16xf32, #tpu.memory_space<vmem>>, %arg20: memref<16x16xf32, #tpu.memory_space<vmem>>, %arg21: memref<1x16xf32, #tpu.memory_space<vmem>>, %arg22: memref<16x6xf32, #tpu.memory_space<vmem>>, %arg23: memref<1x6xf32, #tpu.memory_space<vmem>>, %arg24: memref<1x6xf32, #tpu.memory_space<vmem>>, %arg25: memref<8x50xf32, #tpu.memory_space<vmem>>, %arg26: memref<8x!tpu.dma_semaphore, #tpu.memory_space<semaphore_mem>>) attributes {dimension_semantics = [#tpu.dimension_semantics<arbitrary>], iteration_bounds = array<i64: 1>, scalar_prefetch = 2 : i64, scratch_operands = 2 : i64, tpu.core_type = #tpu.core_type<tc>, window_params = [{}, {pipeline_mode = #tpu.pipeline_mode<synchronous>, transform_indices = @transform_1, window_bounds = array<i64: 50, 80>}, {pipeline_mode = #tpu.pipeline_mode<synchronous>, transform_indices = @transform_2, window_bounds = array<i64: 1, 80>}, {pipeline_mode = #tpu.pipeline_mode<synchronous>, transform_indices = @transform_3, window_bounds = array<i64: 20, 20>}, {pipeline_mode = #tpu.pipeline_mode<synchronous>, transform_indices = @transform_4, window_bounds = array<i64: 20, 20>}, {pipeline_mode = #tpu.pipeline_mode<synchronous>, transform_indices = @transform_5, window_bounds = array<i64: 20, 20>}, {pipeline_mode = #tpu.pipeline_mode<synchronous>, transform_indices = @transform_6, window_bounds = array<i64: 20, 20>}, {pipeline_mode = #tpu.pipeline_mode<synchronous>, transform_indices = @transform_7, window_bounds = array<i64: 11, 20>}, {pipeline_mode = #tpu.pipeline_mode<synchronous>, transform_indices = @transform_8, window_bounds = array<i64: 6, 8>}, {pipeline_mode = #tpu.pipeline_mode<synchronous>, transform_indices = @transform_9, window_bounds = array<i64: 4, 4>}, {pipeline_mode = #tpu.pipeline_mode<synchronous>, transform_indices = @transform_10, window_bounds = array<i64: 20, 16>}, {pipeline_mode = #tpu.pipeline_mode<synchronous>, transform_indices = @transform_11, window_bounds = array<i64: 8, 16>}, {pipeline_mode = #tpu.pipeline_mode<synchronous>, transform_indices = @transform_12, window_bounds = array<i64: 4, 16>}, {pipeline_mode = #tpu.pipeline_mode<synchronous>, transform_indices = @transform_13, window_bounds = array<i64: 1, 16>}, {pipeline_mode = #tpu.pipeline_mode<synchronous>, transform_indices = @transform_14, window_bounds = array<i64: 16, 16>}, {pipeline_mode = #tpu.pipeline_mode<synchronous>, transform_indices = @transform_15, window_bounds = array<i64: 1, 16>}, {pipeline_mode = #tpu.pipeline_mode<synchronous>, transform_indices = @transform_16, window_bounds = array<i64: 20, 16>}, {pipeline_mode = #tpu.pipeline_mode<synchronous>, transform_indices = @transform_17, window_bounds = array<i64: 16, 16>}, {pipeline_mode = #tpu.pipeline_mode<synchronous>, transform_indices = @transform_18, window_bounds = array<i64: 1, 16>}, {pipeline_mode = #tpu.pipeline_mode<synchronous>, transform_indices = @transform_19, window_bounds = array<i64: 16, 6>}, {pipeline_mode = #tpu.pipeline_mode<synchronous>, transform_indices = @transform_20, window_bounds = array<i64: 1, 6>}, {pipeline_mode = #tpu.pipeline_mode<synchronous>, transform_indices = @transform_21, window_bounds = array<i64: 1, 6>}]} {
    %c0 = arith.constant 0 : index
    %0 = memref.load %arg1[%c0] : memref<8xi32, #tpu.memory_space<smem>>
    %c0_i32 = arith.constant 0 : i32
    %c0_i32_0 = arith.constant 0 : i32
    %c0_i32_1 = arith.constant 0 : i32
    %1 = tpu.memref_slice %arg3[%0, %c0_i32_1] : memref<30x50xf32, #tpu.memory_space<any>> -> memref<1x50xf32, #tpu.memory_space<any>>
    %2 = tpu.memref_squeeze %1 : memref<1x50xf32, #tpu.memory_space<any>> -> memref<50xf32, #tpu.memory_space<any>>
    %c0_i32_2 = arith.constant 0 : i32
    %3 = tpu.memref_slice %arg25[%c0_i32, %c0_i32_2] : memref<8x50xf32, #tpu.memory_space<vmem>> -> memref<1x50xf32, #tpu.memory_space<vmem>>
    %4 = tpu.memref_squeeze %3 : memref<1x50xf32, #tpu.memory_space<vmem>> -> memref<50xf32, #tpu.memory_space<vmem>>
    %5 = tpu.memref_slice %arg26[%c0_i32_0] : memref<8x!tpu.dma_semaphore, #tpu.memory_space<semaphore_mem>> -> memref<1x!tpu.dma_semaphore, #tpu.memory_space<semaphore_mem>>
    %6 = tpu.memref_squeeze %5 : memref<1x!tpu.dma_semaphore, #tpu.memory_space<semaphore_mem>> -> memref<!tpu.dma_semaphore, #tpu.memory_space<semaphore_mem>>
    tpu.enqueue_dma source(%2 : memref<50xf32, #tpu.memory_space<any>>) target(%4 : memref<50xf32, #tpu.memory_space<vmem>>) target_semaphore(%6 : memref<!tpu.dma_semaphore, #tpu.memory_space<semaphore_mem>>)
    %c1 = arith.constant 1 : index
    %7 = memref.load %arg1[%c1] : memref<8xi32, #tpu.memory_space<smem>>
    %c1_i32 = arith.constant 1 : i32
    %c1_i32_3 = arith.constant 1 : i32
    %c0_i32_4 = arith.constant 0 : i32
    %8 = tpu.memref_slice %arg3[%7, %c0_i32_4] : memref<30x50xf32, #tpu.memory_space<any>> -> memref<1x50xf32, #tpu.memory_space<any>>
    %9 = tpu.memref_squeeze %8 : memref<1x50xf32, #tpu.memory_space<any>> -> memref<50xf32, #tpu.memory_space<any>>
    %c0_i32_5 = arith.constant 0 : i32
    %10 = tpu.memref_slice %arg25[%c1_i32, %c0_i32_5] : memref<8x50xf32, #tpu.memory_space<vmem>> -> memref<1x50xf32, #tpu.memory_space<vmem>>
    %11 = tpu.memref_squeeze %10 : memref<1x50xf32, #tpu.memory_space<vmem>> -> memref<50xf32, #tpu.memory_space<vmem>>
    %12 = tpu.memref_slice %arg26[%c1_i32_3] : memref<8x!tpu.dma_semaphore, #tpu.memory_space<semaphore_mem>> -> memref<1x!tpu.dma_semaphore, #tpu.memory_space<semaphore_mem>>
    %13 = tpu.memref_squeeze %12 : memref<1x!tpu.dma_semaphore, #tpu.memory_space<semaphore_mem>> -> memref<!tpu.dma_semaphore, #tpu.memory_space<semaphore_mem>>
    tpu.enqueue_dma source(%9 : memref<50xf32, #tpu.memory_space<any>>) target(%11 : memref<50xf32, #tpu.memory_space<vmem>>) target_semaphore(%13 : memref<!tpu.dma_semaphore, #tpu.memory_space<semaphore_mem>>)
    %c2 = arith.constant 2 : index
    %14 = memref.load %arg1[%c2] : memref<8xi32, #tpu.memory_space<smem>>
    %c2_i32 = arith.constant 2 : i32
    %c2_i32_6 = arith.constant 2 : i32
    %c0_i32_7 = arith.constant 0 : i32
    %15 = tpu.memref_slice %arg3[%14, %c0_i32_7] : memref<30x50xf32, #tpu.memory_space<any>> -> memref<1x50xf32, #tpu.memory_space<any>>
    %16 = tpu.memref_squeeze %15 : memref<1x50xf32, #tpu.memory_space<any>> -> memref<50xf32, #tpu.memory_space<any>>
    %c0_i32_8 = arith.constant 0 : i32
    %17 = tpu.memref_slice %arg25[%c2_i32, %c0_i32_8] : memref<8x50xf32, #tpu.memory_space<vmem>> -> memref<1x50xf32, #tpu.memory_space<vmem>>
    %18 = tpu.memref_squeeze %17 : memref<1x50xf32, #tpu.memory_space<vmem>> -> memref<50xf32, #tpu.memory_space<vmem>>
    %19 = tpu.memref_slice %arg26[%c2_i32_6] : memref<8x!tpu.dma_semaphore, #tpu.memory_space<semaphore_mem>> -> memref<1x!tpu.dma_semaphore, #tpu.memory_space<semaphore_mem>>
    %20 = tpu.memref_squeeze %19 : memref<1x!tpu.dma_semaphore, #tpu.memory_space<semaphore_mem>> -> memref<!tpu.dma_semaphore, #tpu.memory_space<semaphore_mem>>
    tpu.enqueue_dma source(%16 : memref<50xf32, #tpu.memory_space<any>>) target(%18 : memref<50xf32, #tpu.memory_space<vmem>>) target_semaphore(%20 : memref<!tpu.dma_semaphore, #tpu.memory_space<semaphore_mem>>)
    %c3 = arith.constant 3 : index
    %21 = memref.load %arg1[%c3] : memref<8xi32, #tpu.memory_space<smem>>
    %c3_i32 = arith.constant 3 : i32
    %c3_i32_9 = arith.constant 3 : i32
    %c0_i32_10 = arith.constant 0 : i32
    %22 = tpu.memref_slice %arg3[%21, %c0_i32_10] : memref<30x50xf32, #tpu.memory_space<any>> -> memref<1x50xf32, #tpu.memory_space<any>>
    %23 = tpu.memref_squeeze %22 : memref<1x50xf32, #tpu.memory_space<any>> -> memref<50xf32, #tpu.memory_space<any>>
    %c0_i32_11 = arith.constant 0 : i32
    %24 = tpu.memref_slice %arg25[%c3_i32, %c0_i32_11] : memref<8x50xf32, #tpu.memory_space<vmem>> -> memref<1x50xf32, #tpu.memory_space<vmem>>
    %25 = tpu.memref_squeeze %24 : memref<1x50xf32, #tpu.memory_space<vmem>> -> memref<50xf32, #tpu.memory_space<vmem>>
    %26 = tpu.memref_slice %arg26[%c3_i32_9] : memref<8x!tpu.dma_semaphore, #tpu.memory_space<semaphore_mem>> -> memref<1x!tpu.dma_semaphore, #tpu.memory_space<semaphore_mem>>
    %27 = tpu.memref_squeeze %26 : memref<1x!tpu.dma_semaphore, #tpu.memory_space<semaphore_mem>> -> memref<!tpu.dma_semaphore, #tpu.memory_space<semaphore_mem>>
    tpu.enqueue_dma source(%23 : memref<50xf32, #tpu.memory_space<any>>) target(%25 : memref<50xf32, #tpu.memory_space<vmem>>) target_semaphore(%27 : memref<!tpu.dma_semaphore, #tpu.memory_space<semaphore_mem>>)
    %c4 = arith.constant 4 : index
    %28 = memref.load %arg1[%c4] : memref<8xi32, #tpu.memory_space<smem>>
    %c4_i32 = arith.constant 4 : i32
    %c4_i32_12 = arith.constant 4 : i32
    %c0_i32_13 = arith.constant 0 : i32
    %29 = tpu.memref_slice %arg3[%28, %c0_i32_13] : memref<30x50xf32, #tpu.memory_space<any>> -> memref<1x50xf32, #tpu.memory_space<any>>
    %30 = tpu.memref_squeeze %29 : memref<1x50xf32, #tpu.memory_space<any>> -> memref<50xf32, #tpu.memory_space<any>>
    %c0_i32_14 = arith.constant 0 : i32
    %31 = tpu.memref_slice %arg25[%c4_i32, %c0_i32_14] : memref<8x50xf32, #tpu.memory_space<vmem>> -> memref<1x50xf32, #tpu.memory_space<vmem>>
    %32 = tpu.memref_squeeze %31 : memref<1x50xf32, #tpu.memory_space<vmem>> -> memref<50xf32, #tpu.memory_space<vmem>>
    %33 = tpu.memref_slice %arg26[%c4_i32_12] : memref<8x!tpu.dma_semaphore, #tpu.memory_space<semaphore_mem>> -> memref<1x!tpu.dma_semaphore, #tpu.memory_space<semaphore_mem>>
    %34 = tpu.memref_squeeze %33 : memref<1x!tpu.dma_semaphore, #tpu.memory_space<semaphore_mem>> -> memref<!tpu.dma_semaphore, #tpu.memory_space<semaphore_mem>>
    tpu.enqueue_dma source(%30 : memref<50xf32, #tpu.memory_space<any>>) target(%32 : memref<50xf32, #tpu.memory_space<vmem>>) target_semaphore(%34 : memref<!tpu.dma_semaphore, #tpu.memory_space<semaphore_mem>>)
    %c5 = arith.constant 5 : index
    %35 = memref.load %arg1[%c5] : memref<8xi32, #tpu.memory_space<smem>>
    %c5_i32 = arith.constant 5 : i32
    %c5_i32_15 = arith.constant 5 : i32
    %c0_i32_16 = arith.constant 0 : i32
    %36 = tpu.memref_slice %arg3[%35, %c0_i32_16] : memref<30x50xf32, #tpu.memory_space<any>> -> memref<1x50xf32, #tpu.memory_space<any>>
    %37 = tpu.memref_squeeze %36 : memref<1x50xf32, #tpu.memory_space<any>> -> memref<50xf32, #tpu.memory_space<any>>
    %c0_i32_17 = arith.constant 0 : i32
    %38 = tpu.memref_slice %arg25[%c5_i32, %c0_i32_17] : memref<8x50xf32, #tpu.memory_space<vmem>> -> memref<1x50xf32, #tpu.memory_space<vmem>>
    %39 = tpu.memref_squeeze %38 : memref<1x50xf32, #tpu.memory_space<vmem>> -> memref<50xf32, #tpu.memory_space<vmem>>
    %40 = tpu.memref_slice %arg26[%c5_i32_15] : memref<8x!tpu.dma_semaphore, #tpu.memory_space<semaphore_mem>> -> memref<1x!tpu.dma_semaphore, #tpu.memory_space<semaphore_mem>>
    %41 = tpu.memref_squeeze %40 : memref<1x!tpu.dma_semaphore, #tpu.memory_space<semaphore_mem>> -> memref<!tpu.dma_semaphore, #tpu.memory_space<semaphore_mem>>
    tpu.enqueue_dma source(%37 : memref<50xf32, #tpu.memory_space<any>>) target(%39 : memref<50xf32, #tpu.memory_space<vmem>>) target_semaphore(%41 : memref<!tpu.dma_semaphore, #tpu.memory_space<semaphore_mem>>)
    %c6 = arith.constant 6 : index
    %42 = memref.load %arg1[%c6] : memref<8xi32, #tpu.memory_space<smem>>
    %c6_i32 = arith.constant 6 : i32
    %c6_i32_18 = arith.constant 6 : i32
    %c0_i32_19 = arith.constant 0 : i32
    %43 = tpu.memref_slice %arg3[%42, %c0_i32_19] : memref<30x50xf32, #tpu.memory_space<any>> -> memref<1x50xf32, #tpu.memory_space<any>>
    %44 = tpu.memref_squeeze %43 : memref<1x50xf32, #tpu.memory_space<any>> -> memref<50xf32, #tpu.memory_space<any>>
    %c0_i32_20 = arith.constant 0 : i32
    %45 = tpu.memref_slice %arg25[%c6_i32, %c0_i32_20] : memref<8x50xf32, #tpu.memory_space<vmem>> -> memref<1x50xf32, #tpu.memory_space<vmem>>
    %46 = tpu.memref_squeeze %45 : memref<1x50xf32, #tpu.memory_space<vmem>> -> memref<50xf32, #tpu.memory_space<vmem>>
    %47 = tpu.memref_slice %arg26[%c6_i32_18] : memref<8x!tpu.dma_semaphore, #tpu.memory_space<semaphore_mem>> -> memref<1x!tpu.dma_semaphore, #tpu.memory_space<semaphore_mem>>
    %48 = tpu.memref_squeeze %47 : memref<1x!tpu.dma_semaphore, #tpu.memory_space<semaphore_mem>> -> memref<!tpu.dma_semaphore, #tpu.memory_space<semaphore_mem>>
    tpu.enqueue_dma source(%44 : memref<50xf32, #tpu.memory_space<any>>) target(%46 : memref<50xf32, #tpu.memory_space<vmem>>) target_semaphore(%48 : memref<!tpu.dma_semaphore, #tpu.memory_space<semaphore_mem>>)
    %c7 = arith.constant 7 : index
    %49 = memref.load %arg1[%c7] : memref<8xi32, #tpu.memory_space<smem>>
    %c7_i32 = arith.constant 7 : i32
    %c7_i32_21 = arith.constant 7 : i32
    %c0_i32_22 = arith.constant 0 : i32
    %50 = tpu.memref_slice %arg3[%49, %c0_i32_22] : memref<30x50xf32, #tpu.memory_space<any>> -> memref<1x50xf32, #tpu.memory_space<any>>
    %51 = tpu.memref_squeeze %50 : memref<1x50xf32, #tpu.memory_space<any>> -> memref<50xf32, #tpu.memory_space<any>>
    %c0_i32_23 = arith.constant 0 : i32
    %52 = tpu.memref_slice %arg25[%c7_i32, %c0_i32_23] : memref<8x50xf32, #tpu.memory_space<vmem>> -> memref<1x50xf32, #tpu.memory_space<vmem>>
    %53 = tpu.memref_squeeze %52 : memref<1x50xf32, #tpu.memory_space<vmem>> -> memref<50xf32, #tpu.memory_space<vmem>>
    %54 = tpu.memref_slice %arg26[%c7_i32_21] : memref<8x!tpu.dma_semaphore, #tpu.memory_space<semaphore_mem>> -> memref<1x!tpu.dma_semaphore, #tpu.memory_space<semaphore_mem>>
    %55 = tpu.memref_squeeze %54 : memref<1x!tpu.dma_semaphore, #tpu.memory_space<semaphore_mem>> -> memref<!tpu.dma_semaphore, #tpu.memory_space<semaphore_mem>>
    tpu.enqueue_dma source(%51 : memref<50xf32, #tpu.memory_space<any>>) target(%53 : memref<50xf32, #tpu.memory_space<vmem>>) target_semaphore(%55 : memref<!tpu.dma_semaphore, #tpu.memory_space<semaphore_mem>>)
    %c0_24 = arith.constant 0 : index
    %56 = memref.load %arg2[%c0_24] : memref<3xi32, #tpu.memory_space<smem>>
    %57 = arith.index_cast %56 : i32 to index
    %c0_25 = arith.constant 0 : index
    %58 = vector.load %arg10[%57, %c0_25] : memref<11x20xf32, #tpu.memory_space<vmem>>, vector<1x20xf32>
    %c1_26 = arith.constant 1 : index
    %59 = memref.load %arg2[%c1_26] : memref<3xi32, #tpu.memory_space<smem>>
    %60 = arith.index_cast %59 : i32 to index
    %c0_27 = arith.constant 0 : index
    %61 = vector.load %arg11[%60, %c0_27] : memref<6x8xf32, #tpu.memory_space<vmem>>, vector<1x8xf32>
    %c2_28 = arith.constant 2 : index
    %62 = memref.load %arg2[%c2_28] : memref<3xi32, #tpu.memory_space<smem>>
    %63 = arith.index_cast %62 : i32 to index
    %c0_29 = arith.constant 0 : index
    %64 = vector.load %arg12[%63, %c0_29] : memref<4x4xf32, #tpu.memory_space<vmem>>, vector<1x4xf32>
    %c0_30 = arith.constant 0 : index
    %c0_31 = arith.constant 0 : index
    %65 = vector.load %arg13[%c0_30, %c0_31] : memref<20x16xf32, #tpu.memory_space<vmem>>, vector<20x16xf32>
    %cst = arith.constant dense<0.000000e+00> : vector<1x16xf32>
    %66 = tpu.matmul %58, %65, %cst {dimension_numbers = #tpu.dot_dimension_numbers<[1], [0], [0], [1], [0, 0, 1, 1], [], []>} : vector<1x20xf32>, vector<20x16xf32>, vector<1x16xf32> -> vector<1x16xf32>
    %c0_32 = arith.constant 0 : index
    %c0_33 = arith.constant 0 : index
    %67 = vector.load %arg14[%c0_32, %c0_33] : memref<8x16xf32, #tpu.memory_space<vmem>>, vector<8x16xf32>
    %cst_34 = arith.constant dense<0.000000e+00> : vector<1x16xf32>
    %68 = tpu.matmul %61, %67, %cst_34 {dimension_numbers = #tpu.dot_dimension_numbers<[1], [0], [0], [1], [0, 0, 1, 1], [], []>} : vector<1x8xf32>, vector<8x16xf32>, vector<1x16xf32> -> vector<1x16xf32>
    %69 = arith.addf %66, %68 : vector<1x16xf32>
    %c0_35 = arith.constant 0 : index
    %c0_36 = arith.constant 0 : index
    %70 = vector.load %arg15[%c0_35, %c0_36] : memref<4x16xf32, #tpu.memory_space<vmem>>, vector<4x16xf32>
    %cst_37 = arith.constant dense<0.000000e+00> : vector<1x16xf32>
    %71 = tpu.matmul %64, %70, %cst_37 {dimension_numbers = #tpu.dot_dimension_numbers<[1], [0], [0], [1], [0, 0, 1, 1], [], []>} : vector<1x4xf32>, vector<4x16xf32>, vector<1x16xf32> -> vector<1x16xf32>
    %72 = arith.addf %69, %71 : vector<1x16xf32>
    %c0_38 = arith.constant 0 : index
    %c0_39 = arith.constant 0 : index
    %73 = vector.load %arg16[%c0_38, %c0_39] : memref<1x16xf32, #tpu.memory_space<vmem>>, vector<1x16xf32>
    %74 = arith.addf %72, %73 : vector<1x16xf32>
    %cst_40 = arith.constant 0.000000e+00 : f32
    %75 = vector.broadcast %cst_40 : f32 to vector<1x16xf32>
    %76 = arith.maximumf %74, %75 : vector<1x16xf32>
    %c0_41 = arith.constant 0 : index
    %c0_42 = arith.constant 0 : index
    %77 = vector.load %arg17[%c0_41, %c0_42] : memref<16x16xf32, #tpu.memory_space<vmem>>, vector<16x16xf32>
    %cst_43 = arith.constant dense<0.000000e+00> : vector<1x16xf32>
    %78 = tpu.matmul %76, %77, %cst_43 {dimension_numbers = #tpu.dot_dimension_numbers<[1], [0], [0], [1], [0, 0, 1, 1], [], []>} : vector<1x16xf32>, vector<16x16xf32>, vector<1x16xf32> -> vector<1x16xf32>
    %c0_44 = arith.constant 0 : index
    %c0_45 = arith.constant 0 : index
    %79 = vector.load %arg18[%c0_44, %c0_45] : memref<1x16xf32, #tpu.memory_space<vmem>>, vector<1x16xf32>
    %80 = arith.addf %78, %79 : vector<1x16xf32>
    %cst_46 = arith.constant 0.000000e+00 : f32
    %81 = vector.broadcast %cst_46 : f32 to vector<1x16xf32>
    %82 = arith.maximumf %80, %81 : vector<1x16xf32>
    %c0_47 = arith.constant 0 : index
    %c0_48 = arith.constant 0 : index
    %83 = vector.load %arg20[%c0_47, %c0_48] : memref<16x16xf32, #tpu.memory_space<vmem>>, vector<16x16xf32>
    %cst_49 = arith.constant dense<0.000000e+00> : vector<1x16xf32>
    %84 = tpu.matmul %82, %83, %cst_49 {dimension_numbers = #tpu.dot_dimension_numbers<[1], [0], [0], [1], [0, 0, 1, 1], [], []>} : vector<1x16xf32>, vector<16x16xf32>, vector<1x16xf32> -> vector<1x16xf32>
    %c0_50 = arith.constant 0 : index
    %c0_51 = arith.constant 0 : index
    %85 = vector.load %arg21[%c0_50, %c0_51] : memref<1x16xf32, #tpu.memory_space<vmem>>, vector<1x16xf32>
    %86 = arith.addf %84, %85 : vector<1x16xf32>
    %c0_i32_52 = arith.constant 0 : i32
    %c0_i32_53 = arith.constant 0 : i32
    %c0_i32_54 = arith.constant 0 : i32
    %87 = tpu.memref_slice %arg3[%0, %c0_i32_54] : memref<30x50xf32, #tpu.memory_space<any>> -> memref<1x50xf32, #tpu.memory_space<any>>
    %88 = tpu.memref_squeeze %87 : memref<1x50xf32, #tpu.memory_space<any>> -> memref<50xf32, #tpu.memory_space<any>>
    %c0_i32_55 = arith.constant 0 : i32
    %89 = tpu.memref_slice %arg25[%c0_i32_52, %c0_i32_55] : memref<8x50xf32, #tpu.memory_space<vmem>> -> memref<1x50xf32, #tpu.memory_space<vmem>>
    %90 = tpu.memref_squeeze %89 : memref<1x50xf32, #tpu.memory_space<vmem>> -> memref<50xf32, #tpu.memory_space<vmem>>
    %91 = tpu.memref_slice %arg26[%c0_i32_53] : memref<8x!tpu.dma_semaphore, #tpu.memory_space<semaphore_mem>> -> memref<1x!tpu.dma_semaphore, #tpu.memory_space<semaphore_mem>>
    %92 = tpu.memref_squeeze %91 : memref<1x!tpu.dma_semaphore, #tpu.memory_space<semaphore_mem>> -> memref<!tpu.dma_semaphore, #tpu.memory_space<semaphore_mem>>
    tpu.wait_dma2 semaphore(%92 : memref<!tpu.dma_semaphore, #tpu.memory_space<semaphore_mem>>) src(%88 : memref<50xf32, #tpu.memory_space<any>>) dst(%90 : memref<50xf32, #tpu.memory_space<vmem>>)
    %c1_i32_56 = arith.constant 1 : i32
    %c1_i32_57 = arith.constant 1 : i32
    %c0_i32_58 = arith.constant 0 : i32
    %93 = tpu.memref_slice %arg3[%7, %c0_i32_58] : memref<30x50xf32, #tpu.memory_space<any>> -> memref<1x50xf32, #tpu.memory_space<any>>
    %94 = tpu.memref_squeeze %93 : memref<1x50xf32, #tpu.memory_space<any>> -> memref<50xf32, #tpu.memory_space<any>>
    %c0_i32_59 = arith.constant 0 : i32
    %95 = tpu.memref_slice %arg25[%c1_i32_56, %c0_i32_59] : memref<8x50xf32, #tpu.memory_space<vmem>> -> memref<1x50xf32, #tpu.memory_space<vmem>>
    %96 = tpu.memref_squeeze %95 : memref<1x50xf32, #tpu.memory_space<vmem>> -> memref<50xf32, #tpu.memory_space<vmem>>
    %97 = tpu.memref_slice %arg26[%c1_i32_57] : memref<8x!tpu.dma_semaphore, #tpu.memory_space<semaphore_mem>> -> memref<1x!tpu.dma_semaphore, #tpu.memory_space<semaphore_mem>>
    %98 = tpu.memref_squeeze %97 : memref<1x!tpu.dma_semaphore, #tpu.memory_space<semaphore_mem>> -> memref<!tpu.dma_semaphore, #tpu.memory_space<semaphore_mem>>
    tpu.wait_dma2 semaphore(%98 : memref<!tpu.dma_semaphore, #tpu.memory_space<semaphore_mem>>) src(%94 : memref<50xf32, #tpu.memory_space<any>>) dst(%96 : memref<50xf32, #tpu.memory_space<vmem>>)
    %c2_i32_60 = arith.constant 2 : i32
    %c2_i32_61 = arith.constant 2 : i32
    %c0_i32_62 = arith.constant 0 : i32
    %99 = tpu.memref_slice %arg3[%14, %c0_i32_62] : memref<30x50xf32, #tpu.memory_space<any>> -> memref<1x50xf32, #tpu.memory_space<any>>
    %100 = tpu.memref_squeeze %99 : memref<1x50xf32, #tpu.memory_space<any>> -> memref<50xf32, #tpu.memory_space<any>>
    %c0_i32_63 = arith.constant 0 : i32
    %101 = tpu.memref_slice %arg25[%c2_i32_60, %c0_i32_63] : memref<8x50xf32, #tpu.memory_space<vmem>> -> memref<1x50xf32, #tpu.memory_space<vmem>>
    %102 = tpu.memref_squeeze %101 : memref<1x50xf32, #tpu.memory_space<vmem>> -> memref<50xf32, #tpu.memory_space<vmem>>
    %103 = tpu.memref_slice %arg26[%c2_i32_61] : memref<8x!tpu.dma_semaphore, #tpu.memory_space<semaphore_mem>> -> memref<1x!tpu.dma_semaphore, #tpu.memory_space<semaphore_mem>>
    %104 = tpu.memref_squeeze %103 : memref<1x!tpu.dma_semaphore, #tpu.memory_space<semaphore_mem>> -> memref<!tpu.dma_semaphore, #tpu.memory_space<semaphore_mem>>
    tpu.wait_dma2 semaphore(%104 : memref<!tpu.dma_semaphore, #tpu.memory_space<semaphore_mem>>) src(%100 : memref<50xf32, #tpu.memory_space<any>>) dst(%102 : memref<50xf32, #tpu.memory_space<vmem>>)
    %c3_i32_64 = arith.constant 3 : i32
    %c3_i32_65 = arith.constant 3 : i32
    %c0_i32_66 = arith.constant 0 : i32
    %105 = tpu.memref_slice %arg3[%21, %c0_i32_66] : memref<30x50xf32, #tpu.memory_space<any>> -> memref<1x50xf32, #tpu.memory_space<any>>
    %106 = tpu.memref_squeeze %105 : memref<1x50xf32, #tpu.memory_space<any>> -> memref<50xf32, #tpu.memory_space<any>>
    %c0_i32_67 = arith.constant 0 : i32
    %107 = tpu.memref_slice %arg25[%c3_i32_64, %c0_i32_67] : memref<8x50xf32, #tpu.memory_space<vmem>> -> memref<1x50xf32, #tpu.memory_space<vmem>>
    %108 = tpu.memref_squeeze %107 : memref<1x50xf32, #tpu.memory_space<vmem>> -> memref<50xf32, #tpu.memory_space<vmem>>
    %109 = tpu.memref_slice %arg26[%c3_i32_65] : memref<8x!tpu.dma_semaphore, #tpu.memory_space<semaphore_mem>> -> memref<1x!tpu.dma_semaphore, #tpu.memory_space<semaphore_mem>>
    %110 = tpu.memref_squeeze %109 : memref<1x!tpu.dma_semaphore, #tpu.memory_space<semaphore_mem>> -> memref<!tpu.dma_semaphore, #tpu.memory_space<semaphore_mem>>
    tpu.wait_dma2 semaphore(%110 : memref<!tpu.dma_semaphore, #tpu.memory_space<semaphore_mem>>) src(%106 : memref<50xf32, #tpu.memory_space<any>>) dst(%108 : memref<50xf32, #tpu.memory_space<vmem>>)
    %c4_i32_68 = arith.constant 4 : i32
    %c4_i32_69 = arith.constant 4 : i32
    %c0_i32_70 = arith.constant 0 : i32
    %111 = tpu.memref_slice %arg3[%28, %c0_i32_70] : memref<30x50xf32, #tpu.memory_space<any>> -> memref<1x50xf32, #tpu.memory_space<any>>
    %112 = tpu.memref_squeeze %111 : memref<1x50xf32, #tpu.memory_space<any>> -> memref<50xf32, #tpu.memory_space<any>>
    %c0_i32_71 = arith.constant 0 : i32
    %113 = tpu.memref_slice %arg25[%c4_i32_68, %c0_i32_71] : memref<8x50xf32, #tpu.memory_space<vmem>> -> memref<1x50xf32, #tpu.memory_space<vmem>>
    %114 = tpu.memref_squeeze %113 : memref<1x50xf32, #tpu.memory_space<vmem>> -> memref<50xf32, #tpu.memory_space<vmem>>
    %115 = tpu.memref_slice %arg26[%c4_i32_69] : memref<8x!tpu.dma_semaphore, #tpu.memory_space<semaphore_mem>> -> memref<1x!tpu.dma_semaphore, #tpu.memory_space<semaphore_mem>>
    %116 = tpu.memref_squeeze %115 : memref<1x!tpu.dma_semaphore, #tpu.memory_space<semaphore_mem>> -> memref<!tpu.dma_semaphore, #tpu.memory_space<semaphore_mem>>
    tpu.wait_dma2 semaphore(%116 : memref<!tpu.dma_semaphore, #tpu.memory_space<semaphore_mem>>) src(%112 : memref<50xf32, #tpu.memory_space<any>>) dst(%114 : memref<50xf32, #tpu.memory_space<vmem>>)
    %c5_i32_72 = arith.constant 5 : i32
    %c5_i32_73 = arith.constant 5 : i32
    %c0_i32_74 = arith.constant 0 : i32
    %117 = tpu.memref_slice %arg3[%35, %c0_i32_74] : memref<30x50xf32, #tpu.memory_space<any>> -> memref<1x50xf32, #tpu.memory_space<any>>
    %118 = tpu.memref_squeeze %117 : memref<1x50xf32, #tpu.memory_space<any>> -> memref<50xf32, #tpu.memory_space<any>>
    %c0_i32_75 = arith.constant 0 : i32
    %119 = tpu.memref_slice %arg25[%c5_i32_72, %c0_i32_75] : memref<8x50xf32, #tpu.memory_space<vmem>> -> memref<1x50xf32, #tpu.memory_space<vmem>>
    %120 = tpu.memref_squeeze %119 : memref<1x50xf32, #tpu.memory_space<vmem>> -> memref<50xf32, #tpu.memory_space<vmem>>
    %121 = tpu.memref_slice %arg26[%c5_i32_73] : memref<8x!tpu.dma_semaphore, #tpu.memory_space<semaphore_mem>> -> memref<1x!tpu.dma_semaphore, #tpu.memory_space<semaphore_mem>>
    %122 = tpu.memref_squeeze %121 : memref<1x!tpu.dma_semaphore, #tpu.memory_space<semaphore_mem>> -> memref<!tpu.dma_semaphore, #tpu.memory_space<semaphore_mem>>
    tpu.wait_dma2 semaphore(%122 : memref<!tpu.dma_semaphore, #tpu.memory_space<semaphore_mem>>) src(%118 : memref<50xf32, #tpu.memory_space<any>>) dst(%120 : memref<50xf32, #tpu.memory_space<vmem>>)
    %c6_i32_76 = arith.constant 6 : i32
    %c6_i32_77 = arith.constant 6 : i32
    %c0_i32_78 = arith.constant 0 : i32
    %123 = tpu.memref_slice %arg3[%42, %c0_i32_78] : memref<30x50xf32, #tpu.memory_space<any>> -> memref<1x50xf32, #tpu.memory_space<any>>
    %124 = tpu.memref_squeeze %123 : memref<1x50xf32, #tpu.memory_space<any>> -> memref<50xf32, #tpu.memory_space<any>>
    %c0_i32_79 = arith.constant 0 : i32
    %125 = tpu.memref_slice %arg25[%c6_i32_76, %c0_i32_79] : memref<8x50xf32, #tpu.memory_space<vmem>> -> memref<1x50xf32, #tpu.memory_space<vmem>>
    %126 = tpu.memref_squeeze %125 : memref<1x50xf32, #tpu.memory_space<vmem>> -> memref<50xf32, #tpu.memory_space<vmem>>
    %127 = tpu.memref_slice %arg26[%c6_i32_77] : memref<8x!tpu.dma_semaphore, #tpu.memory_space<semaphore_mem>> -> memref<1x!tpu.dma_semaphore, #tpu.memory_space<semaphore_mem>>
    %128 = tpu.memref_squeeze %127 : memref<1x!tpu.dma_semaphore, #tpu.memory_space<semaphore_mem>> -> memref<!tpu.dma_semaphore, #tpu.memory_space<semaphore_mem>>
    tpu.wait_dma2 semaphore(%128 : memref<!tpu.dma_semaphore, #tpu.memory_space<semaphore_mem>>) src(%124 : memref<50xf32, #tpu.memory_space<any>>) dst(%126 : memref<50xf32, #tpu.memory_space<vmem>>)
    %c7_i32_80 = arith.constant 7 : i32
    %c7_i32_81 = arith.constant 7 : i32
    %c0_i32_82 = arith.constant 0 : i32
    %129 = tpu.memref_slice %arg3[%49, %c0_i32_82] : memref<30x50xf32, #tpu.memory_space<any>> -> memref<1x50xf32, #tpu.memory_space<any>>
    %130 = tpu.memref_squeeze %129 : memref<1x50xf32, #tpu.memory_space<any>> -> memref<50xf32, #tpu.memory_space<any>>
    %c0_i32_83 = arith.constant 0 : i32
    %131 = tpu.memref_slice %arg25[%c7_i32_80, %c0_i32_83] : memref<8x50xf32, #tpu.memory_space<vmem>> -> memref<1x50xf32, #tpu.memory_space<vmem>>
    %132 = tpu.memref_squeeze %131 : memref<1x50xf32, #tpu.memory_space<vmem>> -> memref<50xf32, #tpu.memory_space<vmem>>
    %133 = tpu.memref_slice %arg26[%c7_i32_81] : memref<8x!tpu.dma_semaphore, #tpu.memory_space<semaphore_mem>> -> memref<1x!tpu.dma_semaphore, #tpu.memory_space<semaphore_mem>>
    %134 = tpu.memref_squeeze %133 : memref<1x!tpu.dma_semaphore, #tpu.memory_space<semaphore_mem>> -> memref<!tpu.dma_semaphore, #tpu.memory_space<semaphore_mem>>
    tpu.wait_dma2 semaphore(%134 : memref<!tpu.dma_semaphore, #tpu.memory_space<semaphore_mem>>) src(%130 : memref<50xf32, #tpu.memory_space<any>>) dst(%132 : memref<50xf32, #tpu.memory_space<vmem>>)
    %c0_84 = arith.constant 0 : index
    %c0_85 = arith.constant 0 : index
    %135 = vector.load %arg25[%c0_84, %c0_85] : memref<8x50xf32, #tpu.memory_space<vmem>>, vector<8x50xf32>
    %c0_86 = arith.constant 0 : index
    %c0_87 = arith.constant 0 : index
    %136 = vector.load %arg4[%c0_86, %c0_87] : memref<50x80xf32, #tpu.memory_space<vmem>>, vector<50x80xf32>
    %cst_88 = arith.constant dense<0.000000e+00> : vector<8x80xf32>
    %137 = tpu.matmul %135, %136, %cst_88 {dimension_numbers = #tpu.dot_dimension_numbers<[1], [0], [0], [1], [0, 0, 1, 1], [], []>} : vector<8x50xf32>, vector<50x80xf32>, vector<8x80xf32> -> vector<8x80xf32>
    %c0_89 = arith.constant 0 : index
    %c0_90 = arith.constant 0 : index
    %138 = vector.load %arg5[%c0_89, %c0_90] : memref<1x80xf32, #tpu.memory_space<vmem>>, vector<1x80xf32>
    %139 = vector.broadcast %138 : vector<1x80xf32> to vector<8x80xf32>
    %140 = arith.addf %137, %139 : vector<8x80xf32>
    %141 = vector.extract_strided_slice %140 {offsets = [0, 0], sizes = [8, 20], strides = [1, 1]} : vector<8x80xf32> to vector<8x20xf32>
    %142 = vector.extract_strided_slice %140 {offsets = [0, 20], sizes = [8, 20], strides = [1, 1]} : vector<8x80xf32> to vector<8x20xf32>
    %143 = vector.extract_strided_slice %140 {offsets = [0, 40], sizes = [8, 20], strides = [1, 1]} : vector<8x80xf32> to vector<8x20xf32>
    %144 = vector.extract_strided_slice %140 {offsets = [0, 60], sizes = [8, 20], strides = [1, 1]} : vector<8x80xf32> to vector<8x20xf32>
    %c0_91 = arith.constant 0 : index
    %c0_92 = arith.constant 0 : index
    %145 = vector.load %arg6[%c0_91, %c0_92] : memref<20x20xf32, #tpu.memory_space<vmem>>, vector<20x20xf32>
    %c0_93 = arith.constant 0 : index
    %c0_94 = arith.constant 0 : index
    %146 = vector.load %arg7[%c0_93, %c0_94] : memref<20x20xf32, #tpu.memory_space<vmem>>, vector<20x20xf32>
    %c0_95 = arith.constant 0 : index
    %c0_96 = arith.constant 0 : index
    %147 = vector.load %arg8[%c0_95, %c0_96] : memref<20x20xf32, #tpu.memory_space<vmem>>, vector<20x20xf32>
    %c0_97 = arith.constant 0 : index
    %c0_98 = arith.constant 0 : index
    %148 = vector.load %arg9[%c0_97, %c0_98] : memref<20x20xf32, #tpu.memory_space<vmem>>, vector<20x20xf32>
    %cst_99 = arith.constant 0.000000e+00 : f32
    %149 = vector.broadcast %cst_99 : f32 to vector<1x20xf32>
    %cst_100 = arith.constant 0.000000e+00 : f32
    %150 = vector.broadcast %cst_100 : f32 to vector<1x20xf32>
    %151 = vector.extract_strided_slice %141 {offsets = [0, 0], sizes = [1, 20], strides = [1, 1]} : vector<8x20xf32> to vector<1x20xf32>
    %cst_101 = arith.constant dense<0.000000e+00> : vector<1x20xf32>
    %152 = tpu.matmul %149, %145, %cst_101 {dimension_numbers = #tpu.dot_dimension_numbers<[1], [0], [0], [1], [0, 0, 1, 1], [], []>} : vector<1x20xf32>, vector<20x20xf32>, vector<1x20xf32> -> vector<1x20xf32>
    %153 = arith.addf %151, %152 : vector<1x20xf32>
    %154 = arith.negf %153 : vector<1x20xf32>
    %155 = math.exp %154 : vector<1x20xf32>
    %cst_102 = arith.constant 1.000000e+00 : f32
    %156 = vector.broadcast %cst_102 : f32 to vector<1x20xf32>
    %157 = arith.addf %156, %155 : vector<1x20xf32>
    %158 = arith.divf %156, %157 : vector<1x20xf32>
    %159 = vector.extract_strided_slice %142 {offsets = [0, 0], sizes = [1, 20], strides = [1, 1]} : vector<8x20xf32> to vector<1x20xf32>
    %cst_103 = arith.constant dense<0.000000e+00> : vector<1x20xf32>
    %160 = tpu.matmul %149, %146, %cst_103 {dimension_numbers = #tpu.dot_dimension_numbers<[1], [0], [0], [1], [0, 0, 1, 1], [], []>} : vector<1x20xf32>, vector<20x20xf32>, vector<1x20xf32> -> vector<1x20xf32>
    %161 = arith.addf %159, %160 : vector<1x20xf32>
    %162 = arith.negf %161 : vector<1x20xf32>
    %163 = math.exp %162 : vector<1x20xf32>
    %cst_104 = arith.constant 1.000000e+00 : f32
    %164 = vector.broadcast %cst_104 : f32 to vector<1x20xf32>
    %165 = arith.addf %164, %163 : vector<1x20xf32>
    %166 = arith.divf %164, %165 : vector<1x20xf32>
    %167 = vector.extract_strided_slice %143 {offsets = [0, 0], sizes = [1, 20], strides = [1, 1]} : vector<8x20xf32> to vector<1x20xf32>
    %cst_105 = arith.constant dense<0.000000e+00> : vector<1x20xf32>
    %168 = tpu.matmul %149, %147, %cst_105 {dimension_numbers = #tpu.dot_dimension_numbers<[1], [0], [0], [1], [0, 0, 1, 1], [], []>} : vector<1x20xf32>, vector<20x20xf32>, vector<1x20xf32> -> vector<1x20xf32>
    %169 = arith.addf %167, %168 : vector<1x20xf32>
    %170 = math.tanh %169 : vector<1x20xf32>
    %171 = vector.extract_strided_slice %144 {offsets = [0, 0], sizes = [1, 20], strides = [1, 1]} : vector<8x20xf32> to vector<1x20xf32>
    %cst_106 = arith.constant dense<0.000000e+00> : vector<1x20xf32>
    %172 = tpu.matmul %149, %148, %cst_106 {dimension_numbers = #tpu.dot_dimension_numbers<[1], [0], [0], [1], [0, 0, 1, 1], [], []>} : vector<1x20xf32>, vector<20x20xf32>, vector<1x20xf32> -> vector<1x20xf32>
    %173 = arith.addf %171, %172 : vector<1x20xf32>
    %174 = arith.negf %173 : vector<1x20xf32>
    %175 = math.exp %174 : vector<1x20xf32>
    %cst_107 = arith.constant 1.000000e+00 : f32
    %176 = vector.broadcast %cst_107 : f32 to vector<1x20xf32>
    %177 = arith.addf %176, %175 : vector<1x20xf32>
    %178 = arith.divf %176, %177 : vector<1x20xf32>
    %179 = arith.mulf %166, %150 : vector<1x20xf32>
    %180 = arith.mulf %158, %170 : vector<1x20xf32>
    %181 = arith.addf %179, %180 : vector<1x20xf32>
    %182 = math.tanh %181 : vector<1x20xf32>
    %183 = arith.mulf %178, %182 : vector<1x20xf32>
    %184 = vector.extract_strided_slice %141 {offsets = [1, 0], sizes = [1, 20], strides = [1, 1]} : vector<8x20xf32> to vector<1x20xf32>
    %cst_108 = arith.constant dense<0.000000e+00> : vector<1x20xf32>
    %185 = tpu.matmul %183, %145, %cst_108 {dimension_numbers = #tpu.dot_dimension_numbers<[1], [0], [0], [1], [0, 0, 1, 1], [], []>} : vector<1x20xf32>, vector<20x20xf32>, vector<1x20xf32> -> vector<1x20xf32>
    %186 = arith.addf %184, %185 : vector<1x20xf32>
    %187 = arith.negf %186 : vector<1x20xf32>
    %188 = math.exp %187 : vector<1x20xf32>
    %cst_109 = arith.constant 1.000000e+00 : f32
    %189 = vector.broadcast %cst_109 : f32 to vector<1x20xf32>
    %190 = arith.addf %189, %188 : vector<1x20xf32>
    %191 = arith.divf %189, %190 : vector<1x20xf32>
    %192 = vector.extract_strided_slice %142 {offsets = [1, 0], sizes = [1, 20], strides = [1, 1]} : vector<8x20xf32> to vector<1x20xf32>
    %cst_110 = arith.constant dense<0.000000e+00> : vector<1x20xf32>
    %193 = tpu.matmul %183, %146, %cst_110 {dimension_numbers = #tpu.dot_dimension_numbers<[1], [0], [0], [1], [0, 0, 1, 1], [], []>} : vector<1x20xf32>, vector<20x20xf32>, vector<1x20xf32> -> vector<1x20xf32>
    %194 = arith.addf %192, %193 : vector<1x20xf32>
    %195 = arith.negf %194 : vector<1x20xf32>
    %196 = math.exp %195 : vector<1x20xf32>
    %cst_111 = arith.constant 1.000000e+00 : f32
    %197 = vector.broadcast %cst_111 : f32 to vector<1x20xf32>
    %198 = arith.addf %197, %196 : vector<1x20xf32>
    %199 = arith.divf %197, %198 : vector<1x20xf32>
    %200 = vector.extract_strided_slice %143 {offsets = [1, 0], sizes = [1, 20], strides = [1, 1]} : vector<8x20xf32> to vector<1x20xf32>
    %cst_112 = arith.constant dense<0.000000e+00> : vector<1x20xf32>
    %201 = tpu.matmul %183, %147, %cst_112 {dimension_numbers = #tpu.dot_dimension_numbers<[1], [0], [0], [1], [0, 0, 1, 1], [], []>} : vector<1x20xf32>, vector<20x20xf32>, vector<1x20xf32> -> vector<1x20xf32>
    %202 = arith.addf %200, %201 : vector<1x20xf32>
    %203 = math.tanh %202 : vector<1x20xf32>
    %204 = vector.extract_strided_slice %144 {offsets = [1, 0], sizes = [1, 20], strides = [1, 1]} : vector<8x20xf32> to vector<1x20xf32>
    %cst_113 = arith.constant dense<0.000000e+00> : vector<1x20xf32>
    %205 = tpu.matmul %183, %148, %cst_113 {dimension_numbers = #tpu.dot_dimension_numbers<[1], [0], [0], [1], [0, 0, 1, 1], [], []>} : vector<1x20xf32>, vector<20x20xf32>, vector<1x20xf32> -> vector<1x20xf32>
    %206 = arith.addf %204, %205 : vector<1x20xf32>
    %207 = arith.negf %206 : vector<1x20xf32>
    %208 = math.exp %207 : vector<1x20xf32>
    %cst_114 = arith.constant 1.000000e+00 : f32
    %209 = vector.broadcast %cst_114 : f32 to vector<1x20xf32>
    %210 = arith.addf %209, %208 : vector<1x20xf32>
    %211 = arith.divf %209, %210 : vector<1x20xf32>
    %212 = arith.mulf %199, %181 : vector<1x20xf32>
    %213 = arith.mulf %191, %203 : vector<1x20xf32>
    %214 = arith.addf %212, %213 : vector<1x20xf32>
    %215 = math.tanh %214 : vector<1x20xf32>
    %216 = arith.mulf %211, %215 : vector<1x20xf32>
    %217 = vector.extract_strided_slice %141 {offsets = [2, 0], sizes = [1, 20], strides = [1, 1]} : vector<8x20xf32> to vector<1x20xf32>
    %cst_115 = arith.constant dense<0.000000e+00> : vector<1x20xf32>
    %218 = tpu.matmul %216, %145, %cst_115 {dimension_numbers = #tpu.dot_dimension_numbers<[1], [0], [0], [1], [0, 0, 1, 1], [], []>} : vector<1x20xf32>, vector<20x20xf32>, vector<1x20xf32> -> vector<1x20xf32>
    %219 = arith.addf %217, %218 : vector<1x20xf32>
    %220 = arith.negf %219 : vector<1x20xf32>
    %221 = math.exp %220 : vector<1x20xf32>
    %cst_116 = arith.constant 1.000000e+00 : f32
    %222 = vector.broadcast %cst_116 : f32 to vector<1x20xf32>
    %223 = arith.addf %222, %221 : vector<1x20xf32>
    %224 = arith.divf %222, %223 : vector<1x20xf32>
    %225 = vector.extract_strided_slice %142 {offsets = [2, 0], sizes = [1, 20], strides = [1, 1]} : vector<8x20xf32> to vector<1x20xf32>
    %cst_117 = arith.constant dense<0.000000e+00> : vector<1x20xf32>
    %226 = tpu.matmul %216, %146, %cst_117 {dimension_numbers = #tpu.dot_dimension_numbers<[1], [0], [0], [1], [0, 0, 1, 1], [], []>} : vector<1x20xf32>, vector<20x20xf32>, vector<1x20xf32> -> vector<1x20xf32>
    %227 = arith.addf %225, %226 : vector<1x20xf32>
    %228 = arith.negf %227 : vector<1x20xf32>
    %229 = math.exp %228 : vector<1x20xf32>
    %cst_118 = arith.constant 1.000000e+00 : f32
    %230 = vector.broadcast %cst_118 : f32 to vector<1x20xf32>
    %231 = arith.addf %230, %229 : vector<1x20xf32>
    %232 = arith.divf %230, %231 : vector<1x20xf32>
    %233 = vector.extract_strided_slice %143 {offsets = [2, 0], sizes = [1, 20], strides = [1, 1]} : vector<8x20xf32> to vector<1x20xf32>
    %cst_119 = arith.constant dense<0.000000e+00> : vector<1x20xf32>
    %234 = tpu.matmul %216, %147, %cst_119 {dimension_numbers = #tpu.dot_dimension_numbers<[1], [0], [0], [1], [0, 0, 1, 1], [], []>} : vector<1x20xf32>, vector<20x20xf32>, vector<1x20xf32> -> vector<1x20xf32>
    %235 = arith.addf %233, %234 : vector<1x20xf32>
    %236 = math.tanh %235 : vector<1x20xf32>
    %237 = vector.extract_strided_slice %144 {offsets = [2, 0], sizes = [1, 20], strides = [1, 1]} : vector<8x20xf32> to vector<1x20xf32>
    %cst_120 = arith.constant dense<0.000000e+00> : vector<1x20xf32>
    %238 = tpu.matmul %216, %148, %cst_120 {dimension_numbers = #tpu.dot_dimension_numbers<[1], [0], [0], [1], [0, 0, 1, 1], [], []>} : vector<1x20xf32>, vector<20x20xf32>, vector<1x20xf32> -> vector<1x20xf32>
    %239 = arith.addf %237, %238 : vector<1x20xf32>
    %240 = arith.negf %239 : vector<1x20xf32>
    %241 = math.exp %240 : vector<1x20xf32>
    %cst_121 = arith.constant 1.000000e+00 : f32
    %242 = vector.broadcast %cst_121 : f32 to vector<1x20xf32>
    %243 = arith.addf %242, %241 : vector<1x20xf32>
    %244 = arith.divf %242, %243 : vector<1x20xf32>
    %245 = arith.mulf %232, %214 : vector<1x20xf32>
    %246 = arith.mulf %224, %236 : vector<1x20xf32>
    %247 = arith.addf %245, %246 : vector<1x20xf32>
    %248 = math.tanh %247 : vector<1x20xf32>
    %249 = arith.mulf %244, %248 : vector<1x20xf32>
    %250 = vector.extract_strided_slice %141 {offsets = [3, 0], sizes = [1, 20], strides = [1, 1]} : vector<8x20xf32> to vector<1x20xf32>
    %cst_122 = arith.constant dense<0.000000e+00> : vector<1x20xf32>
    %251 = tpu.matmul %249, %145, %cst_122 {dimension_numbers = #tpu.dot_dimension_numbers<[1], [0], [0], [1], [0, 0, 1, 1], [], []>} : vector<1x20xf32>, vector<20x20xf32>, vector<1x20xf32> -> vector<1x20xf32>
    %252 = arith.addf %250, %251 : vector<1x20xf32>
    %253 = arith.negf %252 : vector<1x20xf32>
    %254 = math.exp %253 : vector<1x20xf32>
    %cst_123 = arith.constant 1.000000e+00 : f32
    %255 = vector.broadcast %cst_123 : f32 to vector<1x20xf32>
    %256 = arith.addf %255, %254 : vector<1x20xf32>
    %257 = arith.divf %255, %256 : vector<1x20xf32>
    %258 = vector.extract_strided_slice %142 {offsets = [3, 0], sizes = [1, 20], strides = [1, 1]} : vector<8x20xf32> to vector<1x20xf32>
    %cst_124 = arith.constant dense<0.000000e+00> : vector<1x20xf32>
    %259 = tpu.matmul %249, %146, %cst_124 {dimension_numbers = #tpu.dot_dimension_numbers<[1], [0], [0], [1], [0, 0, 1, 1], [], []>} : vector<1x20xf32>, vector<20x20xf32>, vector<1x20xf32> -> vector<1x20xf32>
    %260 = arith.addf %258, %259 : vector<1x20xf32>
    %261 = arith.negf %260 : vector<1x20xf32>
    %262 = math.exp %261 : vector<1x20xf32>
    %cst_125 = arith.constant 1.000000e+00 : f32
    %263 = vector.broadcast %cst_125 : f32 to vector<1x20xf32>
    %264 = arith.addf %263, %262 : vector<1x20xf32>
    %265 = arith.divf %263, %264 : vector<1x20xf32>
    %266 = vector.extract_strided_slice %143 {offsets = [3, 0], sizes = [1, 20], strides = [1, 1]} : vector<8x20xf32> to vector<1x20xf32>
    %cst_126 = arith.constant dense<0.000000e+00> : vector<1x20xf32>
    %267 = tpu.matmul %249, %147, %cst_126 {dimension_numbers = #tpu.dot_dimension_numbers<[1], [0], [0], [1], [0, 0, 1, 1], [], []>} : vector<1x20xf32>, vector<20x20xf32>, vector<1x20xf32> -> vector<1x20xf32>
    %268 = arith.addf %266, %267 : vector<1x20xf32>
    %269 = math.tanh %268 : vector<1x20xf32>
    %270 = vector.extract_strided_slice %144 {offsets = [3, 0], sizes = [1, 20], strides = [1, 1]} : vector<8x20xf32> to vector<1x20xf32>
    %cst_127 = arith.constant dense<0.000000e+00> : vector<1x20xf32>
    %271 = tpu.matmul %249, %148, %cst_127 {dimension_numbers = #tpu.dot_dimension_numbers<[1], [0], [0], [1], [0, 0, 1, 1], [], []>} : vector<1x20xf32>, vector<20x20xf32>, vector<1x20xf32> -> vector<1x20xf32>
    %272 = arith.addf %270, %271 : vector<1x20xf32>
    %273 = arith.negf %272 : vector<1x20xf32>
    %274 = math.exp %273 : vector<1x20xf32>
    %cst_128 = arith.constant 1.000000e+00 : f32
    %275 = vector.broadcast %cst_128 : f32 to vector<1x20xf32>
    %276 = arith.addf %275, %274 : vector<1x20xf32>
    %277 = arith.divf %275, %276 : vector<1x20xf32>
    %278 = arith.mulf %265, %247 : vector<1x20xf32>
    %279 = arith.mulf %257, %269 : vector<1x20xf32>
    %280 = arith.addf %278, %279 : vector<1x20xf32>
    %281 = math.tanh %280 : vector<1x20xf32>
    %282 = arith.mulf %277, %281 : vector<1x20xf32>
    %283 = vector.extract_strided_slice %141 {offsets = [4, 0], sizes = [1, 20], strides = [1, 1]} : vector<8x20xf32> to vector<1x20xf32>
    %cst_129 = arith.constant dense<0.000000e+00> : vector<1x20xf32>
    %284 = tpu.matmul %282, %145, %cst_129 {dimension_numbers = #tpu.dot_dimension_numbers<[1], [0], [0], [1], [0, 0, 1, 1], [], []>} : vector<1x20xf32>, vector<20x20xf32>, vector<1x20xf32> -> vector<1x20xf32>
    %285 = arith.addf %283, %284 : vector<1x20xf32>
    %286 = arith.negf %285 : vector<1x20xf32>
    %287 = math.exp %286 : vector<1x20xf32>
    %cst_130 = arith.constant 1.000000e+00 : f32
    %288 = vector.broadcast %cst_130 : f32 to vector<1x20xf32>
    %289 = arith.addf %288, %287 : vector<1x20xf32>
    %290 = arith.divf %288, %289 : vector<1x20xf32>
    %291 = vector.extract_strided_slice %142 {offsets = [4, 0], sizes = [1, 20], strides = [1, 1]} : vector<8x20xf32> to vector<1x20xf32>
    %cst_131 = arith.constant dense<0.000000e+00> : vector<1x20xf32>
    %292 = tpu.matmul %282, %146, %cst_131 {dimension_numbers = #tpu.dot_dimension_numbers<[1], [0], [0], [1], [0, 0, 1, 1], [], []>} : vector<1x20xf32>, vector<20x20xf32>, vector<1x20xf32> -> vector<1x20xf32>
    %293 = arith.addf %291, %292 : vector<1x20xf32>
    %294 = arith.negf %293 : vector<1x20xf32>
    %295 = math.exp %294 : vector<1x20xf32>
    %cst_132 = arith.constant 1.000000e+00 : f32
    %296 = vector.broadcast %cst_132 : f32 to vector<1x20xf32>
    %297 = arith.addf %296, %295 : vector<1x20xf32>
    %298 = arith.divf %296, %297 : vector<1x20xf32>
    %299 = vector.extract_strided_slice %143 {offsets = [4, 0], sizes = [1, 20], strides = [1, 1]} : vector<8x20xf32> to vector<1x20xf32>
    %cst_133 = arith.constant dense<0.000000e+00> : vector<1x20xf32>
    %300 = tpu.matmul %282, %147, %cst_133 {dimension_numbers = #tpu.dot_dimension_numbers<[1], [0], [0], [1], [0, 0, 1, 1], [], []>} : vector<1x20xf32>, vector<20x20xf32>, vector<1x20xf32> -> vector<1x20xf32>
    %301 = arith.addf %299, %300 : vector<1x20xf32>
    %302 = math.tanh %301 : vector<1x20xf32>
    %303 = vector.extract_strided_slice %144 {offsets = [4, 0], sizes = [1, 20], strides = [1, 1]} : vector<8x20xf32> to vector<1x20xf32>
    %cst_134 = arith.constant dense<0.000000e+00> : vector<1x20xf32>
    %304 = tpu.matmul %282, %148, %cst_134 {dimension_numbers = #tpu.dot_dimension_numbers<[1], [0], [0], [1], [0, 0, 1, 1], [], []>} : vector<1x20xf32>, vector<20x20xf32>, vector<1x20xf32> -> vector<1x20xf32>
    %305 = arith.addf %303, %304 : vector<1x20xf32>
    %306 = arith.negf %305 : vector<1x20xf32>
    %307 = math.exp %306 : vector<1x20xf32>
    %cst_135 = arith.constant 1.000000e+00 : f32
    %308 = vector.broadcast %cst_135 : f32 to vector<1x20xf32>
    %309 = arith.addf %308, %307 : vector<1x20xf32>
    %310 = arith.divf %308, %309 : vector<1x20xf32>
    %311 = arith.mulf %298, %280 : vector<1x20xf32>
    %312 = arith.mulf %290, %302 : vector<1x20xf32>
    %313 = arith.addf %311, %312 : vector<1x20xf32>
    %314 = math.tanh %313 : vector<1x20xf32>
    %315 = arith.mulf %310, %314 : vector<1x20xf32>
    %316 = vector.extract_strided_slice %141 {offsets = [5, 0], sizes = [1, 20], strides = [1, 1]} : vector<8x20xf32> to vector<1x20xf32>
    %cst_136 = arith.constant dense<0.000000e+00> : vector<1x20xf32>
    %317 = tpu.matmul %315, %145, %cst_136 {dimension_numbers = #tpu.dot_dimension_numbers<[1], [0], [0], [1], [0, 0, 1, 1], [], []>} : vector<1x20xf32>, vector<20x20xf32>, vector<1x20xf32> -> vector<1x20xf32>
    %318 = arith.addf %316, %317 : vector<1x20xf32>
    %319 = arith.negf %318 : vector<1x20xf32>
    %320 = math.exp %319 : vector<1x20xf32>
    %cst_137 = arith.constant 1.000000e+00 : f32
    %321 = vector.broadcast %cst_137 : f32 to vector<1x20xf32>
    %322 = arith.addf %321, %320 : vector<1x20xf32>
    %323 = arith.divf %321, %322 : vector<1x20xf32>
    %324 = vector.extract_strided_slice %142 {offsets = [5, 0], sizes = [1, 20], strides = [1, 1]} : vector<8x20xf32> to vector<1x20xf32>
    %cst_138 = arith.constant dense<0.000000e+00> : vector<1x20xf32>
    %325 = tpu.matmul %315, %146, %cst_138 {dimension_numbers = #tpu.dot_dimension_numbers<[1], [0], [0], [1], [0, 0, 1, 1], [], []>} : vector<1x20xf32>, vector<20x20xf32>, vector<1x20xf32> -> vector<1x20xf32>
    %326 = arith.addf %324, %325 : vector<1x20xf32>
    %327 = arith.negf %326 : vector<1x20xf32>
    %328 = math.exp %327 : vector<1x20xf32>
    %cst_139 = arith.constant 1.000000e+00 : f32
    %329 = vector.broadcast %cst_139 : f32 to vector<1x20xf32>
    %330 = arith.addf %329, %328 : vector<1x20xf32>
    %331 = arith.divf %329, %330 : vector<1x20xf32>
    %332 = vector.extract_strided_slice %143 {offsets = [5, 0], sizes = [1, 20], strides = [1, 1]} : vector<8x20xf32> to vector<1x20xf32>
    %cst_140 = arith.constant dense<0.000000e+00> : vector<1x20xf32>
    %333 = tpu.matmul %315, %147, %cst_140 {dimension_numbers = #tpu.dot_dimension_numbers<[1], [0], [0], [1], [0, 0, 1, 1], [], []>} : vector<1x20xf32>, vector<20x20xf32>, vector<1x20xf32> -> vector<1x20xf32>
    %334 = arith.addf %332, %333 : vector<1x20xf32>
    %335 = math.tanh %334 : vector<1x20xf32>
    %336 = vector.extract_strided_slice %144 {offsets = [5, 0], sizes = [1, 20], strides = [1, 1]} : vector<8x20xf32> to vector<1x20xf32>
    %cst_141 = arith.constant dense<0.000000e+00> : vector<1x20xf32>
    %337 = tpu.matmul %315, %148, %cst_141 {dimension_numbers = #tpu.dot_dimension_numbers<[1], [0], [0], [1], [0, 0, 1, 1], [], []>} : vector<1x20xf32>, vector<20x20xf32>, vector<1x20xf32> -> vector<1x20xf32>
    %338 = arith.addf %336, %337 : vector<1x20xf32>
    %339 = arith.negf %338 : vector<1x20xf32>
    %340 = math.exp %339 : vector<1x20xf32>
    %cst_142 = arith.constant 1.000000e+00 : f32
    %341 = vector.broadcast %cst_142 : f32 to vector<1x20xf32>
    %342 = arith.addf %341, %340 : vector<1x20xf32>
    %343 = arith.divf %341, %342 : vector<1x20xf32>
    %344 = arith.mulf %331, %313 : vector<1x20xf32>
    %345 = arith.mulf %323, %335 : vector<1x20xf32>
    %346 = arith.addf %344, %345 : vector<1x20xf32>
    %347 = math.tanh %346 : vector<1x20xf32>
    %348 = arith.mulf %343, %347 : vector<1x20xf32>
    %349 = vector.extract_strided_slice %141 {offsets = [6, 0], sizes = [1, 20], strides = [1, 1]} : vector<8x20xf32> to vector<1x20xf32>
    %cst_143 = arith.constant dense<0.000000e+00> : vector<1x20xf32>
    %350 = tpu.matmul %348, %145, %cst_143 {dimension_numbers = #tpu.dot_dimension_numbers<[1], [0], [0], [1], [0, 0, 1, 1], [], []>} : vector<1x20xf32>, vector<20x20xf32>, vector<1x20xf32> -> vector<1x20xf32>
    %351 = arith.addf %349, %350 : vector<1x20xf32>
    %352 = arith.negf %351 : vector<1x20xf32>
    %353 = math.exp %352 : vector<1x20xf32>
    %cst_144 = arith.constant 1.000000e+00 : f32
    %354 = vector.broadcast %cst_144 : f32 to vector<1x20xf32>
    %355 = arith.addf %354, %353 : vector<1x20xf32>
    %356 = arith.divf %354, %355 : vector<1x20xf32>
    %357 = vector.extract_strided_slice %142 {offsets = [6, 0], sizes = [1, 20], strides = [1, 1]} : vector<8x20xf32> to vector<1x20xf32>
    %cst_145 = arith.constant dense<0.000000e+00> : vector<1x20xf32>
    %358 = tpu.matmul %348, %146, %cst_145 {dimension_numbers = #tpu.dot_dimension_numbers<[1], [0], [0], [1], [0, 0, 1, 1], [], []>} : vector<1x20xf32>, vector<20x20xf32>, vector<1x20xf32> -> vector<1x20xf32>
    %359 = arith.addf %357, %358 : vector<1x20xf32>
    %360 = arith.negf %359 : vector<1x20xf32>
    %361 = math.exp %360 : vector<1x20xf32>
    %cst_146 = arith.constant 1.000000e+00 : f32
    %362 = vector.broadcast %cst_146 : f32 to vector<1x20xf32>
    %363 = arith.addf %362, %361 : vector<1x20xf32>
    %364 = arith.divf %362, %363 : vector<1x20xf32>
    %365 = vector.extract_strided_slice %143 {offsets = [6, 0], sizes = [1, 20], strides = [1, 1]} : vector<8x20xf32> to vector<1x20xf32>
    %cst_147 = arith.constant dense<0.000000e+00> : vector<1x20xf32>
    %366 = tpu.matmul %348, %147, %cst_147 {dimension_numbers = #tpu.dot_dimension_numbers<[1], [0], [0], [1], [0, 0, 1, 1], [], []>} : vector<1x20xf32>, vector<20x20xf32>, vector<1x20xf32> -> vector<1x20xf32>
    %367 = arith.addf %365, %366 : vector<1x20xf32>
    %368 = math.tanh %367 : vector<1x20xf32>
    %369 = vector.extract_strided_slice %144 {offsets = [6, 0], sizes = [1, 20], strides = [1, 1]} : vector<8x20xf32> to vector<1x20xf32>
    %cst_148 = arith.constant dense<0.000000e+00> : vector<1x20xf32>
    %370 = tpu.matmul %348, %148, %cst_148 {dimension_numbers = #tpu.dot_dimension_numbers<[1], [0], [0], [1], [0, 0, 1, 1], [], []>} : vector<1x20xf32>, vector<20x20xf32>, vector<1x20xf32> -> vector<1x20xf32>
    %371 = arith.addf %369, %370 : vector<1x20xf32>
    %372 = arith.negf %371 : vector<1x20xf32>
    %373 = math.exp %372 : vector<1x20xf32>
    %cst_149 = arith.constant 1.000000e+00 : f32
    %374 = vector.broadcast %cst_149 : f32 to vector<1x20xf32>
    %375 = arith.addf %374, %373 : vector<1x20xf32>
    %376 = arith.divf %374, %375 : vector<1x20xf32>
    %377 = arith.mulf %364, %346 : vector<1x20xf32>
    %378 = arith.mulf %356, %368 : vector<1x20xf32>
    %379 = arith.addf %377, %378 : vector<1x20xf32>
    %380 = math.tanh %379 : vector<1x20xf32>
    %381 = arith.mulf %376, %380 : vector<1x20xf32>
    %382 = vector.extract_strided_slice %141 {offsets = [7, 0], sizes = [1, 20], strides = [1, 1]} : vector<8x20xf32> to vector<1x20xf32>
    %cst_150 = arith.constant dense<0.000000e+00> : vector<1x20xf32>
    %383 = tpu.matmul %381, %145, %cst_150 {dimension_numbers = #tpu.dot_dimension_numbers<[1], [0], [0], [1], [0, 0, 1, 1], [], []>} : vector<1x20xf32>, vector<20x20xf32>, vector<1x20xf32> -> vector<1x20xf32>
    %384 = arith.addf %382, %383 : vector<1x20xf32>
    %385 = arith.negf %384 : vector<1x20xf32>
    %386 = math.exp %385 : vector<1x20xf32>
    %cst_151 = arith.constant 1.000000e+00 : f32
    %387 = vector.broadcast %cst_151 : f32 to vector<1x20xf32>
    %388 = arith.addf %387, %386 : vector<1x20xf32>
    %389 = arith.divf %387, %388 : vector<1x20xf32>
    %390 = vector.extract_strided_slice %142 {offsets = [7, 0], sizes = [1, 20], strides = [1, 1]} : vector<8x20xf32> to vector<1x20xf32>
    %cst_152 = arith.constant dense<0.000000e+00> : vector<1x20xf32>
    %391 = tpu.matmul %381, %146, %cst_152 {dimension_numbers = #tpu.dot_dimension_numbers<[1], [0], [0], [1], [0, 0, 1, 1], [], []>} : vector<1x20xf32>, vector<20x20xf32>, vector<1x20xf32> -> vector<1x20xf32>
    %392 = arith.addf %390, %391 : vector<1x20xf32>
    %393 = arith.negf %392 : vector<1x20xf32>
    %394 = math.exp %393 : vector<1x20xf32>
    %cst_153 = arith.constant 1.000000e+00 : f32
    %395 = vector.broadcast %cst_153 : f32 to vector<1x20xf32>
    %396 = arith.addf %395, %394 : vector<1x20xf32>
    %397 = arith.divf %395, %396 : vector<1x20xf32>
    %398 = vector.extract_strided_slice %143 {offsets = [7, 0], sizes = [1, 20], strides = [1, 1]} : vector<8x20xf32> to vector<1x20xf32>
    %cst_154 = arith.constant dense<0.000000e+00> : vector<1x20xf32>
    %399 = tpu.matmul %381, %147, %cst_154 {dimension_numbers = #tpu.dot_dimension_numbers<[1], [0], [0], [1], [0, 0, 1, 1], [], []>} : vector<1x20xf32>, vector<20x20xf32>, vector<1x20xf32> -> vector<1x20xf32>
    %400 = arith.addf %398, %399 : vector<1x20xf32>
    %401 = math.tanh %400 : vector<1x20xf32>
    %402 = vector.extract_strided_slice %144 {offsets = [7, 0], sizes = [1, 20], strides = [1, 1]} : vector<8x20xf32> to vector<1x20xf32>
    %cst_155 = arith.constant dense<0.000000e+00> : vector<1x20xf32>
    %403 = tpu.matmul %381, %148, %cst_155 {dimension_numbers = #tpu.dot_dimension_numbers<[1], [0], [0], [1], [0, 0, 1, 1], [], []>} : vector<1x20xf32>, vector<20x20xf32>, vector<1x20xf32> -> vector<1x20xf32>
    %404 = arith.addf %402, %403 : vector<1x20xf32>
    %405 = arith.negf %404 : vector<1x20xf32>
    %406 = math.exp %405 : vector<1x20xf32>
    %cst_156 = arith.constant 1.000000e+00 : f32
    %407 = vector.broadcast %cst_156 : f32 to vector<1x20xf32>
    %408 = arith.addf %407, %406 : vector<1x20xf32>
    %409 = arith.divf %407, %408 : vector<1x20xf32>
    %410 = arith.mulf %397, %379 : vector<1x20xf32>
    %411 = arith.mulf %389, %401 : vector<1x20xf32>
    %412 = arith.addf %410, %411 : vector<1x20xf32>
    %413 = math.tanh %412 : vector<1x20xf32>
    %414 = arith.mulf %409, %413 : vector<1x20xf32>
    %c0_157 = arith.constant 0 : index
    %c0_158 = arith.constant 0 : index
    %415 = vector.load %arg19[%c0_157, %c0_158] : memref<20x16xf32, #tpu.memory_space<vmem>>, vector<20x16xf32>
    %cst_159 = arith.constant dense<0.000000e+00> : vector<1x16xf32>
    %416 = tpu.matmul %414, %415, %cst_159 {dimension_numbers = #tpu.dot_dimension_numbers<[1], [0], [0], [1], [0, 0, 1, 1], [], []>} : vector<1x20xf32>, vector<20x16xf32>, vector<1x16xf32> -> vector<1x16xf32>
    %417 = arith.addf %416, %86 : vector<1x16xf32>
    %cst_160 = arith.constant 0.000000e+00 : f32
    %418 = vector.broadcast %cst_160 : f32 to vector<1x16xf32>
    %419 = arith.maximumf %417, %418 : vector<1x16xf32>
    %c0_161 = arith.constant 0 : index
    %c0_162 = arith.constant 0 : index
    %420 = vector.load %arg22[%c0_161, %c0_162] : memref<16x6xf32, #tpu.memory_space<vmem>>, vector<16x6xf32>
    %cst_163 = arith.constant dense<0.000000e+00> : vector<1x6xf32>
    %421 = tpu.matmul %419, %420, %cst_163 {dimension_numbers = #tpu.dot_dimension_numbers<[1], [0], [0], [1], [0, 0, 1, 1], [], []>} : vector<1x16xf32>, vector<16x6xf32>, vector<1x6xf32> -> vector<1x6xf32>
    %c0_164 = arith.constant 0 : index
    %c0_165 = arith.constant 0 : index
    %422 = vector.load %arg23[%c0_164, %c0_165] : memref<1x6xf32, #tpu.memory_space<vmem>>, vector<1x6xf32>
    %423 = arith.addf %421, %422 : vector<1x6xf32>
    %cst_166 = arith.constant dense<0xFF800000> : vector<1xf32>
    %424 = vector.multi_reduction <maximumf>, %423, %cst_166 [1] : vector<1x6xf32> to vector<1xf32>
    %425 = vector.shape_cast %424 : vector<1xf32> to vector<1x1xf32>
    %426 = vector.broadcast %425 : vector<1x1xf32> to vector<1x6xf32>
    %427 = arith.subf %423, %426 : vector<1x6xf32>
    %428 = math.exp %427 : vector<1x6xf32>
    %cst_167 = arith.constant dense<0.000000e+00> : vector<1xf32>
    %429 = vector.multi_reduction <add>, %428, %cst_167 [1] : vector<1x6xf32> to vector<1xf32>
    %430 = vector.shape_cast %429 : vector<1xf32> to vector<1x1xf32>
    %431 = tpu.reciprocal %430 {approx = true} : vector<1x1xf32> -> vector<1x1xf32>
    %432 = vector.broadcast %431 : vector<1x1xf32> to vector<1x6xf32>
    %433 = arith.mulf %428, %432 : vector<1x6xf32>
    %c0_168 = arith.constant 0 : index
    %c0_169 = arith.constant 0 : index
    %434 = vector.load %arg24[%c0_168, %c0_169] : memref<1x6xf32, #tpu.memory_space<vmem>>, vector<1x6xf32>
    tpu.vector_store %arg24[%c0_168, %c0_169], %433 {strides = array<i32>} : memref<1x6xf32, #tpu.memory_space<vmem>>, vector<1x6xf32>,
    return
  }
  func.func @transform_1(%arg0: i32, %arg1: memref<8xi32, #tpu.memory_space<smem>>, %arg2: memref<3xi32, #tpu.memory_space<smem>>) -> (i32, i32) {
    %c0_i32 = arith.constant 0 : i32
    %c0_i32_0 = arith.constant 0 : i32
    %c0_i32_1 = arith.constant 0 : i32
    return %c0_i32, %c0_i32_0 : i32, i32
  }
  func.func @transform_2(%arg0: i32, %arg1: memref<8xi32, #tpu.memory_space<smem>>, %arg2: memref<3xi32, #tpu.memory_space<smem>>) -> (i32, i32) {
    %c0_i32 = arith.constant 0 : i32
    %c0_i32_0 = arith.constant 0 : i32
    %c0_i32_1 = arith.constant 0 : i32
    return %c0_i32, %c0_i32_0 : i32, i32
  }
  func.func @transform_3(%arg0: i32, %arg1: memref<8xi32, #tpu.memory_space<smem>>, %arg2: memref<3xi32, #tpu.memory_space<smem>>) -> (i32, i32) {
    %c0_i32 = arith.constant 0 : i32
    %c0_i32_0 = arith.constant 0 : i32
    %c0_i32_1 = arith.constant 0 : i32
    return %c0_i32, %c0_i32_0 : i32, i32
  }
  func.func @transform_4(%arg0: i32, %arg1: memref<8xi32, #tpu.memory_space<smem>>, %arg2: memref<3xi32, #tpu.memory_space<smem>>) -> (i32, i32) {
    %c0_i32 = arith.constant 0 : i32
    %c0_i32_0 = arith.constant 0 : i32
    %c0_i32_1 = arith.constant 0 : i32
    return %c0_i32, %c0_i32_0 : i32, i32
  }
  func.func @transform_5(%arg0: i32, %arg1: memref<8xi32, #tpu.memory_space<smem>>, %arg2: memref<3xi32, #tpu.memory_space<smem>>) -> (i32, i32) {
    %c0_i32 = arith.constant 0 : i32
    %c0_i32_0 = arith.constant 0 : i32
    %c0_i32_1 = arith.constant 0 : i32
    return %c0_i32, %c0_i32_0 : i32, i32
  }
  func.func @transform_6(%arg0: i32, %arg1: memref<8xi32, #tpu.memory_space<smem>>, %arg2: memref<3xi32, #tpu.memory_space<smem>>) -> (i32, i32) {
    %c0_i32 = arith.constant 0 : i32
    %c0_i32_0 = arith.constant 0 : i32
    %c0_i32_1 = arith.constant 0 : i32
    return %c0_i32, %c0_i32_0 : i32, i32
  }
  func.func @transform_7(%arg0: i32, %arg1: memref<8xi32, #tpu.memory_space<smem>>, %arg2: memref<3xi32, #tpu.memory_space<smem>>) -> (i32, i32) {
    %c0_i32 = arith.constant 0 : i32
    %c0_i32_0 = arith.constant 0 : i32
    %c0_i32_1 = arith.constant 0 : i32
    return %c0_i32, %c0_i32_0 : i32, i32
  }
  func.func @transform_8(%arg0: i32, %arg1: memref<8xi32, #tpu.memory_space<smem>>, %arg2: memref<3xi32, #tpu.memory_space<smem>>) -> (i32, i32) {
    %c0_i32 = arith.constant 0 : i32
    %c0_i32_0 = arith.constant 0 : i32
    %c0_i32_1 = arith.constant 0 : i32
    return %c0_i32, %c0_i32_0 : i32, i32
  }
  func.func @transform_9(%arg0: i32, %arg1: memref<8xi32, #tpu.memory_space<smem>>, %arg2: memref<3xi32, #tpu.memory_space<smem>>) -> (i32, i32) {
    %c0_i32 = arith.constant 0 : i32
    %c0_i32_0 = arith.constant 0 : i32
    %c0_i32_1 = arith.constant 0 : i32
    return %c0_i32, %c0_i32_0 : i32, i32
  }
  func.func @transform_10(%arg0: i32, %arg1: memref<8xi32, #tpu.memory_space<smem>>, %arg2: memref<3xi32, #tpu.memory_space<smem>>) -> (i32, i32) {
    %c0_i32 = arith.constant 0 : i32
    %c0_i32_0 = arith.constant 0 : i32
    %c0_i32_1 = arith.constant 0 : i32
    return %c0_i32, %c0_i32_0 : i32, i32
  }
  func.func @transform_11(%arg0: i32, %arg1: memref<8xi32, #tpu.memory_space<smem>>, %arg2: memref<3xi32, #tpu.memory_space<smem>>) -> (i32, i32) {
    %c0_i32 = arith.constant 0 : i32
    %c0_i32_0 = arith.constant 0 : i32
    %c0_i32_1 = arith.constant 0 : i32
    return %c0_i32, %c0_i32_0 : i32, i32
  }
  func.func @transform_12(%arg0: i32, %arg1: memref<8xi32, #tpu.memory_space<smem>>, %arg2: memref<3xi32, #tpu.memory_space<smem>>) -> (i32, i32) {
    %c0_i32 = arith.constant 0 : i32
    %c0_i32_0 = arith.constant 0 : i32
    %c0_i32_1 = arith.constant 0 : i32
    return %c0_i32, %c0_i32_0 : i32, i32
  }
  func.func @transform_13(%arg0: i32, %arg1: memref<8xi32, #tpu.memory_space<smem>>, %arg2: memref<3xi32, #tpu.memory_space<smem>>) -> (i32, i32) {
    %c0_i32 = arith.constant 0 : i32
    %c0_i32_0 = arith.constant 0 : i32
    %c0_i32_1 = arith.constant 0 : i32
    return %c0_i32, %c0_i32_0 : i32, i32
  }
  func.func @transform_14(%arg0: i32, %arg1: memref<8xi32, #tpu.memory_space<smem>>, %arg2: memref<3xi32, #tpu.memory_space<smem>>) -> (i32, i32) {
    %c0_i32 = arith.constant 0 : i32
    %c0_i32_0 = arith.constant 0 : i32
    %c0_i32_1 = arith.constant 0 : i32
    return %c0_i32, %c0_i32_0 : i32, i32
  }
  func.func @transform_15(%arg0: i32, %arg1: memref<8xi32, #tpu.memory_space<smem>>, %arg2: memref<3xi32, #tpu.memory_space<smem>>) -> (i32, i32) {
    %c0_i32 = arith.constant 0 : i32
    %c0_i32_0 = arith.constant 0 : i32
    %c0_i32_1 = arith.constant 0 : i32
    return %c0_i32, %c0_i32_0 : i32, i32
  }
  func.func @transform_16(%arg0: i32, %arg1: memref<8xi32, #tpu.memory_space<smem>>, %arg2: memref<3xi32, #tpu.memory_space<smem>>) -> (i32, i32) {
    %c0_i32 = arith.constant 0 : i32
    %c0_i32_0 = arith.constant 0 : i32
    %c0_i32_1 = arith.constant 0 : i32
    return %c0_i32, %c0_i32_0 : i32, i32
  }
  func.func @transform_17(%arg0: i32, %arg1: memref<8xi32, #tpu.memory_space<smem>>, %arg2: memref<3xi32, #tpu.memory_space<smem>>) -> (i32, i32) {
    %c0_i32 = arith.constant 0 : i32
    %c0_i32_0 = arith.constant 0 : i32
    %c0_i32_1 = arith.constant 0 : i32
    return %c0_i32, %c0_i32_0 : i32, i32
  }
  func.func @transform_18(%arg0: i32, %arg1: memref<8xi32, #tpu.memory_space<smem>>, %arg2: memref<3xi32, #tpu.memory_space<smem>>) -> (i32, i32) {
    %c0_i32 = arith.constant 0 : i32
    %c0_i32_0 = arith.constant 0 : i32
    %c0_i32_1 = arith.constant 0 : i32
    return %c0_i32, %c0_i32_0 : i32, i32
  }
  func.func @transform_19(%arg0: i32, %arg1: memref<8xi32, #tpu.memory_space<smem>>, %arg2: memref<3xi32, #tpu.memory_space<smem>>) -> (i32, i32) {
    %c0_i32 = arith.constant 0 : i32
    %c0_i32_0 = arith.constant 0 : i32
    %c0_i32_1 = arith.constant 0 : i32
    return %c0_i32, %c0_i32_0 : i32, i32
  }
  func.func @transform_20(%arg0: i32, %arg1: memref<8xi32, #tpu.memory_space<smem>>, %arg2: memref<3xi32, #tpu.memory_space<smem>>) -> (i32, i32) {
    %c0_i32 = arith.constant 0 : i32
    %c0_i32_0 = arith.constant 0 : i32
    %c0_i32_1 = arith.constant 0 : i32
    return %c0_i32, %c0_i32_0 : i32, i32
  }
  func.func @transform_21(%arg0: i32, %arg1: memref<8xi32, #tpu.memory_space<smem>>, %arg2: memref<3xi32, #tpu.memory_space<smem>>) -> (i32, i32) {
    %c0_i32 = arith.constant 0 : i32
    %c0_i32_0 = arith.constant 0 : i32
    %c0_i32_1 = arith.constant 0 : i32
    return %c0_i32, %c0_i32_0 : i32, i32
  }
}

</mosaic_0001>

<llo_original>
// kernel: tpu_custom_call.1
$region0: #{tpu_custom_call.1}
  #allocation0 [shape = 'u32[]', space=smem, size = 0x4, offset = 0x4, fixed_abs, tag = 'smem constant byte address 0x4 - core index']
  #allocation1 [shape = 'u32[144,128]{1,0:T(1,128)}', space=vmem, size = 0x12000, scoped, tag = 'internal scratch']
  #allocation2 [shape = 'f32[8,50]{1,0:T(8,128)}', space=vmem, size = 0x1000, scoped, tag = 'scratch operand']
  #allocation3 [shape = 's32[8]{0}', space=sflag, size = 0x20, scoped, tag = 'scratch operand']
  #allocation4 [shape = 's32[1]{0}', space=sflag, size = 0x4, scoped, tag = 'scoped memory for tpu_custom_call.1']
  #allocation5 [shape = 'u8[512]{0}', space=smem, size = 0x200, scoped, tag = 'prefetched SMEM operand 0']
  #allocation6 [shape = 'u8[512]{0}', space=smem, size = 0x200, scoped, tag = 'prefetched SMEM operand 1']
  #allocation28 [shape = 's32[]', space=sflag, size = 0x4, offset = 0, fixed_abs, tag = 'sflag constant byte address 0x0 - dummy sync flag']
  #allocation29 [shape = 's32[]', space=sflag, size = 0x4, offset = 0, fixed_abs, tag = 'sflag constant byte address 0x0 - dummy sync flag']
  #allocation30 [shape = 's32[]', space=sflag, size = 0x4, offset = 0, fixed_abs, tag = 'sflag constant byte address 0x0 - dummy sync flag']
  #allocation31 [shape = 's32[]', space=sflag, size = 0x4, offset = 0, fixed_abs, tag = 'sflag constant byte address 0x0 - dummy sync flag']
  #allocation32 [shape = 's32[]', space=sflag, size = 0x4, offset = 0, fixed_abs, tag = 'sflag constant byte address 0x0 - dummy sync flag']
  #allocation33 [shape = 's32[]', space=sflag, size = 0x4, offset = 0, fixed_abs, tag = 'sflag constant byte address 0x0 - dummy sync flag']
  #allocation34 [shape = 's32[]', space=sflag, size = 0x4, offset = 0, fixed_abs, tag = 'sflag constant byte address 0x0 - dummy sync flag']
  #allocation35 [shape = 's32[]', space=sflag, size = 0x4, offset = 0, fixed_abs, tag = 'sflag constant byte address 0x0 - dummy sync flag']
  %s0 = inlined_call_operand.hbm [shape: s32[8], index: 0, kind: input, shape index: {}]
  %s1 = inlined_call_operand.hbm [shape: s32[3], index: 1, kind: input, shape index: {}]
  %s2 = inlined_call_operand.vmem [shape: f32[30,50], index: 2, kind: input, shape index: {}]
  %s3 = inlined_call_operand.vmem [shape: f32[50,80], index: 3, kind: input, shape index: {}]
  %s4 = inlined_call_operand.hbm [shape: f32[1,80], index: 4, kind: input, shape index: {}]
  %s5 = inlined_call_operand.vmem [shape: f32[20,20], index: 5, kind: input, shape index: {}]
  %s6 = inlined_call_operand.hbm [shape: f32[20,20], index: 6, kind: input, shape index: {}]
  %s7 = inlined_call_operand.hbm [shape: f32[20,20], index: 7, kind: input, shape index: {}]
  %s8 = inlined_call_operand.hbm [shape: f32[20,20], index: 8, kind: input, shape index: {}]
  %s9 = inlined_call_operand.hbm [shape: f32[11,20], index: 9, kind: input, shape index: {}]
  %s10 = inlined_call_operand.hbm [shape: f32[6,8], index: 10, kind: input, shape index: {}]
  %s11 = inlined_call_operand.hbm [shape: f32[4,4], index: 11, kind: input, shape index: {}]
  %s12 = inlined_call_operand.vmem [shape: f32[20,16], index: 12, kind: input, shape index: {}]
  %s13 = inlined_call_operand.hbm [shape: f32[8,16], index: 13, kind: input, shape index: {}]
  %s14 = inlined_call_operand.hbm [shape: f32[4,16], index: 14, kind: input, shape index: {}]
  %s15 = inlined_call_operand.hbm [shape: f32[1,16], index: 15, kind: input, shape index: {}]
  %s16 = inlined_call_operand.vmem [shape: f32[16,16], index: 16, kind: input, shape index: {}]
  %s17 = inlined_call_operand.hbm [shape: f32[1,16], index: 17, kind: input, shape index: {}]
  %s18 = inlined_call_operand.vmem [shape: f32[20,16], index: 18, kind: input, shape index: {}]
  %s19 = inlined_call_operand.hbm [shape: f32[16,16], index: 19, kind: input, shape index: {}]
  %s20 = inlined_call_operand.vmem [shape: f32[1,16], index: 20, kind: input, shape index: {}]
  %s21 = inlined_call_operand.vmem [shape: f32[16,6], index: 21, kind: input, shape index: {}]
  %s22 = inlined_call_operand.vmem [shape: f32[1,6], index: 22, kind: input, shape index: {}]
  %s23 = inlined_call_operand.hbm [shape: f32[1,6], index: 23, kind: output, shape index: {}]
  %s24 = sld [smem:[#allocation0]]
  $region378: #{tpu_custom_call.1} parent=0
    _
  %s26 = ssub.s32 1, %s24
  %s27 = scalar_select 0, %s26, %s24
  %29 = dma.hbm_to_smem %s0, 16, [#allocation5], [#allocation4]
  %31 = dma.hbm_to_smem %s1, 16, [#allocation6], [#allocation4]
  %32 = dma.done [#allocation4], 32
  %33 = sfence
  $region1: #{tpu_custom_call.1} parent=0
    #allocation7 [shape = 'u8[512]{0}', space=vmem, size = 0x400, scoped, tag = 'input window, operand 4, single buffered']
    #allocation8 [shape = 's32[1]{0}', space=sflag, size = 0x4, scoped, tag = 'scoped memory for tpu_custom_call.1']
    #allocation9 [shape = 's32[1]{0}', space=sflag, size = 0x4, scoped, tag = 'scoped memory for tpu_custom_call.1']
    #allocation10 [shape = 'u8[12288]{0}', space=vmem, size = 0x3000, scoped, tag = 'input window, operand 6, single buffered']
    #allocation11 [shape = 's32[1]{0}', space=sflag, size = 0x4, scoped, tag = 'scoped memory for tpu_custom_call.1']
    #allocation12 [shape = 'u8[12288]{0}', space=vmem, size = 0x3000, scoped, tag = 'input window, operand 7, single buffered']
    #allocation13 [shape = 'u8[12288]{0}', space=vmem, size = 0x3000, scoped, tag = 'input window, operand 8, single buffered']
    #allocation14 [shape = 's32[1]{0}', space=sflag, size = 0x4, scoped, tag = 'scoped memory for tpu_custom_call.1']
    #allocation15 [shape = 'u8[8192]{0}', space=vmem, size = 0x2000, scoped, tag = 'input window, operand 9, single buffered']
    #allocation16 [shape = 'u8[4096]{0}', space=vmem, size = 0x1000, scoped, tag = 'input window, operand 10, single buffered']
    #allocation17 [shape = 's32[1]{0}', space=sflag, size = 0x4, scoped, tag = 'scoped memory for tpu_custom_call.1']
    #allocation18 [shape = 'u8[2048]{0}', space=vmem, size = 0x800, scoped, tag = 'input window, operand 11, single buffered']
    #allocation19 [shape = 'u8[4096]{0}', space=vmem, size = 0x1000, scoped, tag = 'input window, operand 13, single buffered']
    #allocation20 [shape = 's32[1]{0}', space=sflag, size = 0x4, scoped, tag = 'scoped memory for tpu_custom_call.1']
    #allocation21 [shape = 'u8[2048]{0}', space=vmem, size = 0x800, scoped, tag = 'input window, operand 14, single buffered']
    #allocation22 [shape = 'u8[512]{0}', space=vmem, size = 0x400, scoped, tag = 'input window, operand 15, single buffered']
    #allocation23 [shape = 's32[1]{0}', space=sflag, size = 0x4, scoped, tag = 'scoped memory for tpu_custom_call.1']
    #allocation24 [shape = 'u8[512]{0}', space=vmem, size = 0x400, scoped, tag = 'input window, operand 17, single buffered']
    #allocation25 [shape = 'u8[8192]{0}', space=vmem, size = 0x2000, scoped, tag = 'input window, operand 19, single buffered']
    #allocation26 [shape = 's32[1]{0}', space=sflag, size = 0x4, scoped, tag = 'scoped memory for tpu_custom_call.1']
    #allocation27 [shape = 'u8[512]{0}', space=vmem, size = 0x400, scoped, tag = 'output window, operand 0, single buffered']
    %34 = vsyncpa [#allocation8], 0
    %35 = vsyncpa [#allocation11], 0
    %36 = vsyncpa [#allocation14], 0
    %37 = vsyncpa [#allocation17], 0
    %38 = vsyncpa [#allocation20], 0
    %39 = vsyncpa [#allocation23], 0
    %40 = vsyncpa [#allocation26], 0
    %41 = vsyncpa [#allocation9], 0
    // Predicated region
    $region2: #{tpu_custom_call.1} parent=1 // pred_check
      _
    $region3: #{tpu_custom_call.1} parent=1 // pred_check_branch
      %43 = sbr.rel (0) target = $region5
    $region4: #{tpu_custom_call.1} parent=1 // pred_region
      _
    $region5: #{tpu_custom_call.1} parent=1 // pred_fallthru
      _
    // Predicated region
    $region6: #{tpu_custom_call.1} parent=1 // pred_check
      _
    $region7: #{tpu_custom_call.1} parent=1 // pred_check_branch
      %45 = sbr.rel (0) target = $region9
    $region8: #{tpu_custom_call.1} parent=1 // pred_region
      %s47 = ssub.s32 16, 16
      %48 = vsyncadd [#allocation8], %s47
      %s50 = sshll.u32 [#allocation7], 4
      %s51 = int_to_ptr.vmem [resolvable:$true] %s50
      %53 = dma.hbm_to_vmem [thread:$0]  %s4, 16, %s51, [#allocation8]
    $region9: #{tpu_custom_call.1} parent=1 // pred_fallthru
      _
    // Predicated region
    $region10: #{tpu_custom_call.1} parent=1 // pred_check
      _
    $region11: #{tpu_custom_call.1} parent=1 // pred_check_branch
      %55 = sbr.rel (0) target = $region13
    $region12: #{tpu_custom_call.1} parent=1 // pred_region
      _
    $region13: #{tpu_custom_call.1} parent=1 // pred_fallthru
      _
    // Predicated region
    $region14: #{tpu_custom_call.1} parent=1 // pred_check
      _
    $region15: #{tpu_custom_call.1} parent=1 // pred_check_branch
      %57 = sbr.rel (0) target = $region17
    $region16: #{tpu_custom_call.1} parent=1 // pred_region
      %s59 = ssub.s32 384, 384
      %60 = vsyncadd [#allocation11], %s59
      %s61 = sshll.u32 [#allocation10], 4
      %s62 = int_to_ptr.vmem [resolvable:$true] %s61
      %67 = dma.hbm_to_vmem [thread:$0]  %s6, 384, %s62, [#allocation11], 128, 128, 8
    $region17: #{tpu_custom_call.1} parent=1 // pred_fallthru
      _
    // Predicated region
    $region18: #{tpu_custom_call.1} parent=1 // pred_check
      _
    $region19: #{tpu_custom_call.1} parent=1 // pred_check_branch
      %69 = sbr.rel (0) target = $region21
    $region20: #{tpu_custom_call.1} parent=1 // pred_region
      %s71 = ssub.s32 384, 384
      %72 = vsyncadd [#allocation11], %s71
      %s73 = sshll.u32 [#allocation12], 4
      %s74 = int_to_ptr.vmem [resolvable:$true] %s73
      %79 = dma.hbm_to_vmem [thread:$0]  %s7, 384, %s74, [#allocation11], 128, 128, 8
    $region21: #{tpu_custom_call.1} parent=1 // pred_fallthru
      _
    // Predicated region
    $region22: #{tpu_custom_call.1} parent=1 // pred_check
      _
    $region23: #{tpu_custom_call.1} parent=1 // pred_check_branch
      %81 = sbr.rel (0) target = $region25
    $region24: #{tpu_custom_call.1} parent=1 // pred_region
      %s83 = ssub.s32 384, 384
      %84 = vsyncadd [#allocation14], %s83
      %s85 = sshll.u32 [#allocation13], 4
      %s86 = int_to_ptr.vmem [resolvable:$true] %s85
      %91 = dma.hbm_to_vmem [thread:$0]  %s8, 384, %s86, [#allocation14], 128, 128, 8
    $region25: #{tpu_custom_call.1} parent=1 // pred_fallthru
      _
    // Predicated region
    $region26: #{tpu_custom_call.1} parent=1 // pred_check
      _
    $region27: #{tpu_custom_call.1} parent=1 // pred_check_branch
      %93 = sbr.rel (0) target = $region29
    $region28: #{tpu_custom_call.1} parent=1 // pred_region
      %s95 = ssub.s32 256, 256
      %96 = vsyncadd [#allocation14], %s95
      %s97 = sshll.u32 [#allocation15], 4
      %s98 = int_to_ptr.vmem [resolvable:$true] %s97
      %103 = dma.hbm_to_vmem [thread:$0]  %s9, 256, %s98, [#allocation14], 128, 128, 8
    $region29: #{tpu_custom_call.1} parent=1 // pred_fallthru
      _
    // Predicated region
    $region30: #{tpu_custom_call.1} parent=1 // pred_check
      _
    $region31: #{tpu_custom_call.1} parent=1 // pred_check_branch
      %105 = sbr.rel (0) target = $region33
    $region32: #{tpu_custom_call.1} parent=1 // pred_region
      %s107 = ssub.s32 128, 128
      %108 = vsyncadd [#allocation17], %s107
      %s110 = sshll.u32 [#allocation16], 4
      %s111 = int_to_ptr.vmem [resolvable:$true] %s110
      %113 = dma.hbm_to_vmem [thread:$0]  %s10, 128, %s111, [#allocation17]
    $region33: #{tpu_custom_call.1} parent=1 // pred_fallthru
      _
    // Predicated region
    $region34: #{tpu_custom_call.1} parent=1 // pred_check
      _
    $region35: #{tpu_custom_call.1} parent=1 // pred_check_branch
      %115 = sbr.rel (0) target = $region37
    $region36: #{tpu_custom_call.1} parent=1 // pred_region
      %s117 = ssub.s32 64, 64
      %118 = vsyncadd [#allocation17], %s117
      %s120 = sshll.u32 [#allocation18], 4
      %s121 = int_to_ptr.vmem [resolvable:$true] %s120
      %123 = dma.hbm_to_vmem [thread:$0]  %s11, 64, %s121, [#allocation17]
    $region37: #{tpu_custom_call.1} parent=1 // pred_fallthru
      _
    // Predicated region
    $region38: #{tpu_custom_call.1} parent=1 // pred_check
      _
    $region39: #{tpu_custom_call.1} parent=1 // pred_check_branch
      %125 = sbr.rel (0) target = $region41
    $region40: #{tpu_custom_call.1} parent=1 // pred_region
      _
    $region41: #{tpu_custom_call.1} parent=1 // pred_fallthru
      _
    // Predicated region
    $region42: #{tpu_custom_call.1} parent=1 // pred_check
      _
    $region43: #{tpu_custom_call.1} parent=1 // pred_check_branch
      %127 = sbr.rel (0) target = $region45
    $region44: #{tpu_custom_call.1} parent=1 // pred_region
      %s129 = ssub.s32 128, 128
      %130 = vsyncadd [#allocation20], %s129
      %s132 = sshll.u32 [#allocation19], 4
      %s133 = int_to_ptr.vmem [resolvable:$true] %s132
      %135 = dma.hbm_to_vmem [thread:$0]  %s13, 128, %s133, [#allocation20]
    $region45: #{tpu_custom_call.1} parent=1 // pred_fallthru
      _
    // Predicated region
    $region46: #{tpu_custom_call.1} parent=1 // pred_check
      _
    $region47: #{tpu_custom_call.1} parent=1 // pred_check_branch
      %137 = sbr.rel (0) target = $region49
    $region48: #{tpu_custom_call.1} parent=1 // pred_region
      %s139 = ssub.s32 64, 64
      %140 = vsyncadd [#allocation20], %s139
      %s142 = sshll.u32 [#allocation21], 4
      %s143 = int_to_ptr.vmem [resolvable:$true] %s142
      %145 = dma.hbm_to_vmem [thread:$0]  %s14, 64, %s143, [#allocation20]
    $region49: #{tpu_custom_call.1} parent=1 // pred_fallthru
      _
    // Predicated region
    $region50: #{tpu_custom_call.1} parent=1 // pred_check
      _
    $region51: #{tpu_custom_call.1} parent=1 // pred_check_branch
      %147 = sbr.rel (0) target = $region53
    $region52: #{tpu_custom_call.1} parent=1 // pred_region
      %s149 = ssub.s32 16, 16
      %150 = vsyncadd [#allocation23], %s149
      %s152 = sshll.u32 [#allocation22], 4
      %s153 = int_to_ptr.vmem [resolvable:$true] %s152
      %155 = dma.hbm_to_vmem [thread:$0]  %s15, 16, %s153, [#allocation23]
    $region53: #{tpu_custom_call.1} parent=1 // pred_fallthru
      _
    // Predicated region
    $region54: #{tpu_custom_call.1} parent=1 // pred_check
      _
    $region55: #{tpu_custom_call.1} parent=1 // pred_check_branch
      %157 = sbr.rel (0) target = $region57
    $region56: #{tpu_custom_call.1} parent=1 // pred_region
      _
    $region57: #{tpu_custom_call.1} parent=1 // pred_fallthru
      _
    // Predicated region
    $region58: #{tpu_custom_call.1} parent=1 // pred_check
      _
    $region59: #{tpu_custom_call.1} parent=1 // pred_check_branch
      %159 = sbr.rel (0) target = $region61
    $region60: #{tpu_custom_call.1} parent=1 // pred_region
      %s161 = ssub.s32 16, 16
      %162 = vsyncadd [#allocation23], %s161
      %s164 = sshll.u32 [#allocation24], 4
      %s165 = int_to_ptr.vmem [resolvable:$true] %s164
      %167 = dma.hbm_to_vmem [thread:$0]  %s17, 16, %s165, [#allocation23]
    $region61: #{tpu_custom_call.1} parent=1 // pred_fallthru
      _
    // Predicated region
    $region62: #{tpu_custom_call.1} parent=1 // pred_check
      _
    $region63: #{tpu_custom_call.1} parent=1 // pred_check_branch
      %169 = sbr.rel (0) target = $region65
    $region64: #{tpu_custom_call.1} parent=1 // pred_region
      _
    $region65: #{tpu_custom_call.1} parent=1 // pred_fallthru
      _
    // Predicated region
    $region66: #{tpu_custom_call.1} parent=1 // pred_check
      _
    $region67: #{tpu_custom_call.1} parent=1 // pred_check_branch
      %171 = sbr.rel (0) target = $region69
    $region68: #{tpu_custom_call.1} parent=1 // pred_region
      %s173 = ssub.s32 256, 256
      %174 = vsyncadd [#allocation26], %s173
      %s175 = sshll.u32 [#allocation25], 4
      %s176 = int_to_ptr.vmem [resolvable:$true] %s175
      %181 = dma.hbm_to_vmem [thread:$0]  %s19, 256, %s176, [#allocation26], 128, 128, 8
    $region69: #{tpu_custom_call.1} parent=1 // pred_fallthru
      _
    // Predicated region
    $region70: #{tpu_custom_call.1} parent=1 // pred_check
      _
    $region71: #{tpu_custom_call.1} parent=1 // pred_check_branch
      %183 = sbr.rel (0) target = $region73
    $region72: #{tpu_custom_call.1} parent=1 // pred_region
      _
    $region73: #{tpu_custom_call.1} parent=1 // pred_fallthru
      _
    // Predicated region
    $region74: #{tpu_custom_call.1} parent=1 // pred_check
      _
    $region75: #{tpu_custom_call.1} parent=1 // pred_check_branch
      %185 = sbr.rel (0) target = $region77
    $region76: #{tpu_custom_call.1} parent=1 // pred_region
      _
    $region77: #{tpu_custom_call.1} parent=1 // pred_fallthru
      _
    // Predicated region
    $region78: #{tpu_custom_call.1} parent=1 // pred_check
      _
    $region79: #{tpu_custom_call.1} parent=1 // pred_check_branch
      %187 = sbr.rel (0) target = $region81
    $region80: #{tpu_custom_call.1} parent=1 // pred_region
      _
    $region81: #{tpu_custom_call.1} parent=1 // pred_fallthru
      _
    // Predicated region
    $region82: #{tpu_custom_call.1} parent=1 // pred_check
      _
    $region83: #{tpu_custom_call.1} parent=1 // pred_check_branch
      %189 = sbr.rel (0) target = $region85
    $region84: #{tpu_custom_call.1} parent=1 // pred_region
      %190 = dma.done [#allocation8], 16
    $region85: #{tpu_custom_call.1} parent=1 // pred_fallthru
      _
    // Predicated region
    $region86: #{tpu_custom_call.1} parent=1 // pred_check
      _
    $region87: #{tpu_custom_call.1} parent=1 // pred_check_branch
      %192 = sbr.rel (0) target = $region89
    $region88: #{tpu_custom_call.1} parent=1 // pred_region
      %193 = dma.done [#allocation11], 384
    $region89: #{tpu_custom_call.1} parent=1 // pred_fallthru
      _
    // Predicated region
    $region90: #{tpu_custom_call.1} parent=1 // pred_check
      _
    $region91: #{tpu_custom_call.1} parent=1 // pred_check_branch
      %195 = sbr.rel (0) target = $region93
    $region92: #{tpu_custom_call.1} parent=1 // pred_region
      %196 = dma.done [#allocation11], 384
    $region93: #{tpu_custom_call.1} parent=1 // pred_fallthru
      _
    // Predicated region
    $region94: #{tpu_custom_call.1} parent=1 // pred_check
      _
    $region95: #{tpu_custom_call.1} parent=1 // pred_check_branch
      %198 = sbr.rel (0) target = $region97
    $region96: #{tpu_custom_call.1} parent=1 // pred_region
      %199 = dma.done [#allocation14], 384
    $region97: #{tpu_custom_call.1} parent=1 // pred_fallthru
      _
    // Predicated region
    $region98: #{tpu_custom_call.1} parent=1 // pred_check
      _
    $region99: #{tpu_custom_call.1} parent=1 // pred_check_branch
      %201 = sbr.rel (0) target = $region101
    $region100: #{tpu_custom_call.1} parent=1 // pred_region
      %202 = dma.done [#allocation14], 256
    $region101: #{tpu_custom_call.1} parent=1 // pred_fallthru
      _
    // Predicated region
    $region102: #{tpu_custom_call.1} parent=1 // pred_check
      _
    $region103: #{tpu_custom_call.1} parent=1 // pred_check_branch
      %204 = sbr.rel (0) target = $region105
    $region104: #{tpu_custom_call.1} parent=1 // pred_region
      %205 = dma.done [#allocation17], 128
    $region105: #{tpu_custom_call.1} parent=1 // pred_fallthru
      _
    // Predicated region
    $region106: #{tpu_custom_call.1} parent=1 // pred_check
      _
    $region107: #{tpu_custom_call.1} parent=1 // pred_check_branch
      %207 = sbr.rel (0) target = $region109
    $region108: #{tpu_custom_call.1} parent=1 // pred_region
      %208 = dma.done [#allocation17], 64
    $region109: #{tpu_custom_call.1} parent=1 // pred_fallthru
      _
    // Predicated region
    $region110: #{tpu_custom_call.1} parent=1 // pred_check
      _
    $region111: #{tpu_custom_call.1} parent=1 // pred_check_branch
      %210 = sbr.rel (0) target = $region113
    $region112: #{tpu_custom_call.1} parent=1 // pred_region
      %211 = dma.done [#allocation20], 128
    $region113: #{tpu_custom_call.1} parent=1 // pred_fallthru
      _
    // Predicated region
    $region114: #{tpu_custom_call.1} parent=1 // pred_check
      _
    $region115: #{tpu_custom_call.1} parent=1 // pred_check_branch
      %213 = sbr.rel (0) target = $region117
    $region116: #{tpu_custom_call.1} parent=1 // pred_region
      %214 = dma.done [#allocation20], 64
    $region117: #{tpu_custom_call.1} parent=1 // pred_fallthru
      _
    // Predicated region
    $region118: #{tpu_custom_call.1} parent=1 // pred_check
      _
    $region119: #{tpu_custom_call.1} parent=1 // pred_check_branch
      %216 = sbr.rel (0) target = $region121
    $region120: #{tpu_custom_call.1} parent=1 // pred_region
      %217 = dma.done [#allocation23], 16
    $region121: #{tpu_custom_call.1} parent=1 // pred_fallthru
      _
    // Predicated region
    $region122: #{tpu_custom_call.1} parent=1 // pred_check
      _
    $region123: #{tpu_custom_call.1} parent=1 // pred_check_branch
      %219 = sbr.rel (0) target = $region125
    $region124: #{tpu_custom_call.1} parent=1 // pred_region
      %220 = dma.done [#allocation23], 16
    $region125: #{tpu_custom_call.1} parent=1 // pred_fallthru
      _
    // Predicated region
    $region126: #{tpu_custom_call.1} parent=1 // pred_check
      _
    $region127: #{tpu_custom_call.1} parent=1 // pred_check_branch
      %222 = sbr.rel (0) target = $region129
    $region128: #{tpu_custom_call.1} parent=1 // pred_region
      %223 = dma.done [#allocation26], 256
    $region129: #{tpu_custom_call.1} parent=1 // pred_fallthru
      _
    %s224 = sld [smem:[#allocation5]]
    %s225 = scalar_lea.vmem %s2, %s224
    %p227 = scmp.lt.u32.totalorder 1, 8
    %p228 = pneg %p227
    // Predicated region
    $region130: #{tpu_custom_call.1} parent=1 // pred_check
      _
    $region131: #{tpu_custom_call.1} parent=1 // pred_check_branch
      %230 = sbr.rel (%p227) target = $region133
    $region132: #{tpu_custom_call.1} parent=1 // pred_region
      %s245 = sand.u32 1, 7
      %p246 = scmp.eq.s32.totalorder %s245, 0
      %p247 = pneg %p246
      // Predicated region
      $region145: #{tpu_custom_call.1} parent=132 // pred_check
        _
      $region146: #{tpu_custom_call.1} parent=132 // pred_check_branch
        %249 = sbr.rel (%p246) target = $region148
      $region147: #{tpu_custom_call.1} parent=132 // pred_region
        %s250 = sand.u32 1, 7
        %s251 = ssub.s32 1, %s250
        %s252 = scalar_lea.vmem %s225, %s251
        %s253 = ssub.s32 1, %s250
        %s254 = scalar_lea.vmem [#allocation2], %s253
        %s255 = sshllo.u32 0, %s250
        loop: start=0, step=1, limit=1
        $region149: #{tpu_custom_call.1} parent=147 // loop_pre_header
          _
        $region150: #{tpu_custom_call.1} parent=147 // loop_header
          %s257 = sphi 0, %s261
          %p258 = scmp.ge.s32.totalorder %s257, 1
          %s262 = sphi %s252, %s252
          %s263 = sphi %s254, %s254
        $region151: #{tpu_custom_call.1} parent=147 // loop_header_branch
          %260 = sbr.rel (%p258) target = $region155
        $region152: #{tpu_custom_call.1} parent=147 // loop_body
          %v264 = vld [vmem:[%s262] sm:%s255]
          %265 = vst [vmem:[%s263] sm:%s255] %v264
        $region153: #{tpu_custom_call.1} parent=147 // loop_footer
          %s261 = sadd.s32 1, %s257
        $region154: #{tpu_custom_call.1} parent=147 // loop_footer_branch
          %256 = sbr.rel target = $region150
        $region155: #{tpu_custom_call.1} parent=147 // loop_exit
          _
      $region148: #{tpu_custom_call.1} parent=132 // pred_fallthru
        _
    $region133: #{tpu_custom_call.1} parent=1 // pred_fallthru
      _
    // Predicated region
    $region134: #{tpu_custom_call.1} parent=1 // pred_check
      %p231 = pneg %p227
    $region135: #{tpu_custom_call.1} parent=1 // pred_check_branch
      %233 = sbr.rel (%p231) target = $region137
    $region136: #{tpu_custom_call.1} parent=1 // pred_region
      %s234 = sshllo.u32 0, 1
      loop: start=0, step=1, limit=1
      $region138: #{tpu_custom_call.1} parent=136 // loop_pre_header
        _
      $region139: #{tpu_custom_call.1} parent=136 // loop_header
        %s236 = sphi 0, %s240
        %p237 = scmp.ge.s32.totalorder %s236, 1
        %s241 = sphi %s225, %s225
        %s242 = sphi [#allocation2], [#allocation2]
      $region140: #{tpu_custom_call.1} parent=136 // loop_header_branch
        %239 = sbr.rel (%p237) target = $region144
      $region141: #{tpu_custom_call.1} parent=136 // loop_body
        %v243 = vld [vmem:[%s241] sm:%s234]
        %244 = vst [vmem:[%s242] sm:%s234] %v243
      $region142: #{tpu_custom_call.1} parent=136 // loop_footer
        %s240 = sadd.s32 1, %s236
      $region143: #{tpu_custom_call.1} parent=136 // loop_footer_branch
        %235 = sbr.rel target = $region139
      $region144: #{tpu_custom_call.1} parent=136 // loop_exit
        _
    $region137: #{tpu_custom_call.1} parent=1 // pred_fallthru
      _
    // Predicated region
    $region156: #{tpu_custom_call.1} parent=1 // pred_check
      _
    $region157: #{tpu_custom_call.1} parent=1 // pred_check_branch
      %268 = sbr.rel (0) target = $region159
    $region158: #{tpu_custom_call.1} parent=1 // pred_region
      %269 = vsyncadd [#allocation3], 16
    $region159: #{tpu_custom_call.1} parent=1 // pred_fallthru
      _
    %s270 = sld [smem:[#allocation5 + $0x1]]
    %s271 = scalar_lea.vmem %s2, %s270
    %s272 = scalar_lea.vmem [#allocation2], 1
    %s273 = scalar_lea.sflag [#allocation3], 1
    %p275 = scmp.lt.u32.totalorder 1, 8
    %p276 = pneg %p275
    // Predicated region
    $region160: #{tpu_custom_call.1} parent=1 // pred_check
      _
    $region161: #{tpu_custom_call.1} parent=1 // pred_check_branch
      %278 = sbr.rel (%p275) target = $region163
    $region162: #{tpu_custom_call.1} parent=1 // pred_region
      %s293 = sand.u32 1, 7
      %p294 = scmp.eq.s32.totalorder %s293, 0
      %p295 = pneg %p294
      // Predicated region
      $region175: #{tpu_custom_call.1} parent=162 // pred_check
        _
      $region176: #{tpu_custom_call.1} parent=162 // pred_check_branch
        %297 = sbr.rel (%p294) target = $region178
      $region177: #{tpu_custom_call.1} parent=162 // pred_region
        %s298 = sand.u32 1, 7
        %s299 = ssub.s32 1, %s298
        %s300 = scalar_lea.vmem %s271, %s299
        %s301 = ssub.s32 1, %s298
        %s302 = scalar_lea.vmem %s272, %s301 [#allocation2]
        %s303 = sshllo.u32 0, %s298
        loop: start=0, step=1, limit=1
        $region179: #{tpu_custom_call.1} parent=177 // loop_pre_header
          _
        $region180: #{tpu_custom_call.1} parent=177 // loop_header
          %s305 = sphi 0, %s309
          %p306 = scmp.ge.s32.totalorder %s305, 1
          %s310 = sphi %s300, %s300
          %s311 = sphi %s302, %s302
        $region181: #{tpu_custom_call.1} parent=177 // loop_header_branch
          %308 = sbr.rel (%p306) target = $region185
        $region182: #{tpu_custom_call.1} parent=177 // loop_body
          %v312 = vld [vmem:[%s310] sm:%s303]
          %313 = vst [vmem:[%s311] sm:%s303] %v312
        $region183: #{tpu_custom_call.1} parent=177 // loop_footer
          %s309 = sadd.s32 1, %s305
        $region184: #{tpu_custom_call.1} parent=177 // loop_footer_branch
          %304 = sbr.rel target = $region180
        $region185: #{tpu_custom_call.1} parent=177 // loop_exit
          _
      $region178: #{tpu_custom_call.1} parent=162 // pred_fallthru
        _
    $region163: #{tpu_custom_call.1} parent=1 // pred_fallthru
      _
    // Predicated region
    $region164: #{tpu_custom_call.1} parent=1 // pred_check
      %p279 = pneg %p275
    $region165: #{tpu_custom_call.1} parent=1 // pred_check_branch
      %281 = sbr.rel (%p279) target = $region167
    $region166: #{tpu_custom_call.1} parent=1 // pred_region
      %s282 = sshllo.u32 0, 1
      loop: start=0, step=1, limit=1
      $region168: #{tpu_custom_call.1} parent=166 // loop_pre_header
        _
      $region169: #{tpu_custom_call.1} parent=166 // loop_header
        %s284 = sphi 0, %s288
        %p285 = scmp.ge.s32.totalorder %s284, 1
        %s289 = sphi %s271, %s271
        %s290 = sphi %s272, %s272
      $region170: #{tpu_custom_call.1} parent=166 // loop_header_branch
        %287 = sbr.rel (%p285) target = $region174
      $region171: #{tpu_custom_call.1} parent=166 // loop_body
        %v291 = vld [vmem:[%s289] sm:%s282]
        %292 = vst [vmem:[%s290] sm:%s282] %v291
      $region172: #{tpu_custom_call.1} parent=166 // loop_footer
        %s288 = sadd.s32 1, %s284
      $region173: #{tpu_custom_call.1} parent=166 // loop_footer_branch
        %283 = sbr.rel target = $region169
      $region174: #{tpu_custom_call.1} parent=166 // loop_exit
        _
    $region167: #{tpu_custom_call.1} parent=1 // pred_fallthru
      _
    // Predicated region
    $region186: #{tpu_custom_call.1} parent=1 // pred_check
      _
    $region187: #{tpu_custom_call.1} parent=1 // pred_check_branch
      %316 = sbr.rel (0) target = $region189
    $region188: #{tpu_custom_call.1} parent=1 // pred_region
      %317 = vsyncadd %s273, 16
    $region189: #{tpu_custom_call.1} parent=1 // pred_fallthru
      _
    %s318 = sld [smem:[#allocation5 + $0x2]]
    %s319 = scalar_lea.vmem %s2, %s318
    %s320 = scalar_lea.vmem [#allocation2], 2
    %s321 = scalar_lea.sflag [#allocation3], 2
    %p323 = scmp.lt.u32.totalorder 1, 8
    %p324 = pneg %p323
    // Predicated region
    $region190: #{tpu_custom_call.1} parent=1 // pred_check
      _
    $region191: #{tpu_custom_call.1} parent=1 // pred_check_branch
      %326 = sbr.rel (%p323) target = $region193
    $region192: #{tpu_custom_call.1} parent=1 // pred_region
      %s341 = sand.u32 1, 7
      %p342 = scmp.eq.s32.totalorder %s341, 0
      %p343 = pneg %p342
      // Predicated region
      $region205: #{tpu_custom_call.1} parent=192 // pred_check
        _
      $region206: #{tpu_custom_call.1} parent=192 // pred_check_branch
        %345 = sbr.rel (%p342) target = $region208
      $region207: #{tpu_custom_call.1} parent=192 // pred_region
        %s346 = sand.u32 1, 7
        %s347 = ssub.s32 1, %s346
        %s348 = scalar_lea.vmem %s319, %s347
        %s349 = ssub.s32 1, %s346
        %s350 = scalar_lea.vmem %s320, %s349 [#allocation2]
        %s351 = sshllo.u32 0, %s346
        loop: start=0, step=1, limit=1
        $region209: #{tpu_custom_call.1} parent=207 // loop_pre_header
          _
        $region210: #{tpu_custom_call.1} parent=207 // loop_header
          %s353 = sphi 0, %s357
          %p354 = scmp.ge.s32.totalorder %s353, 1
          %s358 = sphi %s348, %s348
          %s359 = sphi %s350, %s350
        $region211: #{tpu_custom_call.1} parent=207 // loop_header_branch
          %356 = sbr.rel (%p354) target = $region215
        $region212: #{tpu_custom_call.1} parent=207 // loop_body
          %v360 = vld [vmem:[%s358] sm:%s351]
          %361 = vst [vmem:[%s359] sm:%s351] %v360
        $region213: #{tpu_custom_call.1} parent=207 // loop_footer
          %s357 = sadd.s32 1, %s353
        $region214: #{tpu_custom_call.1} parent=207 // loop_footer_branch
          %352 = sbr.rel target = $region210
        $region215: #{tpu_custom_call.1} parent=207 // loop_exit
          _
      $region208: #{tpu_custom_call.1} parent=192 // pred_fallthru
        _
    $region193: #{tpu_custom_call.1} parent=1 // pred_fallthru
      _
    // Predicated region
    $region194: #{tpu_custom_call.1} parent=1 // pred_check
      %p327 = pneg %p323
    $region195: #{tpu_custom_call.1} parent=1 // pred_check_branch
      %329 = sbr.rel (%p327) target = $region197
    $region196: #{tpu_custom_call.1} parent=1 // pred_region
      %s330 = sshllo.u32 0, 1
      loop: start=0, step=1, limit=1
      $region198: #{tpu_custom_call.1} parent=196 // loop_pre_header
        _
      $region199: #{tpu_custom_call.1} parent=196 // loop_header
        %s332 = sphi 0, %s336
        %p333 = scmp.ge.s32.totalorder %s332, 1
        %s337 = sphi %s319, %s319
        %s338 = sphi %s320, %s320
      $region200: #{tpu_custom_call.1} parent=196 // loop_header_branch
        %335 = sbr.rel (%p333) target = $region204
      $region201: #{tpu_custom_call.1} parent=196 // loop_body
        %v339 = vld [vmem:[%s337] sm:%s330]
        %340 = vst [vmem:[%s338] sm:%s330] %v339
      $region202: #{tpu_custom_call.1} parent=196 // loop_footer
        %s336 = sadd.s32 1, %s332
      $region203: #{tpu_custom_call.1} parent=196 // loop_footer_branch
        %331 = sbr.rel target = $region199
      $region204: #{tpu_custom_call.1} parent=196 // loop_exit
        _
    $region197: #{tpu_custom_call.1} parent=1 // pred_fallthru
      _
    // Predicated region
    $region216: #{tpu_custom_call.1} parent=1 // pred_check
      _
    $region217: #{tpu_custom_call.1} parent=1 // pred_check_branch
      %364 = sbr.rel (0) target = $region219
    $region218: #{tpu_custom_call.1} parent=1 // pred_region
      %365 = vsyncadd %s321, 16
    $region219: #{tpu_custom_call.1} parent=1 // pred_fallthru
      _
    %s366 = sld [smem:[#allocation5 + $0x3]]
    %s367 = scalar_lea.vmem %s2, %s366
    %s368 = scalar_lea.vmem [#allocation2], 3
    %s369 = scalar_lea.sflag [#allocation3], 3
    %p371 = scmp.lt.u32.totalorder 1, 8
    %p372 = pneg %p371
    // Predicated region
    $region220: #{tpu_custom_call.1} parent=1 // pred_check
      _
    $region221: #{tpu_custom_call.1} parent=1 // pred_check_branch
      %374 = sbr.rel (%p371) target = $region223
    $region222: #{tpu_custom_call.1} parent=1 // pred_region
      %s389 = sand.u32 1, 7
      %p390 = scmp.eq.s32.totalorder %s389, 0
      %p391 = pneg %p390
      // Predicated region
      $region235: #{tpu_custom_call.1} parent=222 // pred_check
        _
      $region236: #{tpu_custom_call.1} parent=222 // pred_check_branch
        %393 = sbr.rel (%p390) target = $region238
      $region237: #{tpu_custom_call.1} parent=222 // pred_region
        %s394 = sand.u32 1, 7
        %s395 = ssub.s32 1, %s394
        %s396 = scalar_lea.vmem %s367, %s395
        %s397 = ssub.s32 1, %s394
        %s398 = scalar_lea.vmem %s368, %s397 [#allocation2]
        %s399 = sshllo.u32 0, %s394
        loop: start=0, step=1, limit=1
        $region239: #{tpu_custom_call.1} parent=237 // loop_pre_header
          _
        $region240: #{tpu_custom_call.1} parent=237 // loop_header
          %s401 = sphi 0, %s405
          %p402 = scmp.ge.s32.totalorder %s401, 1
          %s406 = sphi %s396, %s396
          %s407 = sphi %s398, %s398
        $region241: #{tpu_custom_call.1} parent=237 // loop_header_branch
          %404 = sbr.rel (%p402) target = $region245
        $region242: #{tpu_custom_call.1} parent=237 // loop_body
          %v408 = vld [vmem:[%s406] sm:%s399]
          %409 = vst [vmem:[%s407] sm:%s399] %v408
        $region243: #{tpu_custom_call.1} parent=237 // loop_footer
          %s405 = sadd.s32 1, %s401
        $region244: #{tpu_custom_call.1} parent=237 // loop_footer_branch
          %400 = sbr.rel target = $region240
        $region245: #{tpu_custom_call.1} parent=237 // loop_exit
          _
      $region238: #{tpu_custom_call.1} parent=222 // pred_fallthru
        _
    $region223: #{tpu_custom_call.1} parent=1 // pred_fallthru
      _
    // Predicated region
    $region224: #{tpu_custom_call.1} parent=1 // pred_check
      %p375 = pneg %p371
    $region225: #{tpu_custom_call.1} parent=1 // pred_check_branch
      %377 = sbr.rel (%p375) target = $region227
    $region226: #{tpu_custom_call.1} parent=1 // pred_region
      %s378 = sshllo.u32 0, 1
      loop: start=0, step=1, limit=1
      $region228: #{tpu_custom_call.1} parent=226 // loop_pre_header
        _
      $region229: #{tpu_custom_call.1} parent=226 // loop_header
        %s380 = sphi 0, %s384
        %p381 = scmp.ge.s32.totalorder %s380, 1
        %s385 = sphi %s367, %s367
        %s386 = sphi %s368, %s368
      $region230: #{tpu_custom_call.1} parent=226 // loop_header_branch
        %383 = sbr.rel (%p381) target = $region234
      $region231: #{tpu_custom_call.1} parent=226 // loop_body
        %v387 = vld [vmem:[%s385] sm:%s378]
        %388 = vst [vmem:[%s386] sm:%s378] %v387
      $region232: #{tpu_custom_call.1} parent=226 // loop_footer
        %s384 = sadd.s32 1, %s380
      $region233: #{tpu_custom_call.1} parent=226 // loop_footer_branch
        %379 = sbr.rel target = $region229
      $region234: #{tpu_custom_call.1} parent=226 // loop_exit
        _
    $region227: #{tpu_custom_call.1} parent=1 // pred_fallthru
      _
    // Predicated region
    $region246: #{tpu_custom_call.1} parent=1 // pred_check
      _
    $region247: #{tpu_custom_call.1} parent=1 // pred_check_branch
      %412 = sbr.rel (0) target = $region249
    $region248: #{tpu_custom_call.1} parent=1 // pred_region
      %413 = vsyncadd %s369, 16
    $region249: #{tpu_custom_call.1} parent=1 // pred_fallthru
      _
    %s414 = sld [smem:[#allocation5 + $0x4]]
    %s415 = scalar_lea.vmem %s2, %s414
    %s416 = scalar_lea.vmem [#allocation2], 4
    %s417 = scalar_lea.sflag [#allocation3], 4
    %p419 = scmp.lt.u32.totalorder 1, 8
    %p420 = pneg %p419
    // Predicated region
    $region250: #{tpu_custom_call.1} parent=1 // pred_check
      _
    $region251: #{tpu_custom_call.1} parent=1 // pred_check_branch
      %422 = sbr.rel (%p419) target = $region253
    $region252: #{tpu_custom_call.1} parent=1 // pred_region
      %s437 = sand.u32 1, 7
      %p438 = scmp.eq.s32.totalorder %s437, 0
      %p439 = pneg %p438
      // Predicated region
      $region265: #{tpu_custom_call.1} parent=252 // pred_check
        _
      $region266: #{tpu_custom_call.1} parent=252 // pred_check_branch
        %441 = sbr.rel (%p438) target = $region268
      $region267: #{tpu_custom_call.1} parent=252 // pred_region
        %s442 = sand.u32 1, 7
        %s443 = ssub.s32 1, %s442
        %s444 = scalar_lea.vmem %s415, %s443
        %s445 = ssub.s32 1, %s442
        %s446 = scalar_lea.vmem %s416, %s445 [#allocation2]
        %s447 = sshllo.u32 0, %s442
        loop: start=0, step=1, limit=1
        $region269: #{tpu_custom_call.1} parent=267 // loop_pre_header
          _
        $region270: #{tpu_custom_call.1} parent=267 // loop_header
          %s449 = sphi 0, %s453
          %p450 = scmp.ge.s32.totalorder %s449, 1
          %s454 = sphi %s444, %s444
          %s455 = sphi %s446, %s446
        $region271: #{tpu_custom_call.1} parent=267 // loop_header_branch
          %452 = sbr.rel (%p450) target = $region275
        $region272: #{tpu_custom_call.1} parent=267 // loop_body
          %v456 = vld [vmem:[%s454] sm:%s447]
          %457 = vst [vmem:[%s455] sm:%s447] %v456
        $region273: #{tpu_custom_call.1} parent=267 // loop_footer
          %s453 = sadd.s32 1, %s449
        $region274: #{tpu_custom_call.1} parent=267 // loop_footer_branch
          %448 = sbr.rel target = $region270
        $region275: #{tpu_custom_call.1} parent=267 // loop_exit
          _
      $region268: #{tpu_custom_call.1} parent=252 // pred_fallthru
        _
    $region253: #{tpu_custom_call.1} parent=1 // pred_fallthru
      _
    // Predicated region
    $region254: #{tpu_custom_call.1} parent=1 // pred_check
      %p423 = pneg %p419
    $region255: #{tpu_custom_call.1} parent=1 // pred_check_branch
      %425 = sbr.rel (%p423) target = $region257
    $region256: #{tpu_custom_call.1} parent=1 // pred_region
      %s426 = sshllo.u32 0, 1
      loop: start=0, step=1, limit=1
      $region258: #{tpu_custom_call.1} parent=256 // loop_pre_header
        _
      $region259: #{tpu_custom_call.1} parent=256 // loop_header
        %s428 = sphi 0, %s432
        %p429 = scmp.ge.s32.totalorder %s428, 1
        %s433 = sphi %s415, %s415
        %s434 = sphi %s416, %s416
      $region260: #{tpu_custom_call.1} parent=256 // loop_header_branch
        %431 = sbr.rel (%p429) target = $region264
      $region261: #{tpu_custom_call.1} parent=256 // loop_body
        %v435 = vld [vmem:[%s433] sm:%s426]
        %436 = vst [vmem:[%s434] sm:%s426] %v435
      $region262: #{tpu_custom_call.1} parent=256 // loop_footer
        %s432 = sadd.s32 1, %s428
      $region263: #{tpu_custom_call.1} parent=256 // loop_footer_branch
        %427 = sbr.rel target = $region259
      $region264: #{tpu_custom_call.1} parent=256 // loop_exit
        _
    $region257: #{tpu_custom_call.1} parent=1 // pred_fallthru
      _
    // Predicated region
    $region276: #{tpu_custom_call.1} parent=1 // pred_check
      _
    $region277: #{tpu_custom_call.1} parent=1 // pred_check_branch
      %460 = sbr.rel (0) target = $region279
    $region278: #{tpu_custom_call.1} parent=1 // pred_region
      %461 = vsyncadd %s417, 16
    $region279: #{tpu_custom_call.1} parent=1 // pred_fallthru
      _
    %s462 = sld [smem:[#allocation5 + $0x5]]
    %s463 = scalar_lea.vmem %s2, %s462
    %s464 = scalar_lea.vmem [#allocation2], 5
    %s465 = scalar_lea.sflag [#allocation3], 5
    %p467 = scmp.lt.u32.totalorder 1, 8
    %p468 = pneg %p467
    // Predicated region
    $region280: #{tpu_custom_call.1} parent=1 // pred_check
      _
    $region281: #{tpu_custom_call.1} parent=1 // pred_check_branch
      %470 = sbr.rel (%p467) target = $region283
    $region282: #{tpu_custom_call.1} parent=1 // pred_region
      %s485 = sand.u32 1, 7
      %p486 = scmp.eq.s32.totalorder %s485, 0
      %p487 = pneg %p486
      // Predicated region
      $region295: #{tpu_custom_call.1} parent=282 // pred_check
        _
      $region296: #{tpu_custom_call.1} parent=282 // pred_check_branch
        %489 = sbr.rel (%p486) target = $region298
      $region297: #{tpu_custom_call.1} parent=282 // pred_region
        %s490 = sand.u32 1, 7
        %s491 = ssub.s32 1, %s490
        %s492 = scalar_lea.vmem %s463, %s491
        %s493 = ssub.s32 1, %s490
        %s494 = scalar_lea.vmem %s464, %s493 [#allocation2]
        %s495 = sshllo.u32 0, %s490
        loop: start=0, step=1, limit=1
        $region299: #{tpu_custom_call.1} parent=297 // loop_pre_header
          _
        $region300: #{tpu_custom_call.1} parent=297 // loop_header
          %s497 = sphi 0, %s501
          %p498 = scmp.ge.s32.totalorder %s497, 1
          %s502 = sphi %s492, %s492
          %s503 = sphi %s494, %s494
        $region301: #{tpu_custom_call.1} parent=297 // loop_header_branch
          %500 = sbr.rel (%p498) target = $region305
        $region302: #{tpu_custom_call.1} parent=297 // loop_body
          %v504 = vld [vmem:[%s502] sm:%s495]
          %505 = vst [vmem:[%s503] sm:%s495] %v504
        $region303: #{tpu_custom_call.1} parent=297 // loop_footer
          %s501 = sadd.s32 1, %s497
        $region304: #{tpu_custom_call.1} parent=297 // loop_footer_branch
          %496 = sbr.rel target = $region300
        $region305: #{tpu_custom_call.1} parent=297 // loop_exit
          _
      $region298: #{tpu_custom_call.1} parent=282 // pred_fallthru
        _
    $region283: #{tpu_custom_call.1} parent=1 // pred_fallthru
      _
    // Predicated region
    $region284: #{tpu_custom_call.1} parent=1 // pred_check
      %p471 = pneg %p467
    $region285: #{tpu_custom_call.1} parent=1 // pred_check_branch
      %473 = sbr.rel (%p471) target = $region287
    $region286: #{tpu_custom_call.1} parent=1 // pred_region
      %s474 = sshllo.u32 0, 1
      loop: start=0, step=1, limit=1
      $region288: #{tpu_custom_call.1} parent=286 // loop_pre_header
        _
      $region289: #{tpu_custom_call.1} parent=286 // loop_header
        %s476 = sphi 0, %s480
        %p477 = scmp.ge.s32.totalorder %s476, 1
        %s481 = sphi %s463, %s463
        %s482 = sphi %s464, %s464
      $region290: #{tpu_custom_call.1} parent=286 // loop_header_branch
        %479 = sbr.rel (%p477) target = $region294
      $region291: #{tpu_custom_call.1} parent=286 // loop_body
        %v483 = vld [vmem:[%s481] sm:%s474]
        %484 = vst [vmem:[%s482] sm:%s474] %v483
      $region292: #{tpu_custom_call.1} parent=286 // loop_footer
        %s480 = sadd.s32 1, %s476
      $region293: #{tpu_custom_call.1} parent=286 // loop_footer_branch
        %475 = sbr.rel target = $region289
      $region294: #{tpu_custom_call.1} parent=286 // loop_exit
        _
    $region287: #{tpu_custom_call.1} parent=1 // pred_fallthru
      _
    // Predicated region
    $region306: #{tpu_custom_call.1} parent=1 // pred_check
      _
    $region307: #{tpu_custom_call.1} parent=1 // pred_check_branch
      %508 = sbr.rel (0) target = $region309
    $region308: #{tpu_custom_call.1} parent=1 // pred_region
      %509 = vsyncadd %s465, 16
    $region309: #{tpu_custom_call.1} parent=1 // pred_fallthru
      _
    %s510 = sld [smem:[#allocation5 + $0x6]]
    %s511 = scalar_lea.vmem %s2, %s510
    %s512 = scalar_lea.vmem [#allocation2], 6
    %s513 = scalar_lea.sflag [#allocation3], 6
    %p515 = scmp.lt.u32.totalorder 1, 8
    %p516 = pneg %p515
    // Predicated region
    $region310: #{tpu_custom_call.1} parent=1 // pred_check
      _
    $region311: #{tpu_custom_call.1} parent=1 // pred_check_branch
      %518 = sbr.rel (%p515) target = $region313
    $region312: #{tpu_custom_call.1} parent=1 // pred_region
      %s533 = sand.u32 1, 7
      %p534 = scmp.eq.s32.totalorder %s533, 0
      %p535 = pneg %p534
      // Predicated region
      $region325: #{tpu_custom_call.1} parent=312 // pred_check
        _
      $region326: #{tpu_custom_call.1} parent=312 // pred_check_branch
        %537 = sbr.rel (%p534) target = $region328
      $region327: #{tpu_custom_call.1} parent=312 // pred_region
        %s538 = sand.u32 1, 7
        %s539 = ssub.s32 1, %s538
        %s540 = scalar_lea.vmem %s511, %s539
        %s541 = ssub.s32 1, %s538
        %s542 = scalar_lea.vmem %s512, %s541 [#allocation2]
        %s543 = sshllo.u32 0, %s538
        loop: start=0, step=1, limit=1
        $region329: #{tpu_custom_call.1} parent=327 // loop_pre_header
          _
        $region330: #{tpu_custom_call.1} parent=327 // loop_header
          %s545 = sphi 0, %s549
          %p546 = scmp.ge.s32.totalorder %s545, 1
          %s550 = sphi %s540, %s540
          %s551 = sphi %s542, %s542
        $region331: #{tpu_custom_call.1} parent=327 // loop_header_branch
          %548 = sbr.rel (%p546) target = $region335
        $region332: #{tpu_custom_call.1} parent=327 // loop_body
          %v552 = vld [vmem:[%s550] sm:%s543]
          %553 = vst [vmem:[%s551] sm:%s543] %v552
        $region333: #{tpu_custom_call.1} parent=327 // loop_footer
          %s549 = sadd.s32 1, %s545
        $region334: #{tpu_custom_call.1} parent=327 // loop_footer_branch
          %544 = sbr.rel target = $region330
        $region335: #{tpu_custom_call.1} parent=327 // loop_exit
          _
      $region328: #{tpu_custom_call.1} parent=312 // pred_fallthru
        _
    $region313: #{tpu_custom_call.1} parent=1 // pred_fallthru
      _
    // Predicated region
    $region314: #{tpu_custom_call.1} parent=1 // pred_check
      %p519 = pneg %p515
    $region315: #{tpu_custom_call.1} parent=1 // pred_check_branch
      %521 = sbr.rel (%p519) target = $region317
    $region316: #{tpu_custom_call.1} parent=1 // pred_region
      %s522 = sshllo.u32 0, 1
      loop: start=0, step=1, limit=1
      $region318: #{tpu_custom_call.1} parent=316 // loop_pre_header
        _
      $region319: #{tpu_custom_call.1} parent=316 // loop_header
        %s524 = sphi 0, %s528
        %p525 = scmp.ge.s32.totalorder %s524, 1
        %s529 = sphi %s511, %s511
        %s530 = sphi %s512, %s512
      $region320: #{tpu_custom_call.1} parent=316 // loop_header_branch
        %527 = sbr.rel (%p525) target = $region324
      $region321: #{tpu_custom_call.1} parent=316 // loop_body
        %v531 = vld [vmem:[%s529] sm:%s522]
        %532 = vst [vmem:[%s530] sm:%s522] %v531
      $region322: #{tpu_custom_call.1} parent=316 // loop_footer
        %s528 = sadd.s32 1, %s524
      $region323: #{tpu_custom_call.1} parent=316 // loop_footer_branch
        %523 = sbr.rel target = $region319
      $region324: #{tpu_custom_call.1} parent=316 // loop_exit
        _
    $region317: #{tpu_custom_call.1} parent=1 // pred_fallthru
      _
    // Predicated region
    $region336: #{tpu_custom_call.1} parent=1 // pred_check
      _
    $region337: #{tpu_custom_call.1} parent=1 // pred_check_branch
      %556 = sbr.rel (0) target = $region339
    $region338: #{tpu_custom_call.1} parent=1 // pred_region
      %557 = vsyncadd %s513, 16
    $region339: #{tpu_custom_call.1} parent=1 // pred_fallthru
      _
    %s558 = sld [smem:[#allocation5 + $0x7]]
    %s559 = scalar_lea.vmem %s2, %s558
    %s560 = scalar_lea.vmem [#allocation2], 7
    %s561 = scalar_lea.sflag [#allocation3], 7
    %p563 = scmp.lt.u32.totalorder 1, 8
    %p564 = pneg %p563
    // Predicated region
    $region340: #{tpu_custom_call.1} parent=1 // pred_check
      _
    $region341: #{tpu_custom_call.1} parent=1 // pred_check_branch
      %566 = sbr.rel (%p563) target = $region343
    $region342: #{tpu_custom_call.1} parent=1 // pred_region
      %s581 = sand.u32 1, 7
      %p582 = scmp.eq.s32.totalorder %s581, 0
      %p583 = pneg %p582
      // Predicated region
      $region355: #{tpu_custom_call.1} parent=342 // pred_check
        _
      $region356: #{tpu_custom_call.1} parent=342 // pred_check_branch
        %585 = sbr.rel (%p582) target = $region358
      $region357: #{tpu_custom_call.1} parent=342 // pred_region
        %s586 = sand.u32 1, 7
        %s587 = ssub.s32 1, %s586
        %s588 = scalar_lea.vmem %s559, %s587
        %s589 = ssub.s32 1, %s586
        %s590 = scalar_lea.vmem %s560, %s589 [#allocation2]
        %s591 = sshllo.u32 0, %s586
        loop: start=0, step=1, limit=1
        $region359: #{tpu_custom_call.1} parent=357 // loop_pre_header
          _
        $region360: #{tpu_custom_call.1} parent=357 // loop_header
          %s593 = sphi 0, %s597
          %p594 = scmp.ge.s32.totalorder %s593, 1
          %s598 = sphi %s588, %s588
          %s599 = sphi %s590, %s590
        $region361: #{tpu_custom_call.1} parent=357 // loop_header_branch
          %596 = sbr.rel (%p594) target = $region365
        $region362: #{tpu_custom_call.1} parent=357 // loop_body
          %v600 = vld [vmem:[%s598] sm:%s591]
          %601 = vst [vmem:[%s599] sm:%s591] %v600
        $region363: #{tpu_custom_call.1} parent=357 // loop_footer
          %s597 = sadd.s32 1, %s593
        $region364: #{tpu_custom_call.1} parent=357 // loop_footer_branch
          %592 = sbr.rel target = $region360
        $region365: #{tpu_custom_call.1} parent=357 // loop_exit
          _
      $region358: #{tpu_custom_call.1} parent=342 // pred_fallthru
        _
    $region343: #{tpu_custom_call.1} parent=1 // pred_fallthru
      _
    // Predicated region
    $region344: #{tpu_custom_call.1} parent=1 // pred_check
      %p567 = pneg %p563
    $region345: #{tpu_custom_call.1} parent=1 // pred_check_branch
      %569 = sbr.rel (%p567) target = $region347
    $region346: #{tpu_custom_call.1} parent=1 // pred_region
      %s570 = sshllo.u32 0, 1
      loop: start=0, step=1, limit=1
      $region348: #{tpu_custom_call.1} parent=346 // loop_pre_header
        _
      $region349: #{tpu_custom_call.1} parent=346 // loop_header
        %s572 = sphi 0, %s576
        %p573 = scmp.ge.s32.totalorder %s572, 1
        %s577 = sphi %s559, %s559
        %s578 = sphi %s560, %s560
      $region350: #{tpu_custom_call.1} parent=346 // loop_header_branch
        %575 = sbr.rel (%p573) target = $region354
      $region351: #{tpu_custom_call.1} parent=346 // loop_body
        %v579 = vld [vmem:[%s577] sm:%s570]
        %580 = vst [vmem:[%s578] sm:%s570] %v579
      $region352: #{tpu_custom_call.1} parent=346 // loop_footer
        %s576 = sadd.s32 1, %s572
      $region353: #{tpu_custom_call.1} parent=346 // loop_footer_branch
        %571 = sbr.rel target = $region349
      $region354: #{tpu_custom_call.1} parent=346 // loop_exit
        _
    $region347: #{tpu_custom_call.1} parent=1 // pred_fallthru
      _
    // Predicated region
    $region366: #{tpu_custom_call.1} parent=1 // pred_check
      _
    $region367: #{tpu_custom_call.1} parent=1 // pred_check_branch
      %604 = sbr.rel (0) target = $region369
    $region368: #{tpu_custom_call.1} parent=1 // pred_region
      %605 = vsyncadd %s561, 16
    $region369: #{tpu_custom_call.1} parent=1 // pred_fallthru
      _
    %s606 = sld [smem:[#allocation6]]
    %s607 = scalar_lea.vmem [#allocation15], %s606
    %v608 = vld [vmem:[%s607] sm:$0x1]
    %s609 = sld [smem:[#allocation6 + $0x1]]
    %s610 = scalar_lea.vmem [#allocation16], %s609
    %v611 = vld [vmem:[%s610] sm:$0x1]
    %s612 = sld [smem:[#allocation6 + $0x2]]
    %s613 = scalar_lea.vmem [#allocation18], %s612
    %v614 = vld [vmem:[%s613] sm:$0x1]
    %v615 = vld [vmem:[%s12] sm:$0xff]
    %v616 = vld [vmem:[%s12 + $0x8] sm:$0xff]
    %v617 = vld [vmem:[%s12 + $0x10] sm:$0xf]
    %v618 = vld [vmem:[#allocation19] sm:$0xff]
    %vm619 = vcmask 64512
    %v621 = vsel %vm619, %v611, 0
    %623 = vmatprep.subr.mxu0 0.0
    %624 = vmatpush1.msra.mxu0 %v618
    %625 = vmatprep.subr.mxu0 0.0
    %626 = vmatpush1.msra.mxu0 0.0
    %627 = vmatprep.subr.mxu0 0.0
    %628 = vmatpush1.msra.mxu0 0.0
    %629 = vmatprep.subr.mxu0 0.0
    %630 = vmatpush1.msra.mxu0 0.0
    %631 = vmatprep.subr.mxu0 0.0
    %632 = vmatpush1.msra.mxu0 0.0
    %633 = vmatprep.subr.mxu0 0.0
    %634 = vmatpush1.msra.mxu0 0.0
    %635 = vmatprep.subr.mxu0 0.0
    %636 = vmatpush1.msra.mxu0 0.0
    %637 = vmatprep.subr.mxu0 0.0
    %638 = vmatpush1.msra.mxu0 0.0
    %639 = vmatprep.subr.mxu0 0.0
    %640 = vmatpush1.msra.mxu0 0.0
    %641 = vmatprep.subr.mxu0 0.0
    %642 = vmatpush1.msra.mxu0 0.0
    %643 = vmatprep.subr.mxu0 0.0
    %644 = vmatpush1.msra.mxu0 0.0
    %645 = vmatprep.subr.mxu0 0.0
    %646 = vmatpush1.msra.mxu0 0.0
    %647 = vmatprep.subr.mxu0 0.0
    %648 = vmatpush1.msra.mxu0 0.0
    %649 = vmatprep.subr.mxu0 0.0
    %650 = vmatpush1.msra.mxu0 0.0
    %651 = vmatprep.subr.mxu0 0.0
    %652 = vmatpush1.msra.mxu0 0.0
    %653 = vmatprep.subr.mxu0 0.0
    %654 = vmatpush1.msra.mxu0 0.0
    %655 = vmatprep.subr.mxu0 0.0
    %656 = vmatpush1.msra.mxu0 0.0
    %657 = vmatprep.subr.mxu0 0.0
    %658 = vmatpush1.msra.mxu0 0.0
    %659 = vmatprep.subr.mxu0 0.0
    %660 = vmatpush1.msra.mxu0 0.0
    %661 = vmatprep.subr.mxu0 0.0
    %662 = vmatpush1.msra.mxu0 0.0
    %663 = vmatprep.subr.mxu0 0.0
    %664 = vmatpush1.msra.mxu0 0.0
    %665 = vmatprep.subr.mxu0 0.0
    %666 = vmatpush1.msra.mxu0 0.0
    %667 = vmatprep.subr.mxu0 0.0
    %668 = vmatpush1.msra.mxu0 0.0
    %669 = vmatprep.subr.mxu0 0.0
    %670 = vmatpush1.msra.mxu0 0.0
    %671 = vmatprep.subr.mxu0 0.0
    %672 = vmatpush1.msra.mxu0 0.0
    %673 = vmatprep.subr.mxu0 0.0
    %674 = vmatpush1.msra.mxu0 0.0
    %675 = vmatprep.subr.mxu0 0.0
    %676 = vmatpush1.msra.mxu0 0.0
    %677 = vmatprep.subr.mxu0 0.0
    %678 = vmatpush1.msra.mxu0 0.0
    %679 = vmatprep.subr.mxu0 0.0
    %680 = vmatpush1.msra.mxu0 0.0
    %681 = vmatprep.subr.mxu0 0.0
    %682 = vmatpush1.msra.mxu0 0.0
    %683 = vmatprep.subr.mxu0 0.0
    %684 = vmatpush1.msra.mxu0 0.0
    %685 = vmatprep.subr.mxu0 0.0
    %686 = vmatpush1.msra.mxu0 0.0
    %687 = vmatprep.mubr.f32.mxu0 0.0
    %688 = vmatmul.mubr.f32.gmra.mrb[0].mxu0 %v621
    %v689 = vpop.f32.mrb[0].mxu0
    %v690 = vadd.f32 0.0, %v689
    %v691 = vpop.f32.mrb[0].mxu0
    %692 = vdwg.mxu0
    %vm693 = vcmask 162816
    %v695 = vsel %vm693, %v608, 0
    %vm697 = vcmask 1043456
    %v699 = vsel %vm697, %v617, 0
    %701 = vmatprep.subr.mxu0 0.0
    %702 = vmatpush1.msra.mxu0 %v615
    %703 = vmatprep.subr.mxu0 0.0
    %704 = vmatpush1.msra.mxu0 %v616
    %705 = vmatprep.subr.mxu0 0.0
    %706 = vmatpush1.msra.mxu0 %v699
    %707 = vmatprep.subr.mxu0 0.0
    %708 = vmatpush1.msra.mxu0 0.0
    %709 = vmatprep.subr.mxu0 0.0
    %710 = vmatpush1.msra.mxu0 0.0
    %711 = vmatprep.subr.mxu0 0.0
    %712 = vmatpush1.msra.mxu0 0.0
    %713 = vmatprep.subr.mxu0 0.0
    %714 = vmatpush1.msra.mxu0 0.0
    %715 = vmatprep.subr.mxu0 0.0
    %716 = vmatpush1.msra.mxu0 0.0
    %717 = vmatprep.subr.mxu0 0.0
    %718 = vmatpush1.msra.mxu0 0.0
    %719 = vmatprep.subr.mxu0 0.0
    %720 = vmatpush1.msra.mxu0 0.0
    %721 = vmatprep.subr.mxu0 0.0
    %722 = vmatpush1.msra.mxu0 0.0
    %723 = vmatprep.subr.mxu0 0.0
    %724 = vmatpush1.msra.mxu0 0.0
    %725 = vmatprep.subr.mxu0 0.0
    %726 = vmatpush1.msra.mxu0 0.0
    %727 = vmatprep.subr.mxu0 0.0
    %728 = vmatpush1.msra.mxu0 0.0
    %729 = vmatprep.subr.mxu0 0.0
    %730 = vmatpush1.msra.mxu0 0.0
    %731 = vmatprep.subr.mxu0 0.0
    %732 = vmatpush1.msra.mxu0 0.0
    %733 = vmatprep.subr.mxu0 0.0
    %734 = vmatpush1.msra.mxu0 0.0
    %735 = vmatprep.subr.mxu0 0.0
    %736 = vmatpush1.msra.mxu0 0.0
    %737 = vmatprep.subr.mxu0 0.0
    %738 = vmatpush1.msra.mxu0 0.0
    %739 = vmatprep.subr.mxu0 0.0
    %740 = vmatpush1.msra.mxu0 0.0
    %741 = vmatprep.subr.mxu0 0.0
    %742 = vmatpush1.msra.mxu0 0.0
    %743 = vmatprep.subr.mxu0 0.0
    %744 = vmatpush1.msra.mxu0 0.0
    %745 = vmatprep.subr.mxu0 0.0
    %746 = vmatpush1.msra.mxu0 0.0
    %747 = vmatprep.subr.mxu0 0.0
    %748 = vmatpush1.msra.mxu0 0.0
    %749 = vmatprep.subr.mxu0 0.0
    %750 = vmatpush1.msra.mxu0 0.0
    %751 = vmatprep.subr.mxu0 0.0
    %752 = vmatpush1.msra.mxu0 0.0
    %753 = vmatprep.subr.mxu0 0.0
    %754 = vmatpush1.msra.mxu0 0.0
    %755 = vmatprep.subr.mxu0 0.0
    %756 = vmatpush1.msra.mxu0 0.0
    %757 = vmatprep.subr.mxu0 0.0
    %758 = vmatpush1.msra.mxu0 0.0
    %759 = vmatprep.subr.mxu0 0.0
    %760 = vmatpush1.msra.mxu0 0.0
    %761 = vmatprep.subr.mxu0 0.0
    %762 = vmatpush1.msra.mxu0 0.0
    %763 = vmatprep.subr.mxu0 0.0
    %764 = vmatpush1.msra.mxu0 0.0
    %765 = vmatprep.mubr.f32.mxu0 0.0
    %766 = vmatmul.mubr.f32.gmra.mrb[0].mxu0 %v695
    %v767 = vpop.f32.mrb[0].mxu0
    %v768 = vadd.f32 %v690, %v767
    %v769 = vpop.f32.mrb[0].mxu0
    %770 = vdwg.mxu0
    %v771 = vld [vmem:[#allocation21] sm:$0xf]
    %vm772 = vcmask 31744
    %v774 = vsel %vm772, %v614, 0
    %v777 = vsel %vm697, %v771, 0
    %779 = vmatprep.subr.mxu0 0.0
    %780 = vmatpush1.msra.mxu0 %v777
    %781 = vmatprep.subr.mxu0 0.0
    %782 = vmatpush1.msra.mxu0 0.0
    %783 = vmatprep.subr.mxu0 0.0
    %784 = vmatpush1.msra.mxu0 0.0
    %785 = vmatprep.subr.mxu0 0.0
    %786 = vmatpush1.msra.mxu0 0.0
    %787 = vmatprep.subr.mxu0 0.0
    %788 = vmatpush1.msra.mxu0 0.0
    %789 = vmatprep.subr.mxu0 0.0
    %790 = vmatpush1.msra.mxu0 0.0
    %791 = vmatprep.subr.mxu0 0.0
    %792 = vmatpush1.msra.mxu0 0.0
    %793 = vmatprep.subr.mxu0 0.0
    %794 = vmatpush1.msra.mxu0 0.0
    %795 = vmatprep.subr.mxu0 0.0
    %796 = vmatpush1.msra.mxu0 0.0
    %797 = vmatprep.subr.mxu0 0.0
    %798 = vmatpush1.msra.mxu0 0.0
    %799 = vmatprep.subr.mxu0 0.0
    %800 = vmatpush1.msra.mxu0 0.0
    %801 = vmatprep.subr.mxu0 0.0
    %802 = vmatpush1.msra.mxu0 0.0
    %803 = vmatprep.subr.mxu0 0.0
    %804 = vmatpush1.msra.mxu0 0.0
    %805 = vmatprep.subr.mxu0 0.0
    %806 = vmatpush1.msra.mxu0 0.0
    %807 = vmatprep.subr.mxu0 0.0
    %808 = vmatpush1.msra.mxu0 0.0
    %809 = vmatprep.subr.mxu0 0.0
    %810 = vmatpush1.msra.mxu0 0.0
    %811 = vmatprep.subr.mxu0 0.0
    %812 = vmatpush1.msra.mxu0 0.0
    %813 = vmatprep.subr.mxu0 0.0
    %814 = vmatpush1.msra.mxu0 0.0
    %815 = vmatprep.subr.mxu0 0.0
    %816 = vmatpush1.msra.mxu0 0.0
    %817 = vmatprep.subr.mxu0 0.0
    %818 = vmatpush1.msra.mxu0 0.0
    %819 = vmatprep.subr.mxu0 0.0
    %820 = vmatpush1.msra.mxu0 0.0
    %821 = vmatprep.subr.mxu0 0.0
    %822 = vmatpush1.msra.mxu0 0.0
    %823 = vmatprep.subr.mxu0 0.0
    %824 = vmatpush1.msra.mxu0 0.0
    %825 = vmatprep.subr.mxu0 0.0
    %826 = vmatpush1.msra.mxu0 0.0
    %827 = vmatprep.subr.mxu0 0.0
    %828 = vmatpush1.msra.mxu0 0.0
    %829 = vmatprep.subr.mxu0 0.0
    %830 = vmatpush1.msra.mxu0 0.0
    %831 = vmatprep.subr.mxu0 0.0
    %832 = vmatpush1.msra.mxu0 0.0
    %833 = vmatprep.subr.mxu0 0.0
    %834 = vmatpush1.msra.mxu0 0.0
    %835 = vmatprep.subr.mxu0 0.0
    %836 = vmatpush1.msra.mxu0 0.0
    %837 = vmatprep.subr.mxu0 0.0
    %838 = vmatpush1.msra.mxu0 0.0
    %839 = vmatprep.subr.mxu0 0.0
    %840 = vmatpush1.msra.mxu0 0.0
    %841 = vmatprep.subr.mxu0 0.0
    %842 = vmatpush1.msra.mxu0 0.0
    %843 = vmatprep.mubr.f32.mxu0 0.0
    %844 = vmatmul.mubr.f32.gmra.mrb[0].mxu0 %v774
    %v845 = vpop.f32.mrb[0].mxu0
    %v846 = vadd.f32 0.0, %v845
    %v847 = vpop.f32.mrb[0].mxu0
    %848 = vdwg.mxu0
    %v849 = vadd.f32 %v768, %v846
    %v850 = vld [vmem:[#allocation22] sm:$0x1]
    %v851 = vadd.f32 %v849, %v850
    %v852 = vmax.f32 %v851, 0.0
    %v853 = vld [vmem:[%s16] sm:$0xff]
    %v854 = vld [vmem:[%s16 + $0x8] sm:$0xff]
    %v855 = vld [vmem:[#allocation24] sm:$0x1]
    %vm856 = vcmask 130048
    %v858 = vsel %vm856, %v852, 0
    %860 = vmatprep.subr.mxu0 0.0
    %861 = vmatpush1.msra.mxu0 %v853
    %862 = vmatprep.subr.mxu0 0.0
    %863 = vmatpush1.msra.mxu0 %v854
    %864 = vmatprep.subr.mxu0 0.0
    %865 = vmatpush1.msra.mxu0 0.0
    %866 = vmatprep.subr.mxu0 0.0
    %867 = vmatpush1.msra.mxu0 0.0
    %868 = vmatprep.subr.mxu0 0.0
    %869 = vmatpush1.msra.mxu0 0.0
    %870 = vmatprep.subr.mxu0 0.0
    %871 = vmatpush1.msra.mxu0 0.0
    %872 = vmatprep.subr.mxu0 0.0
    %873 = vmatpush1.msra.mxu0 0.0
    %874 = vmatprep.subr.mxu0 0.0
    %875 = vmatpush1.msra.mxu0 0.0
    %876 = vmatprep.subr.mxu0 0.0
    %877 = vmatpush1.msra.mxu0 0.0
    %878 = vmatprep.subr.mxu0 0.0
    %879 = vmatpush1.msra.mxu0 0.0
    %880 = vmatprep.subr.mxu0 0.0
    %881 = vmatpush1.msra.mxu0 0.0
    %882 = vmatprep.subr.mxu0 0.0
    %883 = vmatpush1.msra.mxu0 0.0
    %884 = vmatprep.subr.mxu0 0.0
    %885 = vmatpush1.msra.mxu0 0.0
    %886 = vmatprep.subr.mxu0 0.0
    %887 = vmatpush1.msra.mxu0 0.0
    %888 = vmatprep.subr.mxu0 0.0
    %889 = vmatpush1.msra.mxu0 0.0
    %890 = vmatprep.subr.mxu0 0.0
    %891 = vmatpush1.msra.mxu0 0.0
    %892 = vmatprep.subr.mxu0 0.0
    %893 = vmatpush1.msra.mxu0 0.0
    %894 = vmatprep.subr.mxu0 0.0
    %895 = vmatpush1.msra.mxu0 0.0
    %896 = vmatprep.subr.mxu0 0.0
    %897 = vmatpush1.msra.mxu0 0.0
    %898 = vmatprep.subr.mxu0 0.0
    %899 = vmatpush1.msra.mxu0 0.0
    %900 = vmatprep.subr.mxu0 0.0
    %901 = vmatpush1.msra.mxu0 0.0
    %902 = vmatprep.subr.mxu0 0.0
    %903 = vmatpush1.msra.mxu0 0.0
    %904 = vmatprep.subr.mxu0 0.0
    %905 = vmatpush1.msra.mxu0 0.0
    %906 = vmatprep.subr.mxu0 0.0
    %907 = vmatpush1.msra.mxu0 0.0
    %908 = vmatprep.subr.mxu0 0.0
    %909 = vmatpush1.msra.mxu0 0.0
    %910 = vmatprep.subr.mxu0 0.0
    %911 = vmatpush1.msra.mxu0 0.0
    %912 = vmatprep.subr.mxu0 0.0
    %913 = vmatpush1.msra.mxu0 0.0
    %914 = vmatprep.subr.mxu0 0.0
    %915 = vmatpush1.msra.mxu0 0.0
    %916 = vmatprep.subr.mxu0 0.0
    %917 = vmatpush1.msra.mxu0 0.0
    %918 = vmatprep.subr.mxu0 0.0
    %919 = vmatpush1.msra.mxu0 0.0
    %920 = vmatprep.subr.mxu0 0.0
    %921 = vmatpush1.msra.mxu0 0.0
    %922 = vmatprep.subr.mxu0 0.0
    %923 = vmatpush1.msra.mxu0 0.0
    %924 = vmatprep.mubr.f32.mxu0 0.0
    %925 = vmatmul.mubr.f32.gmra.mrb[0].mxu0 %v858
    %v926 = vpop.f32.mrb[0].mxu0
    %v927 = vadd.f32 %v855, %v926
    %v928 = vpop.f32.mrb[0].mxu0
    %929 = vdwg.mxu0
    %v930 = vmax.f32 %v927, 0.0
    %v931 = vld [vmem:[#allocation25] sm:$0xff]
    %v932 = vld [vmem:[#allocation25 + $0x8] sm:$0xff]
    %v933 = vld [vmem:[%s20] sm:$0x1]
    %v935 = vsel %vm856, %v930, 0
    %937 = vmatprep.subr.mxu0 0.0
    %938 = vmatpush1.msra.mxu0 %v931
    %939 = vmatprep.subr.mxu0 0.0
    %940 = vmatpush1.msra.mxu0 %v932
    %941 = vmatprep.subr.mxu0 0.0
    %942 = vmatpush1.msra.mxu0 0.0
    %943 = vmatprep.subr.mxu0 0.0
    %944 = vmatpush1.msra.mxu0 0.0
    %945 = vmatprep.subr.mxu0 0.0
    %946 = vmatpush1.msra.mxu0 0.0
    %947 = vmatprep.subr.mxu0 0.0
    %948 = vmatpush1.msra.mxu0 0.0
    %949 = vmatprep.subr.mxu0 0.0
    %950 = vmatpush1.msra.mxu0 0.0
    %951 = vmatprep.subr.mxu0 0.0
    %952 = vmatpush1.msra.mxu0 0.0
    %953 = vmatprep.subr.mxu0 0.0
    %954 = vmatpush1.msra.mxu0 0.0
    %955 = vmatprep.subr.mxu0 0.0
    %956 = vmatpush1.msra.mxu0 0.0
    %957 = vmatprep.subr.mxu0 0.0
    %958 = vmatpush1.msra.mxu0 0.0
    %959 = vmatprep.subr.mxu0 0.0
    %960 = vmatpush1.msra.mxu0 0.0
    %961 = vmatprep.subr.mxu0 0.0
    %962 = vmatpush1.msra.mxu0 0.0
    %963 = vmatprep.subr.mxu0 0.0
    %964 = vmatpush1.msra.mxu0 0.0
    %965 = vmatprep.subr.mxu0 0.0
    %966 = vmatpush1.msra.mxu0 0.0
    %967 = vmatprep.subr.mxu0 0.0
    %968 = vmatpush1.msra.mxu0 0.0
    %969 = vmatprep.subr.mxu0 0.0
    %970 = vmatpush1.msra.mxu0 0.0
    %971 = vmatprep.subr.mxu0 0.0
    %972 = vmatpush1.msra.mxu0 0.0
    %973 = vmatprep.subr.mxu0 0.0
    %974 = vmatpush1.msra.mxu0 0.0
    %975 = vmatprep.subr.mxu0 0.0
    %976 = vmatpush1.msra.mxu0 0.0
    %977 = vmatprep.subr.mxu0 0.0
    %978 = vmatpush1.msra.mxu0 0.0
    %979 = vmatprep.subr.mxu0 0.0
    %980 = vmatpush1.msra.mxu0 0.0
    %981 = vmatprep.subr.mxu0 0.0
    %982 = vmatpush1.msra.mxu0 0.0
    %983 = vmatprep.subr.mxu0 0.0
    %984 = vmatpush1.msra.mxu0 0.0
    %985 = vmatprep.subr.mxu0 0.0
    %986 = vmatpush1.msra.mxu0 0.0
    %987 = vmatprep.subr.mxu0 0.0
    %988 = vmatpush1.msra.mxu0 0.0
    %989 = vmatprep.subr.mxu0 0.0
    %990 = vmatpush1.msra.mxu0 0.0
    %991 = vmatprep.subr.mxu0 0.0
    %992 = vmatpush1.msra.mxu0 0.0
    %993 = vmatprep.subr.mxu0 0.0
    %994 = vmatpush1.msra.mxu0 0.0
    %995 = vmatprep.subr.mxu0 0.0
    %996 = vmatpush1.msra.mxu0 0.0
    %997 = vmatprep.subr.mxu0 0.0
    %998 = vmatpush1.msra.mxu0 0.0
    %999 = vmatprep.subr.mxu0 0.0
    %1000 = vmatpush1.msra.mxu0 0.0
    %1001 = vmatprep.mubr.f32.mxu0 0.0
    %1002 = vmatmul.mubr.f32.gmra.mrb[0].mxu0 %v935
    %v1003 = vpop.f32.mrb[0].mxu0
    %v1004 = vadd.f32 %v933, %v1003
    %v1005 = vpop.f32.mrb[0].mxu0
    %1006 = vdwg.mxu0
    %1008 = dma.done [#allocation3], 16
    %1010 = dma.done %s273, 16
    %1012 = dma.done %s321, 16
    %1014 = dma.done %s369, 16
    %1016 = dma.done %s417, 16
    %1018 = dma.done %s465, 16
    %1020 = dma.done %s513, 16
    %1022 = dma.done %s561, 16
    %v1023 = vld [vmem:[#allocation2] sm:$0xff]
    %v1024 = vld [vmem:[%s3] sm:$0xff]
    %v1025 = vld [vmem:[%s3 + $0x8] sm:$0xff]
    %v1026 = vld [vmem:[%s3 + $0x10] sm:$0xff]
    %v1027 = vld [vmem:[%s3 + $0x18] sm:$0xff]
    %v1028 = vld [vmem:[%s3 + $0x20] sm:$0xff]
    %v1029 = vld [vmem:[%s3 + $0x28] sm:$0xff]
    %v1030 = vld [vmem:[%s3 + $0x30] sm:$0x3]
    %v1031 = vld [vmem:[#allocation7] sm:$0x1]
    %v1033 = vlaneseq
    %v1034 = vshrl.u32 %v1033, 7
    %v1035 = vsub.s32 0, %v1034
    %v1036 = vrot.slane %v1031, %v1035
    %vm1038 = vcmask 408576
    %v1040 = vsel %vm1038, %v1023, 0
    %vm1042 = vcmask 1041408
    %v1044 = vsel %vm1042, %v1030, 0
    %1046 = vmatprep.subr.mxu0 0.0
    %1047 = vmatpush1.msra.mxu0 %v1024
    %1048 = vmatprep.subr.mxu0 0.0
    %1049 = vmatpush1.msra.mxu0 %v1025
    %1050 = vmatprep.subr.mxu0 0.0
    %1051 = vmatpush1.msra.mxu0 %v1026
    %1052 = vmatprep.subr.mxu0 0.0
    %1053 = vmatpush1.msra.mxu0 %v1027
    %1054 = vmatprep.subr.mxu0 0.0
    %1055 = vmatpush1.msra.mxu0 %v1028
    %1056 = vmatprep.subr.mxu0 0.0
    %1057 = vmatpush1.msra.mxu0 %v1029
    %1058 = vmatprep.subr.mxu0 0.0
    %1059 = vmatpush1.msra.mxu0 %v1044
    %1060 = vmatprep.subr.mxu0 0.0
    %1061 = vmatpush1.msra.mxu0 0.0
    %1062 = vmatprep.subr.mxu0 0.0
    %1063 = vmatpush1.msra.mxu0 0.0
    %1064 = vmatprep.subr.mxu0 0.0
    %1065 = vmatpush1.msra.mxu0 0.0
    %1066 = vmatprep.subr.mxu0 0.0
    %1067 = vmatpush1.msra.mxu0 0.0
    %1068 = vmatprep.subr.mxu0 0.0
    %1069 = vmatpush1.msra.mxu0 0.0
    %1070 = vmatprep.subr.mxu0 0.0
    %1071 = vmatpush1.msra.mxu0 0.0
    %1072 = vmatprep.subr.mxu0 0.0
    %1073 = vmatpush1.msra.mxu0 0.0
    %1074 = vmatprep.subr.mxu0 0.0
    %1075 = vmatpush1.msra.mxu0 0.0
    %1076 = vmatprep.subr.mxu0 0.0
    %1077 = vmatpush1.msra.mxu0 0.0
    %1078 = vmatprep.subr.mxu0 0.0
    %1079 = vmatpush1.msra.mxu0 0.0
    %1080 = vmatprep.subr.mxu0 0.0
    %1081 = vmatpush1.msra.mxu0 0.0
    %1082 = vmatprep.subr.mxu0 0.0
    %1083 = vmatpush1.msra.mxu0 0.0
    %1084 = vmatprep.subr.mxu0 0.0
    %1085 = vmatpush1.msra.mxu0 0.0
    %1086 = vmatprep.subr.mxu0 0.0
    %1087 = vmatpush1.msra.mxu0 0.0
    %1088 = vmatprep.subr.mxu0 0.0
    %1089 = vmatpush1.msra.mxu0 0.0
    %1090 = vmatprep.subr.mxu0 0.0
    %1091 = vmatpush1.msra.mxu0 0.0
    %1092 = vmatprep.subr.mxu0 0.0
    %1093 = vmatpush1.msra.mxu0 0.0
    %1094 = vmatprep.subr.mxu0 0.0
    %1095 = vmatpush1.msra.mxu0 0.0
    %1096 = vmatprep.subr.mxu0 0.0
    %1097 = vmatpush1.msra.mxu0 0.0
    %1098 = vmatprep.subr.mxu0 0.0
    %1099 = vmatpush1.msra.mxu0 0.0
    %1100 = vmatprep.subr.mxu0 0.0
    %1101 = vmatpush1.msra.mxu0 0.0
    %1102 = vmatprep.subr.mxu0 0.0
    %1103 = vmatpush1.msra.mxu0 0.0
    %1104 = vmatprep.subr.mxu0 0.0
    %1105 = vmatpush1.msra.mxu0 0.0
    %1106 = vmatprep.subr.mxu0 0.0
    %1107 = vmatpush1.msra.mxu0 0.0
    %1108 = vmatprep.subr.mxu0 0.0
    %1109 = vmatpush1.msra.mxu0 0.0
    %1110 = vmatprep.mubr.f32.mxu0 0.0
    %1111 = vmatmul.mubr.f32.gmra.mrb[0].mxu0 %v1040
    %v1112 = vpop.f32.mrb[0].mxu0
    %v1113 = vadd.f32 %v1036, %v1112
    %v1114 = vpop.f32.mrb[0].mxu0
    %1115 = vdwg.mxu0
    %v1116 = vld [vmem:[%s5] sm:$0xff]
    %v1117 = vld [vmem:[%s5 + $0x8] sm:$0xff]
    %v1118 = vld [vmem:[%s5 + $0x10] sm:$0xf]
    %v1119 = vld [vmem:[#allocation10] sm:$0xff]
    %v1120 = vld [vmem:[#allocation10 + $0x8] sm:$0xff]
    %v1121 = vld [vmem:[#allocation10 + $0x10] sm:$0xf]
    %v1122 = vld [vmem:[#allocation12] sm:$0xff]
    %v1123 = vld [vmem:[#allocation12 + $0x8] sm:$0xff]
    %v1124 = vld [vmem:[#allocation12 + $0x10] sm:$0xf]
    %v1125 = vld [vmem:[#allocation13] sm:$0xff]
    %v1126 = vld [vmem:[#allocation13 + $0x8] sm:$0xff]
    %v1127 = vld [vmem:[#allocation13 + $0x10] sm:$0xf]
    %v1129 = vsel %vm693, 0.0, 0
    %v1132 = vsel %vm697, %v1118, 0
    %1134 = vmatprep.subr.mxu0 0.0
    %1135 = vmatpush1.msra.mxu0 %v1116
    %1136 = vmatprep.subr.mxu0 0.0
    %1137 = vmatpush1.msra.mxu0 %v1117
    %1138 = vmatprep.subr.mxu0 0.0
    %1139 = vmatpush1.msra.mxu0 %v1132
    %1140 = vmatprep.subr.mxu0 0.0
    %1141 = vmatpush1.msra.mxu0 0.0
    %1142 = vmatprep.subr.mxu0 0.0
    %1143 = vmatpush1.msra.mxu0 0.0
    %1144 = vmatprep.subr.mxu0 0.0
    %1145 = vmatpush1.msra.mxu0 0.0
    %1146 = vmatprep.subr.mxu0 0.0
    %1147 = vmatpush1.msra.mxu0 0.0
    %1148 = vmatprep.subr.mxu0 0.0
    %1149 = vmatpush1.msra.mxu0 0.0
    %1150 = vmatprep.subr.mxu0 0.0
    %1151 = vmatpush1.msra.mxu0 0.0
    %1152 = vmatprep.subr.mxu0 0.0
    %1153 = vmatpush1.msra.mxu0 0.0
    %1154 = vmatprep.subr.mxu0 0.0
    %1155 = vmatpush1.msra.mxu0 0.0
    %1156 = vmatprep.subr.mxu0 0.0
    %1157 = vmatpush1.msra.mxu0 0.0
    %1158 = vmatprep.subr.mxu0 0.0
    %1159 = vmatpush1.msra.mxu0 0.0
    %1160 = vmatprep.subr.mxu0 0.0
    %1161 = vmatpush1.msra.mxu0 0.0
    %1162 = vmatprep.subr.mxu0 0.0
    %1163 = vmatpush1.msra.mxu0 0.0
    %1164 = vmatprep.subr.mxu0 0.0
    %1165 = vmatpush1.msra.mxu0 0.0
    %1166 = vmatprep.subr.mxu0 0.0
    %1167 = vmatpush1.msra.mxu0 0.0
    %1168 = vmatprep.subr.mxu0 0.0
    %1169 = vmatpush1.msra.mxu0 0.0
    %1170 = vmatprep.subr.mxu0 0.0
    %1171 = vmatpush1.msra.mxu0 0.0
    %1172 = vmatprep.subr.mxu0 0.0
    %1173 = vmatpush1.msra.mxu0 0.0
    %1174 = vmatprep.subr.mxu0 0.0
    %1175 = vmatpush1.msra.mxu0 0.0
    %1176 = vmatprep.subr.mxu0 0.0
    %1177 = vmatpush1.msra.mxu0 0.0
    %1178 = vmatprep.subr.mxu0 0.0
    %1179 = vmatpush1.msra.mxu0 0.0
    %1180 = vmatprep.subr.mxu0 0.0
    %1181 = vmatpush1.msra.mxu0 0.0
    %1182 = vmatprep.subr.mxu0 0.0
    %1183 = vmatpush1.msra.mxu0 0.0
    %1184 = vmatprep.subr.mxu0 0.0
    %1185 = vmatpush1.msra.mxu0 0.0
    %1186 = vmatprep.subr.mxu0 0.0
    %1187 = vmatpush1.msra.mxu0 0.0
    %1188 = vmatprep.subr.mxu0 0.0
    %1189 = vmatpush1.msra.mxu0 0.0
    %1190 = vmatprep.subr.mxu0 0.0
    %1191 = vmatpush1.msra.mxu0 0.0
    %1192 = vmatprep.subr.mxu0 0.0
    %1193 = vmatpush1.msra.mxu0 0.0
    %1194 = vmatprep.subr.mxu0 0.0
    %1195 = vmatpush1.msra.mxu0 0.0
    %1196 = vmatprep.subr.mxu0 0.0
    %1197 = vmatpush1.msra.mxu0 0.0
    %1198 = vmatprep.mubr.f32.mxu0 0.0
    %1199 = vmatmul.mubr.f32.gmra.mrb[0].mxu0 %v1129
    %v1200 = vpop.f32.mrb[0].mxu0
    %v1201 = vadd.f32 0.0, %v1200
    %v1202 = vpop.f32.mrb[0].mxu0
    %1203 = vdwg.mxu0
    %v1204 = vadd.f32 %v1113, %v1201
    %v1205 = vxor.u32 %v1204, 2147483648
    %v1206 = vmul.f32 %v1205, 1.442695
    %v1207 = vpow.pop %v1206
    %v1208 = vadd.f32 %v1207, 1.0
    %v1209 = vrcp.pop %v1208
    %v1210 = vmul.f32 1.0, %v1209
    %v1212 = vsel %vm697, %v1121, 0
    %1214 = vmatprep.subr.mxu0 0.0
    %1215 = vmatpush1.msra.mxu0 %v1119
    %1216 = vmatprep.subr.mxu0 0.0
    %1217 = vmatpush1.msra.mxu0 %v1120
    %1218 = vmatprep.subr.mxu0 0.0
    %1219 = vmatpush1.msra.mxu0 %v1212
    %1220 = vmatprep.subr.mxu0 0.0
    %1221 = vmatpush1.msra.mxu0 0.0
    %1222 = vmatprep.subr.mxu0 0.0
    %1223 = vmatpush1.msra.mxu0 0.0
    %1224 = vmatprep.subr.mxu0 0.0
    %1225 = vmatpush1.msra.mxu0 0.0
    %1226 = vmatprep.subr.mxu0 0.0
    %1227 = vmatpush1.msra.mxu0 0.0
    %1228 = vmatprep.subr.mxu0 0.0
    %1229 = vmatpush1.msra.mxu0 0.0
    %1230 = vmatprep.subr.mxu0 0.0
    %1231 = vmatpush1.msra.mxu0 0.0
    %1232 = vmatprep.subr.mxu0 0.0
    %1233 = vmatpush1.msra.mxu0 0.0
    %1234 = vmatprep.subr.mxu0 0.0
    %1235 = vmatpush1.msra.mxu0 0.0
    %1236 = vmatprep.subr.mxu0 0.0
    %1237 = vmatpush1.msra.mxu0 0.0
    %1238 = vmatprep.subr.mxu0 0.0
    %1239 = vmatpush1.msra.mxu0 0.0
    %1240 = vmatprep.subr.mxu0 0.0
    %1241 = vmatpush1.msra.mxu0 0.0
    %1242 = vmatprep.subr.mxu0 0.0
    %1243 = vmatpush1.msra.mxu0 0.0
    %1244 = vmatprep.subr.mxu0 0.0
    %1245 = vmatpush1.msra.mxu0 0.0
    %1246 = vmatprep.subr.mxu0 0.0
    %1247 = vmatpush1.msra.mxu0 0.0
    %1248 = vmatprep.subr.mxu0 0.0
    %1249 = vmatpush1.msra.mxu0 0.0
    %1250 = vmatprep.subr.mxu0 0.0
    %1251 = vmatpush1.msra.mxu0 0.0
    %1252 = vmatprep.subr.mxu0 0.0
    %1253 = vmatpush1.msra.mxu0 0.0
    %1254 = vmatprep.subr.mxu0 0.0
    %1255 = vmatpush1.msra.mxu0 0.0
    %1256 = vmatprep.subr.mxu0 0.0
    %1257 = vmatpush1.msra.mxu0 0.0
    %1258 = vmatprep.subr.mxu0 0.0
    %1259 = vmatpush1.msra.mxu0 0.0
    %1260 = vmatprep.subr.mxu0 0.0
    %1261 = vmatpush1.msra.mxu0 0.0
    %1262 = vmatprep.subr.mxu0 0.0
    %1263 = vmatpush1.msra.mxu0 0.0
    %1264 = vmatprep.subr.mxu0 0.0
    %1265 = vmatpush1.msra.mxu0 0.0
    %1266 = vmatprep.subr.mxu0 0.0
    %1267 = vmatpush1.msra.mxu0 0.0
    %1268 = vmatprep.subr.mxu0 0.0
    %1269 = vmatpush1.msra.mxu0 0.0
    %1270 = vmatprep.subr.mxu0 0.0
    %1271 = vmatpush1.msra.mxu0 0.0
    %1272 = vmatprep.subr.mxu0 0.0
    %1273 = vmatpush1.msra.mxu0 0.0
    %1274 = vmatprep.subr.mxu0 0.0
    %1275 = vmatpush1.msra.mxu0 0.0
    %1276 = vmatprep.subr.mxu0 0.0
    %1277 = vmatpush1.msra.mxu0 0.0
    %1278 = vmatprep.mubr.f32.mxu0 0.0
    %1279 = vmatmul.mubr.f32.gmra.mrb[0].mxu0 %v1129
    %v1280 = vpop.f32.mrb[0].mxu0
    %v1281 = vadd.f32 0.0, %v1280
    %v1282 = vpop.f32.mrb[0].mxu0
    %1283 = vdwg.mxu0
    %1285 = vrot.lane.b32.xlu0 %v1281, 20
    %v1286 = vpop.permute.xlu0 %1285
    %v1288 = vadd.f32 %v1113, %v1286
    %v1289 = vxor.u32 %v1288, 2147483648
    %v1290 = vmul.f32 %v1289, 1.442695
    %v1291 = vpow.pop %v1290
    %v1292 = vadd.f32 %v1291, 1.0
    %v1293 = vrcp.pop %v1292
    %v1294 = vmul.f32 1.0, %v1293
    %v1296 = vsel %vm697, %v1124, 0
    %1298 = vmatprep.subr.mxu0 0.0
    %1299 = vmatpush1.msra.mxu0 %v1122
    %1300 = vmatprep.subr.mxu0 0.0
    %1301 = vmatpush1.msra.mxu0 %v1123
    %1302 = vmatprep.subr.mxu0 0.0
    %1303 = vmatpush1.msra.mxu0 %v1296
    %1304 = vmatprep.subr.mxu0 0.0
    %1305 = vmatpush1.msra.mxu0 0.0
    %1306 = vmatprep.subr.mxu0 0.0
    %1307 = vmatpush1.msra.mxu0 0.0
    %1308 = vmatprep.subr.mxu0 0.0
    %1309 = vmatpush1.msra.mxu0 0.0
    %1310 = vmatprep.subr.mxu0 0.0
    %1311 = vmatpush1.msra.mxu0 0.0
    %1312 = vmatprep.subr.mxu0 0.0
    %1313 = vmatpush1.msra.mxu0 0.0
    %1314 = vmatprep.subr.mxu0 0.0
    %1315 = vmatpush1.msra.mxu0 0.0
    %1316 = vmatprep.subr.mxu0 0.0
    %1317 = vmatpush1.msra.mxu0 0.0
    %1318 = vmatprep.subr.mxu0 0.0
    %1319 = vmatpush1.msra.mxu0 0.0
    %1320 = vmatprep.subr.mxu0 0.0
    %1321 = vmatpush1.msra.mxu0 0.0
    %1322 = vmatprep.subr.mxu0 0.0
    %1323 = vmatpush1.msra.mxu0 0.0
    %1324 = vmatprep.subr.mxu0 0.0
    %1325 = vmatpush1.msra.mxu0 0.0
    %1326 = vmatprep.subr.mxu0 0.0
    %1327 = vmatpush1.msra.mxu0 0.0
    %1328 = vmatprep.subr.mxu0 0.0
    %1329 = vmatpush1.msra.mxu0 0.0
    %1330 = vmatprep.subr.mxu0 0.0
    %1331 = vmatpush1.msra.mxu0 0.0
    %1332 = vmatprep.subr.mxu0 0.0
    %1333 = vmatpush1.msra.mxu0 0.0
    %1334 = vmatprep.subr.mxu0 0.0
    %1335 = vmatpush1.msra.mxu0 0.0
    %1336 = vmatprep.subr.mxu0 0.0
    %1337 = vmatpush1.msra.mxu0 0.0
    %1338 = vmatprep.subr.mxu0 0.0
    %1339 = vmatpush1.msra.mxu0 0.0
    %1340 = vmatprep.subr.mxu0 0.0
    %1341 = vmatpush1.msra.mxu0 0.0
    %1342 = vmatprep.subr.mxu0 0.0
    %1343 = vmatpush1.msra.mxu0 0.0
    %1344 = vmatprep.subr.mxu0 0.0
    %1345 = vmatpush1.msra.mxu0 0.0
    %1346 = vmatprep.subr.mxu0 0.0
    %1347 = vmatpush1.msra.mxu0 0.0
    %1348 = vmatprep.subr.mxu0 0.0
    %1349 = vmatpush1.msra.mxu0 0.0
    %1350 = vmatprep.subr.mxu0 0.0
    %1351 = vmatpush1.msra.mxu0 0.0
    %1352 = vmatprep.subr.mxu0 0.0
    %1353 = vmatpush1.msra.mxu0 0.0
    %1354 = vmatprep.subr.mxu0 0.0
    %1355 = vmatpush1.msra.mxu0 0.0
    %1356 = vmatprep.subr.mxu0 0.0
    %1357 = vmatpush1.msra.mxu0 0.0
    %1358 = vmatprep.subr.mxu0 0.0
    %1359 = vmatpush1.msra.mxu0 0.0
    %1360 = vmatprep.subr.mxu0 0.0
    %1361 = vmatpush1.msra.mxu0 0.0
    %1362 = vmatprep.mubr.f32.mxu0 0.0
    %1363 = vmatmul.mubr.f32.gmra.mrb[0].mxu0 %v1129
    %v1364 = vpop.f32.mrb[0].mxu0
    %v1365 = vadd.f32 0.0, %v1364
    %v1366 = vpop.f32.mrb[0].mxu0
    %1367 = vdwg.mxu0
    %1369 = vrot.lane.b32.xlu0 %v1365, 40
    %v1370 = vpop.permute.xlu0 %1369
    %v1372 = vadd.f32 %v1113, %v1370
    %v1373 = vtanh.pop %v1372
    %v1375 = vsel %vm697, %v1127, 0
    %1377 = vmatprep.subr.mxu0 0.0
    %1378 = vmatpush1.msra.mxu0 %v1125
    %1379 = vmatprep.subr.mxu0 0.0
    %1380 = vmatpush1.msra.mxu0 %v1126
    %1381 = vmatprep.subr.mxu0 0.0
    %1382 = vmatpush1.msra.mxu0 %v1375
    %1383 = vmatprep.subr.mxu0 0.0
    %1384 = vmatpush1.msra.mxu0 0.0
    %1385 = vmatprep.subr.mxu0 0.0
    %1386 = vmatpush1.msra.mxu0 0.0
    %1387 = vmatprep.subr.mxu0 0.0
    %1388 = vmatpush1.msra.mxu0 0.0
    %1389 = vmatprep.subr.mxu0 0.0
    %1390 = vmatpush1.msra.mxu0 0.0
    %1391 = vmatprep.subr.mxu0 0.0
    %1392 = vmatpush1.msra.mxu0 0.0
    %1393 = vmatprep.subr.mxu0 0.0
    %1394 = vmatpush1.msra.mxu0 0.0
    %1395 = vmatprep.subr.mxu0 0.0
    %1396 = vmatpush1.msra.mxu0 0.0
    %1397 = vmatprep.subr.mxu0 0.0
    %1398 = vmatpush1.msra.mxu0 0.0
    %1399 = vmatprep.subr.mxu0 0.0
    %1400 = vmatpush1.msra.mxu0 0.0
    %1401 = vmatprep.subr.mxu0 0.0
    %1402 = vmatpush1.msra.mxu0 0.0
    %1403 = vmatprep.subr.mxu0 0.0
    %1404 = vmatpush1.msra.mxu0 0.0
    %1405 = vmatprep.subr.mxu0 0.0
    %1406 = vmatpush1.msra.mxu0 0.0
    %1407 = vmatprep.subr.mxu0 0.0
    %1408 = vmatpush1.msra.mxu0 0.0
    %1409 = vmatprep.subr.mxu0 0.0
    %1410 = vmatpush1.msra.mxu0 0.0
    %1411 = vmatprep.subr.mxu0 0.0
    %1412 = vmatpush1.msra.mxu0 0.0
    %1413 = vmatprep.subr.mxu0 0.0
    %1414 = vmatpush1.msra.mxu0 0.0
    %1415 = vmatprep.subr.mxu0 0.0
    %1416 = vmatpush1.msra.mxu0 0.0
    %1417 = vmatprep.subr.mxu0 0.0
    %1418 = vmatpush1.msra.mxu0 0.0
    %1419 = vmatprep.subr.mxu0 0.0
    %1420 = vmatpush1.msra.mxu0 0.0
    %1421 = vmatprep.subr.mxu0 0.0
    %1422 = vmatpush1.msra.mxu0 0.0
    %1423 = vmatprep.subr.mxu0 0.0
    %1424 = vmatpush1.msra.mxu0 0.0
    %1425 = vmatprep.subr.mxu0 0.0
    %1426 = vmatpush1.msra.mxu0 0.0
    %1427 = vmatprep.subr.mxu0 0.0
    %1428 = vmatpush1.msra.mxu0 0.0
    %1429 = vmatprep.subr.mxu0 0.0
    %1430 = vmatpush1.msra.mxu0 0.0
    %1431 = vmatprep.subr.mxu0 0.0
    %1432 = vmatpush1.msra.mxu0 0.0
    %1433 = vmatprep.subr.mxu0 0.0
    %1434 = vmatpush1.msra.mxu0 0.0
    %1435 = vmatprep.subr.mxu0 0.0
    %1436 = vmatpush1.msra.mxu0 0.0
    %1437 = vmatprep.subr.mxu0 0.0
    %1438 = vmatpush1.msra.mxu0 0.0
    %1439 = vmatprep.subr.mxu0 0.0
    %1440 = vmatpush1.msra.mxu0 0.0
    %1441 = vmatprep.mubr.f32.mxu0 0.0
    %1442 = vmatmul.mubr.f32.gmra.mrb[0].mxu0 %v1129
    %v1443 = vpop.f32.mrb[0].mxu0
    %v1444 = vadd.f32 0.0, %v1443
    %v1445 = vpop.f32.mrb[0].mxu0
    %1446 = vdwg.mxu0
    %1448 = vrot.lane.b32.xlu0 %v1444, 60
    %v1449 = vpop.permute.xlu0 %1448
    %v1451 = vadd.f32 %v1113, %v1449
    %v1452 = vxor.u32 %v1451, 2147483648
    %v1453 = vmul.f32 %v1452, 1.442695
    %v1454 = vpow.pop %v1453
    %v1455 = vadd.f32 %v1454, 1.0
    %v1456 = vrcp.pop %v1455
    %v1457 = vmul.f32 1.0, %v1456
    %v1458 = vmul.f32 %v1294, 0.0
    %1460 = vrot.lane.b32.xlu0 %v1373, 88
    %v1461 = vpop.permute.xlu0 %1460
    %v1463 = vmul.f32 %v1210, %v1461
    %1465 = vrot.lane.b32.xlu0 %v1463, 20
    %v1466 = vpop.permute.xlu0 %1465
    %v1468 = vadd.f32 %v1458, %v1466
    %v1469 = vtanh.pop %v1468
    %1471 = vrot.lane.b32.xlu0 %v1469, 40
    %v1472 = vpop.permute.xlu0 %1471
    %v1474 = vmul.f32 %v1457, %v1472
    %1476 = vrot.lane.b32.xlu0 %v1474, 68
    %v1477 = vpop.permute.xlu0 %1476
    %v1478 = vsel %vm693, %v1477, 0
    %1480 = vmatprep.subr.mxu0 0.0
    %1481 = vmatpush1.msra.mxu0 %v1116
    %1482 = vmatprep.subr.mxu0 0.0
    %1483 = vmatpush1.msra.mxu0 %v1117
    %1484 = vmatprep.subr.mxu0 0.0
    %1485 = vmatpush1.msra.mxu0 %v1132
    %1486 = vmatprep.subr.mxu0 0.0
    %1487 = vmatpush1.msra.mxu0 0.0
    %1488 = vmatprep.subr.mxu0 0.0
    %1489 = vmatpush1.msra.mxu0 0.0
    %1490 = vmatprep.subr.mxu0 0.0
    %1491 = vmatpush1.msra.mxu0 0.0
    %1492 = vmatprep.subr.mxu0 0.0
    %1493 = vmatpush1.msra.mxu0 0.0
    %1494 = vmatprep.subr.mxu0 0.0
    %1495 = vmatpush1.msra.mxu0 0.0
    %1496 = vmatprep.subr.mxu0 0.0
    %1497 = vmatpush1.msra.mxu0 0.0
    %1498 = vmatprep.subr.mxu0 0.0
    %1499 = vmatpush1.msra.mxu0 0.0
    %1500 = vmatprep.subr.mxu0 0.0
    %1501 = vmatpush1.msra.mxu0 0.0
    %1502 = vmatprep.subr.mxu0 0.0
    %1503 = vmatpush1.msra.mxu0 0.0
    %1504 = vmatprep.subr.mxu0 0.0
    %1505 = vmatpush1.msra.mxu0 0.0
    %1506 = vmatprep.subr.mxu0 0.0
    %1507 = vmatpush1.msra.mxu0 0.0
    %1508 = vmatprep.subr.mxu0 0.0
    %1509 = vmatpush1.msra.mxu0 0.0
    %1510 = vmatprep.subr.mxu0 0.0
    %1511 = vmatpush1.msra.mxu0 0.0
    %1512 = vmatprep.subr.mxu0 0.0
    %1513 = vmatpush1.msra.mxu0 0.0
    %1514 = vmatprep.subr.mxu0 0.0
    %1515 = vmatpush1.msra.mxu0 0.0
    %1516 = vmatprep.subr.mxu0 0.0
    %1517 = vmatpush1.msra.mxu0 0.0
    %1518 = vmatprep.subr.mxu0 0.0
    %1519 = vmatpush1.msra.mxu0 0.0
    %1520 = vmatprep.subr.mxu0 0.0
    %1521 = vmatpush1.msra.mxu0 0.0
    %1522 = vmatprep.subr.mxu0 0.0
    %1523 = vmatpush1.msra.mxu0 0.0
    %1524 = vmatprep.subr.mxu0 0.0
    %1525 = vmatpush1.msra.mxu0 0.0
    %1526 = vmatprep.subr.mxu0 0.0
    %1527 = vmatpush1.msra.mxu0 0.0
    %1528 = vmatprep.subr.mxu0 0.0
    %1529 = vmatpush1.msra.mxu0 0.0
    %1530 = vmatprep.subr.mxu0 0.0
    %1531 = vmatpush1.msra.mxu0 0.0
    %1532 = vmatprep.subr.mxu0 0.0
    %1533 = vmatpush1.msra.mxu0 0.0
    %1534 = vmatprep.subr.mxu0 0.0
    %1535 = vmatpush1.msra.mxu0 0.0
    %1536 = vmatprep.subr.mxu0 0.0
    %1537 = vmatpush1.msra.mxu0 0.0
    %1538 = vmatprep.subr.mxu0 0.0
    %1539 = vmatpush1.msra.mxu0 0.0
    %1540 = vmatprep.subr.mxu0 0.0
    %1541 = vmatpush1.msra.mxu0 0.0
    %1542 = vmatprep.subr.mxu0 0.0
    %1543 = vmatpush1.msra.mxu0 0.0
    %1544 = vmatprep.mubr.f32.mxu0 0.0
    %1545 = vmatmul.mubr.f32.gmra.mrb[0].mxu0 %v1478
    %v1546 = vpop.f32.mrb[0].mxu0
    %v1547 = vadd.f32 0.0, %v1546
    %v1548 = vpop.f32.mrb[0].mxu0
    %1549 = vdwg.mxu0
    %v1551 = vrot.slane %v1547, 7
    %v1553 = vadd.f32 %v1113, %v1551
    %v1554 = vxor.u32 %v1553, 2147483648
    %v1555 = vmul.f32 %v1554, 1.442695
    %v1556 = vpow.pop %v1555
    %v1557 = vadd.f32 %v1556, 1.0
    %v1558 = vrcp.pop %v1557
    %v1559 = vmul.f32 1.0, %v1558
    %1560 = vmatprep.subr.mxu0 0.0
    %1561 = vmatpush1.msra.mxu0 %v1119
    %1562 = vmatprep.subr.mxu0 0.0
    %1563 = vmatpush1.msra.mxu0 %v1120
    %1564 = vmatprep.subr.mxu0 0.0
    %1565 = vmatpush1.msra.mxu0 %v1212
    %1566 = vmatprep.subr.mxu0 0.0
    %1567 = vmatpush1.msra.mxu0 0.0
    %1568 = vmatprep.subr.mxu0 0.0
    %1569 = vmatpush1.msra.mxu0 0.0
    %1570 = vmatprep.subr.mxu0 0.0
    %1571 = vmatpush1.msra.mxu0 0.0
    %1572 = vmatprep.subr.mxu0 0.0
    %1573 = vmatpush1.msra.mxu0 0.0
    %1574 = vmatprep.subr.mxu0 0.0
    %1575 = vmatpush1.msra.mxu0 0.0
    %1576 = vmatprep.subr.mxu0 0.0
    %1577 = vmatpush1.msra.mxu0 0.0
    %1578 = vmatprep.subr.mxu0 0.0
    %1579 = vmatpush1.msra.mxu0 0.0
    %1580 = vmatprep.subr.mxu0 0.0
    %1581 = vmatpush1.msra.mxu0 0.0
    %1582 = vmatprep.subr.mxu0 0.0
    %1583 = vmatpush1.msra.mxu0 0.0
    %1584 = vmatprep.subr.mxu0 0.0
    %1585 = vmatpush1.msra.mxu0 0.0
    %1586 = vmatprep.subr.mxu0 0.0
    %1587 = vmatpush1.msra.mxu0 0.0
    %1588 = vmatprep.subr.mxu0 0.0
    %1589 = vmatpush1.msra.mxu0 0.0
    %1590 = vmatprep.subr.mxu0 0.0
    %1591 = vmatpush1.msra.mxu0 0.0
    %1592 = vmatprep.subr.mxu0 0.0
    %1593 = vmatpush1.msra.mxu0 0.0
    %1594 = vmatprep.subr.mxu0 0.0
    %1595 = vmatpush1.msra.mxu0 0.0
    %1596 = vmatprep.subr.mxu0 0.0
    %1597 = vmatpush1.msra.mxu0 0.0
    %1598 = vmatprep.subr.mxu0 0.0
    %1599 = vmatpush1.msra.mxu0 0.0
    %1600 = vmatprep.subr.mxu0 0.0
    %1601 = vmatpush1.msra.mxu0 0.0
    %1602 = vmatprep.subr.mxu0 0.0
    %1603 = vmatpush1.msra.mxu0 0.0
    %1604 = vmatprep.subr.mxu0 0.0
    %1605 = vmatpush1.msra.mxu0 0.0
    %1606 = vmatprep.subr.mxu0 0.0
    %1607 = vmatpush1.msra.mxu0 0.0
    %1608 = vmatprep.subr.mxu0 0.0
    %1609 = vmatpush1.msra.mxu0 0.0
    %1610 = vmatprep.subr.mxu0 0.0
    %1611 = vmatpush1.msra.mxu0 0.0
    %1612 = vmatprep.subr.mxu0 0.0
    %1613 = vmatpush1.msra.mxu0 0.0
    %1614 = vmatprep.subr.mxu0 0.0
    %1615 = vmatpush1.msra.mxu0 0.0
    %1616 = vmatprep.subr.mxu0 0.0
    %1617 = vmatpush1.msra.mxu0 0.0
    %1618 = vmatprep.subr.mxu0 0.0
    %1619 = vmatpush1.msra.mxu0 0.0
    %1620 = vmatprep.subr.mxu0 0.0
    %1621 = vmatpush1.msra.mxu0 0.0
    %1622 = vmatprep.subr.mxu0 0.0
    %1623 = vmatpush1.msra.mxu0 0.0
    %1624 = vmatprep.mubr.f32.mxu0 0.0
    %1625 = vmatmul.mubr.f32.gmra.mrb[0].mxu0 %v1478
    %v1626 = vpop.f32.mrb[0].mxu0
    %v1627 = vadd.f32 0.0, %v1626
    %v1628 = vpop.f32.mrb[0].mxu0
    %1629 = vdwg.mxu0
    %v1631 = vrot.slane %v1627, 7
    %1632 = vrot.lane.b32.xlu0 %v1631, 20
    %v1633 = vpop.permute.xlu0 %1632
    %v1635 = vadd.f32 %v1113, %v1633
    %v1636 = vxor.u32 %v1635, 2147483648
    %v1637 = vmul.f32 %v1636, 1.442695
    %v1638 = vpow.pop %v1637
    %v1639 = vadd.f32 %v1638, 1.0
    %v1640 = vrcp.pop %v1639
    %v1641 = vmul.f32 1.0, %v1640
    %1642 = vmatprep.subr.mxu0 0.0
    %1643 = vmatpush1.msra.mxu0 %v1122
    %1644 = vmatprep.subr.mxu0 0.0
    %1645 = vmatpush1.msra.mxu0 %v1123
    %1646 = vmatprep.subr.mxu0 0.0
    %1647 = vmatpush1.msra.mxu0 %v1296
    %1648 = vmatprep.subr.mxu0 0.0
    %1649 = vmatpush1.msra.mxu0 0.0
    %1650 = vmatprep.subr.mxu0 0.0
    %1651 = vmatpush1.msra.mxu0 0.0
    %1652 = vmatprep.subr.mxu0 0.0
    %1653 = vmatpush1.msra.mxu0 0.0
    %1654 = vmatprep.subr.mxu0 0.0
    %1655 = vmatpush1.msra.mxu0 0.0
    %1656 = vmatprep.subr.mxu0 0.0
    %1657 = vmatpush1.msra.mxu0 0.0
    %1658 = vmatprep.subr.mxu0 0.0
    %1659 = vmatpush1.msra.mxu0 0.0
    %1660 = vmatprep.subr.mxu0 0.0
    %1661 = vmatpush1.msra.mxu0 0.0
    %1662 = vmatprep.subr.mxu0 0.0
    %1663 = vmatpush1.msra.mxu0 0.0
    %1664 = vmatprep.subr.mxu0 0.0
    %1665 = vmatpush1.msra.mxu0 0.0
    %1666 = vmatprep.subr.mxu0 0.0
    %1667 = vmatpush1.msra.mxu0 0.0
    %1668 = vmatprep.subr.mxu0 0.0
    %1669 = vmatpush1.msra.mxu0 0.0
    %1670 = vmatprep.subr.mxu0 0.0
    %1671 = vmatpush1.msra.mxu0 0.0
    %1672 = vmatprep.subr.mxu0 0.0
    %1673 = vmatpush1.msra.mxu0 0.0
    %1674 = vmatprep.subr.mxu0 0.0
    %1675 = vmatpush1.msra.mxu0 0.0
    %1676 = vmatprep.subr.mxu0 0.0
    %1677 = vmatpush1.msra.mxu0 0.0
    %1678 = vmatprep.subr.mxu0 0.0
    %1679 = vmatpush1.msra.mxu0 0.0
    %1680 = vmatprep.subr.mxu0 0.0
    %1681 = vmatpush1.msra.mxu0 0.0
    %1682 = vmatprep.subr.mxu0 0.0
    %1683 = vmatpush1.msra.mxu0 0.0
    %1684 = vmatprep.subr.mxu0 0.0
    %1685 = vmatpush1.msra.mxu0 0.0
    %1686 = vmatprep.subr.mxu0 0.0
    %1687 = vmatpush1.msra.mxu0 0.0
    %1688 = vmatprep.subr.mxu0 0.0
    %1689 = vmatpush1.msra.mxu0 0.0
    %1690 = vmatprep.subr.mxu0 0.0
    %1691 = vmatpush1.msra.mxu0 0.0
    %1692 = vmatprep.subr.mxu0 0.0
    %1693 = vmatpush1.msra.mxu0 0.0
    %1694 = vmatprep.subr.mxu0 0.0
    %1695 = vmatpush1.msra.mxu0 0.0
    %1696 = vmatprep.subr.mxu0 0.0
    %1697 = vmatpush1.msra.mxu0 0.0
    %1698 = vmatprep.subr.mxu0 0.0
    %1699 = vmatpush1.msra.mxu0 0.0
    %1700 = vmatprep.subr.mxu0 0.0
    %1701 = vmatpush1.msra.mxu0 0.0
    %1702 = vmatprep.subr.mxu0 0.0
    %1703 = vmatpush1.msra.mxu0 0.0
    %1704 = vmatprep.subr.mxu0 0.0
    %1705 = vmatpush1.msra.mxu0 0.0
    %1706 = vmatprep.mubr.f32.mxu0 0.0
    %1707 = vmatmul.mubr.f32.gmra.mrb[0].mxu0 %v1478
    %v1708 = vpop.f32.mrb[0].mxu0
    %v1709 = vadd.f32 0.0, %v1708
    %v1710 = vpop.f32.mrb[0].mxu0
    %1711 = vdwg.mxu0
    %v1713 = vrot.slane %v1709, 7
    %1714 = vrot.lane.b32.xlu0 %v1713, 40
    %v1715 = vpop.permute.xlu0 %1714
    %v1717 = vadd.f32 %v1113, %v1715
    %v1718 = vtanh.pop %v1717
    %1719 = vmatprep.subr.mxu0 0.0
    %1720 = vmatpush1.msra.mxu0 %v1125
    %1721 = vmatprep.subr.mxu0 0.0
    %1722 = vmatpush1.msra.mxu0 %v1126
    %1723 = vmatprep.subr.mxu0 0.0
    %1724 = vmatpush1.msra.mxu0 %v1375
    %1725 = vmatprep.subr.mxu0 0.0
    %1726 = vmatpush1.msra.mxu0 0.0
    %1727 = vmatprep.subr.mxu0 0.0
    %1728 = vmatpush1.msra.mxu0 0.0
    %1729 = vmatprep.subr.mxu0 0.0
    %1730 = vmatpush1.msra.mxu0 0.0
    %1731 = vmatprep.subr.mxu0 0.0
    %1732 = vmatpush1.msra.mxu0 0.0
    %1733 = vmatprep.subr.mxu0 0.0
    %1734 = vmatpush1.msra.mxu0 0.0
    %1735 = vmatprep.subr.mxu0 0.0
    %1736 = vmatpush1.msra.mxu0 0.0
    %1737 = vmatprep.subr.mxu0 0.0
    %1738 = vmatpush1.msra.mxu0 0.0
    %1739 = vmatprep.subr.mxu0 0.0
    %1740 = vmatpush1.msra.mxu0 0.0
    %1741 = vmatprep.subr.mxu0 0.0
    %1742 = vmatpush1.msra.mxu0 0.0
    %1743 = vmatprep.subr.mxu0 0.0
    %1744 = vmatpush1.msra.mxu0 0.0
    %1745 = vmatprep.subr.mxu0 0.0
    %1746 = vmatpush1.msra.mxu0 0.0
    %1747 = vmatprep.subr.mxu0 0.0
    %1748 = vmatpush1.msra.mxu0 0.0
    %1749 = vmatprep.subr.mxu0 0.0
    %1750 = vmatpush1.msra.mxu0 0.0
    %1751 = vmatprep.subr.mxu0 0.0
    %1752 = vmatpush1.msra.mxu0 0.0
    %1753 = vmatprep.subr.mxu0 0.0
    %1754 = vmatpush1.msra.mxu0 0.0
    %1755 = vmatprep.subr.mxu0 0.0
    %1756 = vmatpush1.msra.mxu0 0.0
    %1757 = vmatprep.subr.mxu0 0.0
    %1758 = vmatpush1.msra.mxu0 0.0
    %1759 = vmatprep.subr.mxu0 0.0
    %1760 = vmatpush1.msra.mxu0 0.0
    %1761 = vmatprep.subr.mxu0 0.0
    %1762 = vmatpush1.msra.mxu0 0.0
    %1763 = vmatprep.subr.mxu0 0.0
    %1764 = vmatpush1.msra.mxu0 0.0
    %1765 = vmatprep.subr.mxu0 0.0
    %1766 = vmatpush1.msra.mxu0 0.0
    %1767 = vmatprep.subr.mxu0 0.0
    %1768 = vmatpush1.msra.mxu0 0.0
    %1769 = vmatprep.subr.mxu0 0.0
    %1770 = vmatpush1.msra.mxu0 0.0
    %1771 = vmatprep.subr.mxu0 0.0
    %1772 = vmatpush1.msra.mxu0 0.0
    %1773 = vmatprep.subr.mxu0 0.0
    %1774 = vmatpush1.msra.mxu0 0.0
    %1775 = vmatprep.subr.mxu0 0.0
    %1776 = vmatpush1.msra.mxu0 0.0
    %1777 = vmatprep.subr.mxu0 0.0
    %1778 = vmatpush1.msra.mxu0 0.0
    %1779 = vmatprep.subr.mxu0 0.0
    %1780 = vmatpush1.msra.mxu0 0.0
    %1781 = vmatprep.subr.mxu0 0.0
    %1782 = vmatpush1.msra.mxu0 0.0
    %1783 = vmatprep.mubr.f32.mxu0 0.0
    %1784 = vmatmul.mubr.f32.gmra.mrb[0].mxu0 %v1478
    %v1785 = vpop.f32.mrb[0].mxu0
    %v1786 = vadd.f32 0.0, %v1785
    %v1787 = vpop.f32.mrb[0].mxu0
    %1788 = vdwg.mxu0
    %v1790 = vrot.slane %v1786, 7
    %1791 = vrot.lane.b32.xlu0 %v1790, 60
    %v1792 = vpop.permute.xlu0 %1791
    %v1794 = vadd.f32 %v1113, %v1792
    %v1795 = vxor.u32 %v1794, 2147483648
    %v1796 = vmul.f32 %v1795, 1.442695
    %v1797 = vpow.pop %v1796
    %v1798 = vadd.f32 %v1797, 1.0
    %v1799 = vrcp.pop %v1798
    %v1800 = vmul.f32 1.0, %v1799
    %v1802 = vrot.slane %v1468, 7
    %v1804 = vmul.f32 %v1641, %v1802
    %1806 = vrot.lane.b32.xlu0 %v1718, 88
    %v1807 = vpop.permute.xlu0 %1806
    %v1809 = vmul.f32 %v1559, %v1807
    %1811 = vrot.lane.b32.xlu0 %v1809, 20
    %v1812 = vpop.permute.xlu0 %1811
    %v1814 = vadd.f32 %v1804, %v1812
    %v1815 = vtanh.pop %v1814
    %1817 = vrot.lane.b32.xlu0 %v1815, 40
    %v1818 = vpop.permute.xlu0 %1817
    %v1820 = vmul.f32 %v1800, %v1818
    %v1822 = vrot.slane %v1820, 1
    %1823 = vrot.lane.b32.xlu0 %v1822, 68
    %v1824 = vpop.permute.xlu0 %1823
    %v1825 = vsel %vm693, %v1824, 0
    %1827 = vmatprep.subr.mxu0 0.0
    %1828 = vmatpush1.msra.mxu0 %v1116
    %1829 = vmatprep.subr.mxu0 0.0
    %1830 = vmatpush1.msra.mxu0 %v1117
    %1831 = vmatprep.subr.mxu0 0.0
    %1832 = vmatpush1.msra.mxu0 %v1132
    %1833 = vmatprep.subr.mxu0 0.0
    %1834 = vmatpush1.msra.mxu0 0.0
    %1835 = vmatprep.subr.mxu0 0.0
    %1836 = vmatpush1.msra.mxu0 0.0
    %1837 = vmatprep.subr.mxu0 0.0
    %1838 = vmatpush1.msra.mxu0 0.0
    %1839 = vmatprep.subr.mxu0 0.0
    %1840 = vmatpush1.msra.mxu0 0.0
    %1841 = vmatprep.subr.mxu0 0.0
    %1842 = vmatpush1.msra.mxu0 0.0
    %1843 = vmatprep.subr.mxu0 0.0
    %1844 = vmatpush1.msra.mxu0 0.0
    %1845 = vmatprep.subr.mxu0 0.0
    %1846 = vmatpush1.msra.mxu0 0.0
    %1847 = vmatprep.subr.mxu0 0.0
    %1848 = vmatpush1.msra.mxu0 0.0
    %1849 = vmatprep.subr.mxu0 0.0
    %1850 = vmatpush1.msra.mxu0 0.0
    %1851 = vmatprep.subr.mxu0 0.0
    %1852 = vmatpush1.msra.mxu0 0.0
    %1853 = vmatprep.subr.mxu0 0.0
    %1854 = vmatpush1.msra.mxu0 0.0
    %1855 = vmatprep.subr.mxu0 0.0
    %1856 = vmatpush1.msra.mxu0 0.0
    %1857 = vmatprep.subr.mxu0 0.0
    %1858 = vmatpush1.msra.mxu0 0.0
    %1859 = vmatprep.subr.mxu0 0.0
    %1860 = vmatpush1.msra.mxu0 0.0
    %1861 = vmatprep.subr.mxu0 0.0
    %1862 = vmatpush1.msra.mxu0 0.0
    %1863 = vmatprep.subr.mxu0 0.0
    %1864 = vmatpush1.msra.mxu0 0.0
    %1865 = vmatprep.subr.mxu0 0.0
    %1866 = vmatpush1.msra.mxu0 0.0
    %1867 = vmatprep.subr.mxu0 0.0
    %1868 = vmatpush1.msra.mxu0 0.0
    %1869 = vmatprep.subr.mxu0 0.0
    %1870 = vmatpush1.msra.mxu0 0.0
    %1871 = vmatprep.subr.mxu0 0.0
    %1872 = vmatpush1.msra.mxu0 0.0
    %1873 = vmatprep.subr.mxu0 0.0
    %1874 = vmatpush1.msra.mxu0 0.0
    %1875 = vmatprep.subr.mxu0 0.0
    %1876 = vmatpush1.msra.mxu0 0.0
    %1877 = vmatprep.subr.mxu0 0.0
    %1878 = vmatpush1.msra.mxu0 0.0
    %1879 = vmatprep.subr.mxu0 0.0
    %1880 = vmatpush1.msra.mxu0 0.0
    %1881 = vmatprep.subr.mxu0 0.0
    %1882 = vmatpush1.msra.mxu0 0.0
    %1883 = vmatprep.subr.mxu0 0.0
    %1884 = vmatpush1.msra.mxu0 0.0
    %1885 = vmatprep.subr.mxu0 0.0
    %1886 = vmatpush1.msra.mxu0 0.0
    %1887 = vmatprep.subr.mxu0 0.0
    %1888 = vmatpush1.msra.mxu0 0.0
    %1889 = vmatprep.subr.mxu0 0.0
    %1890 = vmatpush1.msra.mxu0 0.0
    %1891 = vmatprep.mubr.f32.mxu0 0.0
    %1892 = vmatmul.mubr.f32.gmra.mrb[0].mxu0 %v1825
    %v1893 = vpop.f32.mrb[0].mxu0
    %v1894 = vadd.f32 0.0, %v1893
    %v1895 = vpop.f32.mrb[0].mxu0
    %1896 = vdwg.mxu0
    %v1898 = vrot.slane %v1894, 6
    %v1900 = vadd.f32 %v1113, %v1898
    %v1901 = vxor.u32 %v1900, 2147483648
    %v1902 = vmul.f32 %v1901, 1.442695
    %v1903 = vpow.pop %v1902
    %v1904 = vadd.f32 %v1903, 1.0
    %v1905 = vrcp.pop %v1904
    %v1906 = vmul.f32 1.0, %v1905
    %1907 = vmatprep.subr.mxu0 0.0
    %1908 = vmatpush1.msra.mxu0 %v1119
    %1909 = vmatprep.subr.mxu0 0.0
    %1910 = vmatpush1.msra.mxu0 %v1120
    %1911 = vmatprep.subr.mxu0 0.0
    %1912 = vmatpush1.msra.mxu0 %v1212
    %1913 = vmatprep.subr.mxu0 0.0
    %1914 = vmatpush1.msra.mxu0 0.0
    %1915 = vmatprep.subr.mxu0 0.0
    %1916 = vmatpush1.msra.mxu0 0.0
    %1917 = vmatprep.subr.mxu0 0.0
    %1918 = vmatpush1.msra.mxu0 0.0
    %1919 = vmatprep.subr.mxu0 0.0
    %1920 = vmatpush1.msra.mxu0 0.0
    %1921 = vmatprep.subr.mxu0 0.0
    %1922 = vmatpush1.msra.mxu0 0.0
    %1923 = vmatprep.subr.mxu0 0.0
    %1924 = vmatpush1.msra.mxu0 0.0
    %1925 = vmatprep.subr.mxu0 0.0
    %1926 = vmatpush1.msra.mxu0 0.0
    %1927 = vmatprep.subr.mxu0 0.0
    %1928 = vmatpush1.msra.mxu0 0.0
    %1929 = vmatprep.subr.mxu0 0.0
    %1930 = vmatpush1.msra.mxu0 0.0
    %1931 = vmatprep.subr.mxu0 0.0
    %1932 = vmatpush1.msra.mxu0 0.0
    %1933 = vmatprep.subr.mxu0 0.0
    %1934 = vmatpush1.msra.mxu0 0.0
    %1935 = vmatprep.subr.mxu0 0.0
    %1936 = vmatpush1.msra.mxu0 0.0
    %1937 = vmatprep.subr.mxu0 0.0
    %1938 = vmatpush1.msra.mxu0 0.0
    %1939 = vmatprep.subr.mxu0 0.0
    %1940 = vmatpush1.msra.mxu0 0.0
    %1941 = vmatprep.subr.mxu0 0.0
    %1942 = vmatpush1.msra.mxu0 0.0
    %1943 = vmatprep.subr.mxu0 0.0
    %1944 = vmatpush1.msra.mxu0 0.0
    %1945 = vmatprep.subr.mxu0 0.0
    %1946 = vmatpush1.msra.mxu0 0.0
    %1947 = vmatprep.subr.mxu0 0.0
    %1948 = vmatpush1.msra.mxu0 0.0
    %1949 = vmatprep.subr.mxu0 0.0
    %1950 = vmatpush1.msra.mxu0 0.0
    %1951 = vmatprep.subr.mxu0 0.0
    %1952 = vmatpush1.msra.mxu0 0.0
    %1953 = vmatprep.subr.mxu0 0.0
    %1954 = vmatpush1.msra.mxu0 0.0
    %1955 = vmatprep.subr.mxu0 0.0
    %1956 = vmatpush1.msra.mxu0 0.0
    %1957 = vmatprep.subr.mxu0 0.0
    %1958 = vmatpush1.msra.mxu0 0.0
    %1959 = vmatprep.subr.mxu0 0.0
    %1960 = vmatpush1.msra.mxu0 0.0
    %1961 = vmatprep.subr.mxu0 0.0
    %1962 = vmatpush1.msra.mxu0 0.0
    %1963 = vmatprep.subr.mxu0 0.0
    %1964 = vmatpush1.msra.mxu0 0.0
    %1965 = vmatprep.subr.mxu0 0.0
    %1966 = vmatpush1.msra.mxu0 0.0
    %1967 = vmatprep.subr.mxu0 0.0
    %1968 = vmatpush1.msra.mxu0 0.0
    %1969 = vmatprep.subr.mxu0 0.0
    %1970 = vmatpush1.msra.mxu0 0.0
    %1971 = vmatprep.mubr.f32.mxu0 0.0
    %1972 = vmatmul.mubr.f32.gmra.mrb[0].mxu0 %v1825
    %v1973 = vpop.f32.mrb[0].mxu0
    %v1974 = vadd.f32 0.0, %v1973
    %v1975 = vpop.f32.mrb[0].mxu0
    %1976 = vdwg.mxu0
    %v1978 = vrot.slane %v1974, 6
    %1979 = vrot.lane.b32.xlu0 %v1978, 20
    %v1980 = vpop.permute.xlu0 %1979
    %v1982 = vadd.f32 %v1113, %v1980
    %v1983 = vxor.u32 %v1982, 2147483648
    %v1984 = vmul.f32 %v1983, 1.442695
    %v1985 = vpow.pop %v1984
    %v1986 = vadd.f32 %v1985, 1.0
    %v1987 = vrcp.pop %v1986
    %v1988 = vmul.f32 1.0, %v1987
    %1989 = vmatprep.subr.mxu0 0.0
    %1990 = vmatpush1.msra.mxu0 %v1122
    %1991 = vmatprep.subr.mxu0 0.0
    %1992 = vmatpush1.msra.mxu0 %v1123
    %1993 = vmatprep.subr.mxu0 0.0
    %1994 = vmatpush1.msra.mxu0 %v1296
    %1995 = vmatprep.subr.mxu0 0.0
    %1996 = vmatpush1.msra.mxu0 0.0
    %1997 = vmatprep.subr.mxu0 0.0
    %1998 = vmatpush1.msra.mxu0 0.0
    %1999 = vmatprep.subr.mxu0 0.0
    %2000 = vmatpush1.msra.mxu0 0.0
    %2001 = vmatprep.subr.mxu0 0.0
    %2002 = vmatpush1.msra.mxu0 0.0
    %2003 = vmatprep.subr.mxu0 0.0
    %2004 = vmatpush1.msra.mxu0 0.0
    %2005 = vmatprep.subr.mxu0 0.0
    %2006 = vmatpush1.msra.mxu0 0.0
    %2007 = vmatprep.subr.mxu0 0.0
    %2008 = vmatpush1.msra.mxu0 0.0
    %2009 = vmatprep.subr.mxu0 0.0
    %2010 = vmatpush1.msra.mxu0 0.0
    %2011 = vmatprep.subr.mxu0 0.0
    %2012 = vmatpush1.msra.mxu0 0.0
    %2013 = vmatprep.subr.mxu0 0.0
    %2014 = vmatpush1.msra.mxu0 0.0
    %2015 = vmatprep.subr.mxu0 0.0
    %2016 = vmatpush1.msra.mxu0 0.0
    %2017 = vmatprep.subr.mxu0 0.0
    %2018 = vmatpush1.msra.mxu0 0.0
    %2019 = vmatprep.subr.mxu0 0.0
    %2020 = vmatpush1.msra.mxu0 0.0
    %2021 = vmatprep.subr.mxu0 0.0
    %2022 = vmatpush1.msra.mxu0 0.0
    %2023 = vmatprep.subr.mxu0 0.0
    %2024 = vmatpush1.msra.mxu0 0.0
    %2025 = vmatprep.subr.mxu0 0.0
    %2026 = vmatpush1.msra.mxu0 0.0
    %2027 = vmatprep.subr.mxu0 0.0
    %2028 = vmatpush1.msra.mxu0 0.0
    %2029 = vmatprep.subr.mxu0 0.0
    %2030 = vmatpush1.msra.mxu0 0.0
    %2031 = vmatprep.subr.mxu0 0.0
    %2032 = vmatpush1.msra.mxu0 0.0
    %2033 = vmatprep.subr.mxu0 0.0
    %2034 = vmatpush1.msra.mxu0 0.0
    %2035 = vmatprep.subr.mxu0 0.0
    %2036 = vmatpush1.msra.mxu0 0.0
    %2037 = vmatprep.subr.mxu0 0.0
    %2038 = vmatpush1.msra.mxu0 0.0
    %2039 = vmatprep.subr.mxu0 0.0
    %2040 = vmatpush1.msra.mxu0 0.0
    %2041 = vmatprep.subr.mxu0 0.0
    %2042 = vmatpush1.msra.mxu0 0.0
    %2043 = vmatprep.subr.mxu0 0.0
    %2044 = vmatpush1.msra.mxu0 0.0
    %2045 = vmatprep.subr.mxu0 0.0
    %2046 = vmatpush1.msra.mxu0 0.0
    %2047 = vmatprep.subr.mxu0 0.0
    %2048 = vmatpush1.msra.mxu0 0.0
    %2049 = vmatprep.subr.mxu0 0.0
    %2050 = vmatpush1.msra.mxu0 0.0
    %2051 = vmatprep.subr.mxu0 0.0
    %2052 = vmatpush1.msra.mxu0 0.0
    %2053 = vmatprep.mubr.f32.mxu0 0.0
    %2054 = vmatmul.mubr.f32.gmra.mrb[0].mxu0 %v1825
    %v2055 = vpop.f32.mrb[0].mxu0
    %v2056 = vadd.f32 0.0, %v2055
    %v2057 = vpop.f32.mrb[0].mxu0
    %2058 = vdwg.mxu0
    %v2060 = vrot.slane %v2056, 6
    %2061 = vrot.lane.b32.xlu0 %v2060, 40
    %v2062 = vpop.permute.xlu0 %2061
    %v2064 = vadd.f32 %v1113, %v2062
    %v2065 = vtanh.pop %v2064
    %2066 = vmatprep.subr.mxu0 0.0
    %2067 = vmatpush1.msra.mxu0 %v1125
    %2068 = vmatprep.subr.mxu0 0.0
    %2069 = vmatpush1.msra.mxu0 %v1126
    %2070 = vmatprep.subr.mxu0 0.0
    %2071 = vmatpush1.msra.mxu0 %v1375
    %2072 = vmatprep.subr.mxu0 0.0
    %2073 = vmatpush1.msra.mxu0 0.0
    %2074 = vmatprep.subr.mxu0 0.0
    %2075 = vmatpush1.msra.mxu0 0.0
    %2076 = vmatprep.subr.mxu0 0.0
    %2077 = vmatpush1.msra.mxu0 0.0
    %2078 = vmatprep.subr.mxu0 0.0
    %2079 = vmatpush1.msra.mxu0 0.0
    %2080 = vmatprep.subr.mxu0 0.0
    %2081 = vmatpush1.msra.mxu0 0.0
    %2082 = vmatprep.subr.mxu0 0.0
    %2083 = vmatpush1.msra.mxu0 0.0
    %2084 = vmatprep.subr.mxu0 0.0
    %2085 = vmatpush1.msra.mxu0 0.0
    %2086 = vmatprep.subr.mxu0 0.0
    %2087 = vmatpush1.msra.mxu0 0.0
    %2088 = vmatprep.subr.mxu0 0.0
    %2089 = vmatpush1.msra.mxu0 0.0
    %2090 = vmatprep.subr.mxu0 0.0
    %2091 = vmatpush1.msra.mxu0 0.0
    %2092 = vmatprep.subr.mxu0 0.0
    %2093 = vmatpush1.msra.mxu0 0.0
    %2094 = vmatprep.subr.mxu0 0.0
    %2095 = vmatpush1.msra.mxu0 0.0
    %2096 = vmatprep.subr.mxu0 0.0
    %2097 = vmatpush1.msra.mxu0 0.0
    %2098 = vmatprep.subr.mxu0 0.0
    %2099 = vmatpush1.msra.mxu0 0.0
    %2100 = vmatprep.subr.mxu0 0.0
    %2101 = vmatpush1.msra.mxu0 0.0
    %2102 = vmatprep.subr.mxu0 0.0
    %2103 = vmatpush1.msra.mxu0 0.0
    %2104 = vmatprep.subr.mxu0 0.0
    %2105 = vmatpush1.msra.mxu0 0.0
    %2106 = vmatprep.subr.mxu0 0.0
    %2107 = vmatpush1.msra.mxu0 0.0
    %2108 = vmatprep.subr.mxu0 0.0
    %2109 = vmatpush1.msra.mxu0 0.0
    %2110 = vmatprep.subr.mxu0 0.0
    %2111 = vmatpush1.msra.mxu0 0.0
    %2112 = vmatprep.subr.mxu0 0.0
    %2113 = vmatpush1.msra.mxu0 0.0
    %2114 = vmatprep.subr.mxu0 0.0
    %2115 = vmatpush1.msra.mxu0 0.0
    %2116 = vmatprep.subr.mxu0 0.0
    %2117 = vmatpush1.msra.mxu0 0.0
    %2118 = vmatprep.subr.mxu0 0.0
    %2119 = vmatpush1.msra.mxu0 0.0
    %2120 = vmatprep.subr.mxu0 0.0
    %2121 = vmatpush1.msra.mxu0 0.0
    %2122 = vmatprep.subr.mxu0 0.0
    %2123 = vmatpush1.msra.mxu0 0.0
    %2124 = vmatprep.subr.mxu0 0.0
    %2125 = vmatpush1.msra.mxu0 0.0
    %2126 = vmatprep.subr.mxu0 0.0
    %2127 = vmatpush1.msra.mxu0 0.0
    %2128 = vmatprep.subr.mxu0 0.0
    %2129 = vmatpush1.msra.mxu0 0.0
    %2130 = vmatprep.mubr.f32.mxu0 0.0
    %2131 = vmatmul.mubr.f32.gmra.mrb[0].mxu0 %v1825
    %v2132 = vpop.f32.mrb[0].mxu0
    %v2133 = vadd.f32 0.0, %v2132
    %v2134 = vpop.f32.mrb[0].mxu0
    %2135 = vdwg.mxu0
    %v2137 = vrot.slane %v2133, 6
    %2138 = vrot.lane.b32.xlu0 %v2137, 60
    %v2139 = vpop.permute.xlu0 %2138
    %v2141 = vadd.f32 %v1113, %v2139
    %v2142 = vxor.u32 %v2141, 2147483648
    %v2143 = vmul.f32 %v2142, 1.442695
    %v2144 = vpow.pop %v2143
    %v2145 = vadd.f32 %v2144, 1.0
    %v2146 = vrcp.pop %v2145
    %v2147 = vmul.f32 1.0, %v2146
    %v2149 = vrot.slane %v1814, 7
    %v2151 = vmul.f32 %v1988, %v2149
    %2153 = vrot.lane.b32.xlu0 %v2065, 88
    %v2154 = vpop.permute.xlu0 %2153
    %v2156 = vmul.f32 %v1906, %v2154
    %2158 = vrot.lane.b32.xlu0 %v2156, 20
    %v2159 = vpop.permute.xlu0 %2158
    %v2161 = vadd.f32 %v2151, %v2159
    %v2162 = vtanh.pop %v2161
    %2164 = vrot.lane.b32.xlu0 %v2162, 40
    %v2165 = vpop.permute.xlu0 %2164
    %v2167 = vmul.f32 %v2147, %v2165
    %v2169 = vrot.slane %v2167, 2
    %2170 = vrot.lane.b32.xlu0 %v2169, 68
    %v2171 = vpop.permute.xlu0 %2170
    %v2172 = vsel %vm693, %v2171, 0
    %2174 = vmatprep.subr.mxu0 0.0
    %2175 = vmatpush1.msra.mxu0 %v1116
    %2176 = vmatprep.subr.mxu0 0.0
    %2177 = vmatpush1.msra.mxu0 %v1117
    %2178 = vmatprep.subr.mxu0 0.0
    %2179 = vmatpush1.msra.mxu0 %v1132
    %2180 = vmatprep.subr.mxu0 0.0
    %2181 = vmatpush1.msra.mxu0 0.0
    %2182 = vmatprep.subr.mxu0 0.0
    %2183 = vmatpush1.msra.mxu0 0.0
    %2184 = vmatprep.subr.mxu0 0.0
    %2185 = vmatpush1.msra.mxu0 0.0
    %2186 = vmatprep.subr.mxu0 0.0
    %2187 = vmatpush1.msra.mxu0 0.0
    %2188 = vmatprep.subr.mxu0 0.0
    %2189 = vmatpush1.msra.mxu0 0.0
    %2190 = vmatprep.subr.mxu0 0.0
    %2191 = vmatpush1.msra.mxu0 0.0
    %2192 = vmatprep.subr.mxu0 0.0
    %2193 = vmatpush1.msra.mxu0 0.0
    %2194 = vmatprep.subr.mxu0 0.0
    %2195 = vmatpush1.msra.mxu0 0.0
    %2196 = vmatprep.subr.mxu0 0.0
    %2197 = vmatpush1.msra.mxu0 0.0
    %2198 = vmatprep.subr.mxu0 0.0
    %2199 = vmatpush1.msra.mxu0 0.0
    %2200 = vmatprep.subr.mxu0 0.0
    %2201 = vmatpush1.msra.mxu0 0.0
    %2202 = vmatprep.subr.mxu0 0.0
    %2203 = vmatpush1.msra.mxu0 0.0
    %2204 = vmatprep.subr.mxu0 0.0
    %2205 = vmatpush1.msra.mxu0 0.0
    %2206 = vmatprep.subr.mxu0 0.0
    %2207 = vmatpush1.msra.mxu0 0.0
    %2208 = vmatprep.subr.mxu0 0.0
    %2209 = vmatpush1.msra.mxu0 0.0
    %2210 = vmatprep.subr.mxu0 0.0
    %2211 = vmatpush1.msra.mxu0 0.0
    %2212 = vmatprep.subr.mxu0 0.0
    %2213 = vmatpush1.msra.mxu0 0.0
    %2214 = vmatprep.subr.mxu0 0.0
    %2215 = vmatpush1.msra.mxu0 0.0
    %2216 = vmatprep.subr.mxu0 0.0
    %2217 = vmatpush1.msra.mxu0 0.0
    %2218 = vmatprep.subr.mxu0 0.0
    %2219 = vmatpush1.msra.mxu0 0.0
    %2220 = vmatprep.subr.mxu0 0.0
    %2221 = vmatpush1.msra.mxu0 0.0
    %2222 = vmatprep.subr.mxu0 0.0
    %2223 = vmatpush1.msra.mxu0 0.0
    %2224 = vmatprep.subr.mxu0 0.0
    %2225 = vmatpush1.msra.mxu0 0.0
    %2226 = vmatprep.subr.mxu0 0.0
    %2227 = vmatpush1.msra.mxu0 0.0
    %2228 = vmatprep.subr.mxu0 0.0
    %2229 = vmatpush1.msra.mxu0 0.0
    %2230 = vmatprep.subr.mxu0 0.0
    %2231 = vmatpush1.msra.mxu0 0.0
    %2232 = vmatprep.subr.mxu0 0.0
    %2233 = vmatpush1.msra.mxu0 0.0
    %2234 = vmatprep.subr.mxu0 0.0
    %2235 = vmatpush1.msra.mxu0 0.0
    %2236 = vmatprep.subr.mxu0 0.0
    %2237 = vmatpush1.msra.mxu0 0.0
    %2238 = vmatprep.mubr.f32.mxu0 0.0
    %2239 = vmatmul.mubr.f32.gmra.mrb[0].mxu0 %v2172
    %v2240 = vpop.f32.mrb[0].mxu0
    %v2241 = vadd.f32 0.0, %v2240
    %v2242 = vpop.f32.mrb[0].mxu0
    %2243 = vdwg.mxu0
    %v2245 = vrot.slane %v2241, 5
    %v2247 = vadd.f32 %v1113, %v2245
    %v2248 = vxor.u32 %v2247, 2147483648
    %v2249 = vmul.f32 %v2248, 1.442695
    %v2250 = vpow.pop %v2249
    %v2251 = vadd.f32 %v2250, 1.0
    %v2252 = vrcp.pop %v2251
    %v2253 = vmul.f32 1.0, %v2252
    %2254 = vmatprep.subr.mxu0 0.0
    %2255 = vmatpush1.msra.mxu0 %v1119
    %2256 = vmatprep.subr.mxu0 0.0
    %2257 = vmatpush1.msra.mxu0 %v1120
    %2258 = vmatprep.subr.mxu0 0.0
    %2259 = vmatpush1.msra.mxu0 %v1212
    %2260 = vmatprep.subr.mxu0 0.0
    %2261 = vmatpush1.msra.mxu0 0.0
    %2262 = vmatprep.subr.mxu0 0.0
    %2263 = vmatpush1.msra.mxu0 0.0
    %2264 = vmatprep.subr.mxu0 0.0
    %2265 = vmatpush1.msra.mxu0 0.0
    %2266 = vmatprep.subr.mxu0 0.0
    %2267 = vmatpush1.msra.mxu0 0.0
    %2268 = vmatprep.subr.mxu0 0.0
    %2269 = vmatpush1.msra.mxu0 0.0
    %2270 = vmatprep.subr.mxu0 0.0
    %2271 = vmatpush1.msra.mxu0 0.0
    %2272 = vmatprep.subr.mxu0 0.0
    %2273 = vmatpush1.msra.mxu0 0.0
    %2274 = vmatprep.subr.mxu0 0.0
    %2275 = vmatpush1.msra.mxu0 0.0
    %2276 = vmatprep.subr.mxu0 0.0
    %2277 = vmatpush1.msra.mxu0 0.0
    %2278 = vmatprep.subr.mxu0 0.0
    %2279 = vmatpush1.msra.mxu0 0.0
    %2280 = vmatprep.subr.mxu0 0.0
    %2281 = vmatpush1.msra.mxu0 0.0
    %2282 = vmatprep.subr.mxu0 0.0
    %2283 = vmatpush1.msra.mxu0 0.0
    %2284 = vmatprep.subr.mxu0 0.0
    %2285 = vmatpush1.msra.mxu0 0.0
    %2286 = vmatprep.subr.mxu0 0.0
    %2287 = vmatpush1.msra.mxu0 0.0
    %2288 = vmatprep.subr.mxu0 0.0
    %2289 = vmatpush1.msra.mxu0 0.0
    %2290 = vmatprep.subr.mxu0 0.0
    %2291 = vmatpush1.msra.mxu0 0.0
    %2292 = vmatprep.subr.mxu0 0.0
    %2293 = vmatpush1.msra.mxu0 0.0
    %2294 = vmatprep.subr.mxu0 0.0
    %2295 = vmatpush1.msra.mxu0 0.0
    %2296 = vmatprep.subr.mxu0 0.0
    %2297 = vmatpush1.msra.mxu0 0.0
    %2298 = vmatprep.subr.mxu0 0.0
    %2299 = vmatpush1.msra.mxu0 0.0
    %2300 = vmatprep.subr.mxu0 0.0
    %2301 = vmatpush1.msra.mxu0 0.0
    %2302 = vmatprep.subr.mxu0 0.0
    %2303 = vmatpush1.msra.mxu0 0.0
    %2304 = vmatprep.subr.mxu0 0.0
    %2305 = vmatpush1.msra.mxu0 0.0
    %2306 = vmatprep.subr.mxu0 0.0
    %2307 = vmatpush1.msra.mxu0 0.0
    %2308 = vmatprep.subr.mxu0 0.0
    %2309 = vmatpush1.msra.mxu0 0.0
    %2310 = vmatprep.subr.mxu0 0.0
    %2311 = vmatpush1.msra.mxu0 0.0
    %2312 = vmatprep.subr.mxu0 0.0
    %2313 = vmatpush1.msra.mxu0 0.0
    %2314 = vmatprep.subr.mxu0 0.0
    %2315 = vmatpush1.msra.mxu0 0.0
    %2316 = vmatprep.subr.mxu0 0.0
    %2317 = vmatpush1.msra.mxu0 0.0
    %2318 = vmatprep.mubr.f32.mxu0 0.0
    %2319 = vmatmul.mubr.f32.gmra.mrb[0].mxu0 %v2172
    %v2320 = vpop.f32.mrb[0].mxu0
    %v2321 = vadd.f32 0.0, %v2320
    %v2322 = vpop.f32.mrb[0].mxu0
    %2323 = vdwg.mxu0
    %v2325 = vrot.slane %v2321, 5
    %2326 = vrot.lane.b32.xlu0 %v2325, 20
    %v2327 = vpop.permute.xlu0 %2326
    %v2329 = vadd.f32 %v1113, %v2327
    %v2330 = vxor.u32 %v2329, 2147483648
    %v2331 = vmul.f32 %v2330, 1.442695
    %v2332 = vpow.pop %v2331
    %v2333 = vadd.f32 %v2332, 1.0
    %v2334 = vrcp.pop %v2333
    %v2335 = vmul.f32 1.0, %v2334
    %2336 = vmatprep.subr.mxu0 0.0
    %2337 = vmatpush1.msra.mxu0 %v1122
    %2338 = vmatprep.subr.mxu0 0.0
    %2339 = vmatpush1.msra.mxu0 %v1123
    %2340 = vmatprep.subr.mxu0 0.0
    %2341 = vmatpush1.msra.mxu0 %v1296
    %2342 = vmatprep.subr.mxu0 0.0
    %2343 = vmatpush1.msra.mxu0 0.0
    %2344 = vmatprep.subr.mxu0 0.0
    %2345 = vmatpush1.msra.mxu0 0.0
    %2346 = vmatprep.subr.mxu0 0.0
    %2347 = vmatpush1.msra.mxu0 0.0
    %2348 = vmatprep.subr.mxu0 0.0
    %2349 = vmatpush1.msra.mxu0 0.0
    %2350 = vmatprep.subr.mxu0 0.0
    %2351 = vmatpush1.msra.mxu0 0.0
    %2352 = vmatprep.subr.mxu0 0.0
    %2353 = vmatpush1.msra.mxu0 0.0
    %2354 = vmatprep.subr.mxu0 0.0
    %2355 = vmatpush1.msra.mxu0 0.0
    %2356 = vmatprep.subr.mxu0 0.0
    %2357 = vmatpush1.msra.mxu0 0.0
    %2358 = vmatprep.subr.mxu0 0.0
    %2359 = vmatpush1.msra.mxu0 0.0
    %2360 = vmatprep.subr.mxu0 0.0
    %2361 = vmatpush1.msra.mxu0 0.0
    %2362 = vmatprep.subr.mxu0 0.0
    %2363 = vmatpush1.msra.mxu0 0.0
    %2364 = vmatprep.subr.mxu0 0.0
    %2365 = vmatpush1.msra.mxu0 0.0
    %2366 = vmatprep.subr.mxu0 0.0
    %2367 = vmatpush1.msra.mxu0 0.0
    %2368 = vmatprep.subr.mxu0 0.0
    %2369 = vmatpush1.msra.mxu0 0.0
    %2370 = vmatprep.subr.mxu0 0.0
    %2371 = vmatpush1.msra.mxu0 0.0
    %2372 = vmatprep.subr.mxu0 0.0
    %2373 = vmatpush1.msra.mxu0 0.0
    %2374 = vmatprep.subr.mxu0 0.0
    %2375 = vmatpush1.msra.mxu0 0.0
    %2376 = vmatprep.subr.mxu0 0.0
    %2377 = vmatpush1.msra.mxu0 0.0
    %2378 = vmatprep.subr.mxu0 0.0
    %2379 = vmatpush1.msra.mxu0 0.0
    %2380 = vmatprep.subr.mxu0 0.0
    %2381 = vmatpush1.msra.mxu0 0.0
    %2382 = vmatprep.subr.mxu0 0.0
    %2383 = vmatpush1.msra.mxu0 0.0
    %2384 = vmatprep.subr.mxu0 0.0
    %2385 = vmatpush1.msra.mxu0 0.0
    %2386 = vmatprep.subr.mxu0 0.0
    %2387 = vmatpush1.msra.mxu0 0.0
    %2388 = vmatprep.subr.mxu0 0.0
    %2389 = vmatpush1.msra.mxu0 0.0
    %2390 = vmatprep.subr.mxu0 0.0
    %2391 = vmatpush1.msra.mxu0 0.0
    %2392 = vmatprep.subr.mxu0 0.0
    %2393 = vmatpush1.msra.mxu0 0.0
    %2394 = vmatprep.subr.mxu0 0.0
    %2395 = vmatpush1.msra.mxu0 0.0
    %2396 = vmatprep.subr.mxu0 0.0
    %2397 = vmatpush1.msra.mxu0 0.0
    %2398 = vmatprep.subr.mxu0 0.0
    %2399 = vmatpush1.msra.mxu0 0.0
    %2400 = vmatprep.mubr.f32.mxu0 0.0
    %2401 = vmatmul.mubr.f32.gmra.mrb[0].mxu0 %v2172
    %v2402 = vpop.f32.mrb[0].mxu0
    %v2403 = vadd.f32 0.0, %v2402
    %v2404 = vpop.f32.mrb[0].mxu0
    %2405 = vdwg.mxu0
    %v2407 = vrot.slane %v2403, 5
    %2408 = vrot.lane.b32.xlu0 %v2407, 40
    %v2409 = vpop.permute.xlu0 %2408
    %v2411 = vadd.f32 %v1113, %v2409
    %v2412 = vtanh.pop %v2411
    %2413 = vmatprep.subr.mxu0 0.0
    %2414 = vmatpush1.msra.mxu0 %v1125
    %2415 = vmatprep.subr.mxu0 0.0
    %2416 = vmatpush1.msra.mxu0 %v1126
    %2417 = vmatprep.subr.mxu0 0.0
    %2418 = vmatpush1.msra.mxu0 %v1375
    %2419 = vmatprep.subr.mxu0 0.0
    %2420 = vmatpush1.msra.mxu0 0.0
    %2421 = vmatprep.subr.mxu0 0.0
    %2422 = vmatpush1.msra.mxu0 0.0
    %2423 = vmatprep.subr.mxu0 0.0
    %2424 = vmatpush1.msra.mxu0 0.0
    %2425 = vmatprep.subr.mxu0 0.0
    %2426 = vmatpush1.msra.mxu0 0.0
    %2427 = vmatprep.subr.mxu0 0.0
    %2428 = vmatpush1.msra.mxu0 0.0
    %2429 = vmatprep.subr.mxu0 0.0
    %2430 = vmatpush1.msra.mxu0 0.0
    %2431 = vmatprep.subr.mxu0 0.0
    %2432 = vmatpush1.msra.mxu0 0.0
    %2433 = vmatprep.subr.mxu0 0.0
    %2434 = vmatpush1.msra.mxu0 0.0
    %2435 = vmatprep.subr.mxu0 0.0
    %2436 = vmatpush1.msra.mxu0 0.0
    %2437 = vmatprep.subr.mxu0 0.0
    %2438 = vmatpush1.msra.mxu0 0.0
    %2439 = vmatprep.subr.mxu0 0.0
    %2440 = vmatpush1.msra.mxu0 0.0
    %2441 = vmatprep.subr.mxu0 0.0
    %2442 = vmatpush1.msra.mxu0 0.0
    %2443 = vmatprep.subr.mxu0 0.0
    %2444 = vmatpush1.msra.mxu0 0.0
    %2445 = vmatprep.subr.mxu0 0.0
    %2446 = vmatpush1.msra.mxu0 0.0
    %2447 = vmatprep.subr.mxu0 0.0
    %2448 = vmatpush1.msra.mxu0 0.0
    %2449 = vmatprep.subr.mxu0 0.0
    %2450 = vmatpush1.msra.mxu0 0.0
    %2451 = vmatprep.subr.mxu0 0.0
    %2452 = vmatpush1.msra.mxu0 0.0
    %2453 = vmatprep.subr.mxu0 0.0
    %2454 = vmatpush1.msra.mxu0 0.0
    %2455 = vmatprep.subr.mxu0 0.0
    %2456 = vmatpush1.msra.mxu0 0.0
    %2457 = vmatprep.subr.mxu0 0.0
    %2458 = vmatpush1.msra.mxu0 0.0
    %2459 = vmatprep.subr.mxu0 0.0
    %2460 = vmatpush1.msra.mxu0 0.0
    %2461 = vmatprep.subr.mxu0 0.0
    %2462 = vmatpush1.msra.mxu0 0.0
    %2463 = vmatprep.subr.mxu0 0.0
    %2464 = vmatpush1.msra.mxu0 0.0
    %2465 = vmatprep.subr.mxu0 0.0
    %2466 = vmatpush1.msra.mxu0 0.0
    %2467 = vmatprep.subr.mxu0 0.0
    %2468 = vmatpush1.msra.mxu0 0.0
    %2469 = vmatprep.subr.mxu0 0.0
    %2470 = vmatpush1.msra.mxu0 0.0
    %2471 = vmatprep.subr.mxu0 0.0
    %2472 = vmatpush1.msra.mxu0 0.0
    %2473 = vmatprep.subr.mxu0 0.0
    %2474 = vmatpush1.msra.mxu0 0.0
    %2475 = vmatprep.subr.mxu0 0.0
    %2476 = vmatpush1.msra.mxu0 0.0
    %2477 = vmatprep.mubr.f32.mxu0 0.0
    %2478 = vmatmul.mubr.f32.gmra.mrb[0].mxu0 %v2172
    %v2479 = vpop.f32.mrb[0].mxu0
    %v2480 = vadd.f32 0.0, %v2479
    %v2481 = vpop.f32.mrb[0].mxu0
    %2482 = vdwg.mxu0
    %v2484 = vrot.slane %v2480, 5
    %2485 = vrot.lane.b32.xlu0 %v2484, 60
    %v2486 = vpop.permute.xlu0 %2485
    %v2488 = vadd.f32 %v1113, %v2486
    %v2489 = vxor.u32 %v2488, 2147483648
    %v2490 = vmul.f32 %v2489, 1.442695
    %v2491 = vpow.pop %v2490
    %v2492 = vadd.f32 %v2491, 1.0
    %v2493 = vrcp.pop %v2492
    %v2494 = vmul.f32 1.0, %v2493
    %v2496 = vrot.slane %v2161, 7
    %v2498 = vmul.f32 %v2335, %v2496
    %2500 = vrot.lane.b32.xlu0 %v2412, 88
    %v2501 = vpop.permute.xlu0 %2500
    %v2503 = vmul.f32 %v2253, %v2501
    %2505 = vrot.lane.b32.xlu0 %v2503, 20
    %v2506 = vpop.permute.xlu0 %2505
    %v2508 = vadd.f32 %v2498, %v2506
    %v2509 = vtanh.pop %v2508
    %2511 = vrot.lane.b32.xlu0 %v2509, 40
    %v2512 = vpop.permute.xlu0 %2511
    %v2514 = vmul.f32 %v2494, %v2512
    %v2516 = vrot.slane %v2514, 3
    %2517 = vrot.lane.b32.xlu0 %v2516, 68
    %v2518 = vpop.permute.xlu0 %2517
    %v2519 = vsel %vm693, %v2518, 0
    %2521 = vmatprep.subr.mxu0 0.0
    %2522 = vmatpush1.msra.mxu0 %v1116
    %2523 = vmatprep.subr.mxu0 0.0
    %2524 = vmatpush1.msra.mxu0 %v1117
    %2525 = vmatprep.subr.mxu0 0.0
    %2526 = vmatpush1.msra.mxu0 %v1132
    %2527 = vmatprep.subr.mxu0 0.0
    %2528 = vmatpush1.msra.mxu0 0.0
    %2529 = vmatprep.subr.mxu0 0.0
    %2530 = vmatpush1.msra.mxu0 0.0
    %2531 = vmatprep.subr.mxu0 0.0
    %2532 = vmatpush1.msra.mxu0 0.0
    %2533 = vmatprep.subr.mxu0 0.0
    %2534 = vmatpush1.msra.mxu0 0.0
    %2535 = vmatprep.subr.mxu0 0.0
    %2536 = vmatpush1.msra.mxu0 0.0
    %2537 = vmatprep.subr.mxu0 0.0
    %2538 = vmatpush1.msra.mxu0 0.0
    %2539 = vmatprep.subr.mxu0 0.0
    %2540 = vmatpush1.msra.mxu0 0.0
    %2541 = vmatprep.subr.mxu0 0.0
    %2542 = vmatpush1.msra.mxu0 0.0
    %2543 = vmatprep.subr.mxu0 0.0
    %2544 = vmatpush1.msra.mxu0 0.0
    %2545 = vmatprep.subr.mxu0 0.0
    %2546 = vmatpush1.msra.mxu0 0.0
    %2547 = vmatprep.subr.mxu0 0.0
    %2548 = vmatpush1.msra.mxu0 0.0
    %2549 = vmatprep.subr.mxu0 0.0
    %2550 = vmatpush1.msra.mxu0 0.0
    %2551 = vmatprep.subr.mxu0 0.0
    %2552 = vmatpush1.msra.mxu0 0.0
    %2553 = vmatprep.subr.mxu0 0.0
    %2554 = vmatpush1.msra.mxu0 0.0
    %2555 = vmatprep.subr.mxu0 0.0
    %2556 = vmatpush1.msra.mxu0 0.0
    %2557 = vmatprep.subr.mxu0 0.0
    %2558 = vmatpush1.msra.mxu0 0.0
    %2559 = vmatprep.subr.mxu0 0.0
    %2560 = vmatpush1.msra.mxu0 0.0
    %2561 = vmatprep.subr.mxu0 0.0
    %2562 = vmatpush1.msra.mxu0 0.0
    %2563 = vmatprep.subr.mxu0 0.0
    %2564 = vmatpush1.msra.mxu0 0.0
    %2565 = vmatprep.subr.mxu0 0.0
    %2566 = vmatpush1.msra.mxu0 0.0
    %2567 = vmatprep.subr.mxu0 0.0
    %2568 = vmatpush1.msra.mxu0 0.0
    %2569 = vmatprep.subr.mxu0 0.0
    %2570 = vmatpush1.msra.mxu0 0.0
    %2571 = vmatprep.subr.mxu0 0.0
    %2572 = vmatpush1.msra.mxu0 0.0
    %2573 = vmatprep.subr.mxu0 0.0
    %2574 = vmatpush1.msra.mxu0 0.0
    %2575 = vmatprep.subr.mxu0 0.0
    %2576 = vmatpush1.msra.mxu0 0.0
    %2577 = vmatprep.subr.mxu0 0.0
    %2578 = vmatpush1.msra.mxu0 0.0
    %2579 = vmatprep.subr.mxu0 0.0
    %2580 = vmatpush1.msra.mxu0 0.0
    %2581 = vmatprep.subr.mxu0 0.0
    %2582 = vmatpush1.msra.mxu0 0.0
    %2583 = vmatprep.subr.mxu0 0.0
    %2584 = vmatpush1.msra.mxu0 0.0
    %2585 = vmatprep.mubr.f32.mxu0 0.0
    %2586 = vmatmul.mubr.f32.gmra.mrb[0].mxu0 %v2519
    %v2587 = vpop.f32.mrb[0].mxu0
    %v2588 = vadd.f32 0.0, %v2587
    %v2589 = vpop.f32.mrb[0].mxu0
    %2590 = vdwg.mxu0
    %v2592 = vrot.slane %v2588, 4
    %v2594 = vadd.f32 %v1113, %v2592
    %v2595 = vxor.u32 %v2594, 2147483648
    %v2596 = vmul.f32 %v2595, 1.442695
    %v2597 = vpow.pop %v2596
    %v2598 = vadd.f32 %v2597, 1.0
    %v2599 = vrcp.pop %v2598
    %v2600 = vmul.f32 1.0, %v2599
    %2601 = vmatprep.subr.mxu0 0.0
    %2602 = vmatpush1.msra.mxu0 %v1119
    %2603 = vmatprep.subr.mxu0 0.0
    %2604 = vmatpush1.msra.mxu0 %v1120
    %2605 = vmatprep.subr.mxu0 0.0
    %2606 = vmatpush1.msra.mxu0 %v1212
    %2607 = vmatprep.subr.mxu0 0.0
    %2608 = vmatpush1.msra.mxu0 0.0
    %2609 = vmatprep.subr.mxu0 0.0
    %2610 = vmatpush1.msra.mxu0 0.0
    %2611 = vmatprep.subr.mxu0 0.0
    %2612 = vmatpush1.msra.mxu0 0.0
    %2613 = vmatprep.subr.mxu0 0.0
    %2614 = vmatpush1.msra.mxu0 0.0
    %2615 = vmatprep.subr.mxu0 0.0
    %2616 = vmatpush1.msra.mxu0 0.0
    %2617 = vmatprep.subr.mxu0 0.0
    %2618 = vmatpush1.msra.mxu0 0.0
    %2619 = vmatprep.subr.mxu0 0.0
    %2620 = vmatpush1.msra.mxu0 0.0
    %2621 = vmatprep.subr.mxu0 0.0
    %2622 = vmatpush1.msra.mxu0 0.0
    %2623 = vmatprep.subr.mxu0 0.0
    %2624 = vmatpush1.msra.mxu0 0.0
    %2625 = vmatprep.subr.mxu0 0.0
    %2626 = vmatpush1.msra.mxu0 0.0
    %2627 = vmatprep.subr.mxu0 0.0
    %2628 = vmatpush1.msra.mxu0 0.0
    %2629 = vmatprep.subr.mxu0 0.0
    %2630 = vmatpush1.msra.mxu0 0.0
    %2631 = vmatprep.subr.mxu0 0.0
    %2632 = vmatpush1.msra.mxu0 0.0
    %2633 = vmatprep.subr.mxu0 0.0
    %2634 = vmatpush1.msra.mxu0 0.0
    %2635 = vmatprep.subr.mxu0 0.0
    %2636 = vmatpush1.msra.mxu0 0.0
    %2637 = vmatprep.subr.mxu0 0.0
    %2638 = vmatpush1.msra.mxu0 0.0
    %2639 = vmatprep.subr.mxu0 0.0
    %2640 = vmatpush1.msra.mxu0 0.0
    %2641 = vmatprep.subr.mxu0 0.0
    %2642 = vmatpush1.msra.mxu0 0.0
    %2643 = vmatprep.subr.mxu0 0.0
    %2644 = vmatpush1.msra.mxu0 0.0
    %2645 = vmatprep.subr.mxu0 0.0
    %2646 = vmatpush1.msra.mxu0 0.0
    %2647 = vmatprep.subr.mxu0 0.0
    %2648 = vmatpush1.msra.mxu0 0.0
    %2649 = vmatprep.subr.mxu0 0.0
    %2650 = vmatpush1.msra.mxu0 0.0
    %2651 = vmatprep.subr.mxu0 0.0
    %2652 = vmatpush1.msra.mxu0 0.0
    %2653 = vmatprep.subr.mxu0 0.0
    %2654 = vmatpush1.msra.mxu0 0.0
    %2655 = vmatprep.subr.mxu0 0.0
    %2656 = vmatpush1.msra.mxu0 0.0
    %2657 = vmatprep.subr.mxu0 0.0
    %2658 = vmatpush1.msra.mxu0 0.0
    %2659 = vmatprep.subr.mxu0 0.0
    %2660 = vmatpush1.msra.mxu0 0.0
    %2661 = vmatprep.subr.mxu0 0.0
    %2662 = vmatpush1.msra.mxu0 0.0
    %2663 = vmatprep.subr.mxu0 0.0
    %2664 = vmatpush1.msra.mxu0 0.0
    %2665 = vmatprep.mubr.f32.mxu0 0.0
    %2666 = vmatmul.mubr.f32.gmra.mrb[0].mxu0 %v2519
    %v2667 = vpop.f32.mrb[0].mxu0
    %v2668 = vadd.f32 0.0, %v2667
    %v2669 = vpop.f32.mrb[0].mxu0
    %2670 = vdwg.mxu0
    %v2672 = vrot.slane %v2668, 4
    %2673 = vrot.lane.b32.xlu0 %v2672, 20
    %v2674 = vpop.permute.xlu0 %2673
    %v2676 = vadd.f32 %v1113, %v2674
    %v2677 = vxor.u32 %v2676, 2147483648
    %v2678 = vmul.f32 %v2677, 1.442695
    %v2679 = vpow.pop %v2678
    %v2680 = vadd.f32 %v2679, 1.0
    %v2681 = vrcp.pop %v2680
    %v2682 = vmul.f32 1.0, %v2681
    %2683 = vmatprep.subr.mxu0 0.0
    %2684 = vmatpush1.msra.mxu0 %v1122
    %2685 = vmatprep.subr.mxu0 0.0
    %2686 = vmatpush1.msra.mxu0 %v1123
    %2687 = vmatprep.subr.mxu0 0.0
    %2688 = vmatpush1.msra.mxu0 %v1296
    %2689 = vmatprep.subr.mxu0 0.0
    %2690 = vmatpush1.msra.mxu0 0.0
    %2691 = vmatprep.subr.mxu0 0.0
    %2692 = vmatpush1.msra.mxu0 0.0
    %2693 = vmatprep.subr.mxu0 0.0
    %2694 = vmatpush1.msra.mxu0 0.0
    %2695 = vmatprep.subr.mxu0 0.0
    %2696 = vmatpush1.msra.mxu0 0.0
    %2697 = vmatprep.subr.mxu0 0.0
    %2698 = vmatpush1.msra.mxu0 0.0
    %2699 = vmatprep.subr.mxu0 0.0
    %2700 = vmatpush1.msra.mxu0 0.0
    %2701 = vmatprep.subr.mxu0 0.0
    %2702 = vmatpush1.msra.mxu0 0.0
    %2703 = vmatprep.subr.mxu0 0.0
    %2704 = vmatpush1.msra.mxu0 0.0
    %2705 = vmatprep.subr.mxu0 0.0
    %2706 = vmatpush1.msra.mxu0 0.0
    %2707 = vmatprep.subr.mxu0 0.0
    %2708 = vmatpush1.msra.mxu0 0.0
    %2709 = vmatprep.subr.mxu0 0.0
    %2710 = vmatpush1.msra.mxu0 0.0
    %2711 = vmatprep.subr.mxu0 0.0
    %2712 = vmatpush1.msra.mxu0 0.0
    %2713 = vmatprep.subr.mxu0 0.0
    %2714 = vmatpush1.msra.mxu0 0.0
    %2715 = vmatprep.subr.mxu0 0.0
    %2716 = vmatpush1.msra.mxu0 0.0
    %2717 = vmatprep.subr.mxu0 0.0
    %2718 = vmatpush1.msra.mxu0 0.0
    %2719 = vmatprep.subr.mxu0 0.0
    %2720 = vmatpush1.msra.mxu0 0.0
    %2721 = vmatprep.subr.mxu0 0.0
    %2722 = vmatpush1.msra.mxu0 0.0
    %2723 = vmatprep.subr.mxu0 0.0
    %2724 = vmatpush1.msra.mxu0 0.0
    %2725 = vmatprep.subr.mxu0 0.0
    %2726 = vmatpush1.msra.mxu0 0.0
    %2727 = vmatprep.subr.mxu0 0.0
    %2728 = vmatpush1.msra.mxu0 0.0
    %2729 = vmatprep.subr.mxu0 0.0
    %2730 = vmatpush1.msra.mxu0 0.0
    %2731 = vmatprep.subr.mxu0 0.0
    %2732 = vmatpush1.msra.mxu0 0.0
    %2733 = vmatprep.subr.mxu0 0.0
    %2734 = vmatpush1.msra.mxu0 0.0
    %2735 = vmatprep.subr.mxu0 0.0
    %2736 = vmatpush1.msra.mxu0 0.0
    %2737 = vmatprep.subr.mxu0 0.0
    %2738 = vmatpush1.msra.mxu0 0.0
    %2739 = vmatprep.subr.mxu0 0.0
    %2740 = vmatpush1.msra.mxu0 0.0
    %2741 = vmatprep.subr.mxu0 0.0
    %2742 = vmatpush1.msra.mxu0 0.0
    %2743 = vmatprep.subr.mxu0 0.0
    %2744 = vmatpush1.msra.mxu0 0.0
    %2745 = vmatprep.subr.mxu0 0.0
    %2746 = vmatpush1.msra.mxu0 0.0
    %2747 = vmatprep.mubr.f32.mxu0 0.0
    %2748 = vmatmul.mubr.f32.gmra.mrb[0].mxu0 %v2519
    %v2749 = vpop.f32.mrb[0].mxu0
    %v2750 = vadd.f32 0.0, %v2749
    %v2751 = vpop.f32.mrb[0].mxu0
    %2752 = vdwg.mxu0
    %v2754 = vrot.slane %v2750, 4
    %2755 = vrot.lane.b32.xlu0 %v2754, 40
    %v2756 = vpop.permute.xlu0 %2755
    %v2758 = vadd.f32 %v1113, %v2756
    %v2759 = vtanh.pop %v2758
    %2760 = vmatprep.subr.mxu0 0.0
    %2761 = vmatpush1.msra.mxu0 %v1125
    %2762 = vmatprep.subr.mxu0 0.0
    %2763 = vmatpush1.msra.mxu0 %v1126
    %2764 = vmatprep.subr.mxu0 0.0
    %2765 = vmatpush1.msra.mxu0 %v1375
    %2766 = vmatprep.subr.mxu0 0.0
    %2767 = vmatpush1.msra.mxu0 0.0
    %2768 = vmatprep.subr.mxu0 0.0
    %2769 = vmatpush1.msra.mxu0 0.0
    %2770 = vmatprep.subr.mxu0 0.0
    %2771 = vmatpush1.msra.mxu0 0.0
    %2772 = vmatprep.subr.mxu0 0.0
    %2773 = vmatpush1.msra.mxu0 0.0
    %2774 = vmatprep.subr.mxu0 0.0
    %2775 = vmatpush1.msra.mxu0 0.0
    %2776 = vmatprep.subr.mxu0 0.0
    %2777 = vmatpush1.msra.mxu0 0.0
    %2778 = vmatprep.subr.mxu0 0.0
    %2779 = vmatpush1.msra.mxu0 0.0
    %2780 = vmatprep.subr.mxu0 0.0
    %2781 = vmatpush1.msra.mxu0 0.0
    %2782 = vmatprep.subr.mxu0 0.0
    %2783 = vmatpush1.msra.mxu0 0.0
    %2784 = vmatprep.subr.mxu0 0.0
    %2785 = vmatpush1.msra.mxu0 0.0
    %2786 = vmatprep.subr.mxu0 0.0
    %2787 = vmatpush1.msra.mxu0 0.0
    %2788 = vmatprep.subr.mxu0 0.0
    %2789 = vmatpush1.msra.mxu0 0.0
    %2790 = vmatprep.subr.mxu0 0.0
    %2791 = vmatpush1.msra.mxu0 0.0
    %2792 = vmatprep.subr.mxu0 0.0
    %2793 = vmatpush1.msra.mxu0 0.0
    %2794 = vmatprep.subr.mxu0 0.0
    %2795 = vmatpush1.msra.mxu0 0.0
    %2796 = vmatprep.subr.mxu0 0.0
    %2797 = vmatpush1.msra.mxu0 0.0
    %2798 = vmatprep.subr.mxu0 0.0
    %2799 = vmatpush1.msra.mxu0 0.0
    %2800 = vmatprep.subr.mxu0 0.0
    %2801 = vmatpush1.msra.mxu0 0.0
    %2802 = vmatprep.subr.mxu0 0.0
    %2803 = vmatpush1.msra.mxu0 0.0
    %2804 = vmatprep.subr.mxu0 0.0
    %2805 = vmatpush1.msra.mxu0 0.0
    %2806 = vmatprep.subr.mxu0 0.0
    %2807 = vmatpush1.msra.mxu0 0.0
    %2808 = vmatprep.subr.mxu0 0.0
    %2809 = vmatpush1.msra.mxu0 0.0
    %2810 = vmatprep.subr.mxu0 0.0
    %2811 = vmatpush1.msra.mxu0 0.0
    %2812 = vmatprep.subr.mxu0 0.0
    %2813 = vmatpush1.msra.mxu0 0.0
    %2814 = vmatprep.subr.mxu0 0.0
    %2815 = vmatpush1.msra.mxu0 0.0
    %2816 = vmatprep.subr.mxu0 0.0
    %2817 = vmatpush1.msra.mxu0 0.0
    %2818 = vmatprep.subr.mxu0 0.0
    %2819 = vmatpush1.msra.mxu0 0.0
    %2820 = vmatprep.subr.mxu0 0.0
    %2821 = vmatpush1.msra.mxu0 0.0
    %2822 = vmatprep.subr.mxu0 0.0
    %2823 = vmatpush1.msra.mxu0 0.0
    %2824 = vmatprep.mubr.f32.mxu0 0.0
    %2825 = vmatmul.mubr.f32.gmra.mrb[0].mxu0 %v2519
    %v2826 = vpop.f32.mrb[0].mxu0
    %v2827 = vadd.f32 0.0, %v2826
    %v2828 = vpop.f32.mrb[0].mxu0
    %2829 = vdwg.mxu0
    %v2831 = vrot.slane %v2827, 4
    %2832 = vrot.lane.b32.xlu0 %v2831, 60
    %v2833 = vpop.permute.xlu0 %2832
    %v2835 = vadd.f32 %v1113, %v2833
    %v2836 = vxor.u32 %v2835, 2147483648
    %v2837 = vmul.f32 %v2836, 1.442695
    %v2838 = vpow.pop %v2837
    %v2839 = vadd.f32 %v2838, 1.0
    %v2840 = vrcp.pop %v2839
    %v2841 = vmul.f32 1.0, %v2840
    %v2843 = vrot.slane %v2508, 7
    %v2845 = vmul.f32 %v2682, %v2843
    %2847 = vrot.lane.b32.xlu0 %v2759, 88
    %v2848 = vpop.permute.xlu0 %2847
    %v2850 = vmul.f32 %v2600, %v2848
    %2852 = vrot.lane.b32.xlu0 %v2850, 20
    %v2853 = vpop.permute.xlu0 %2852
    %v2855 = vadd.f32 %v2845, %v2853
    %v2856 = vtanh.pop %v2855
    %2858 = vrot.lane.b32.xlu0 %v2856, 40
    %v2859 = vpop.permute.xlu0 %2858
    %v2861 = vmul.f32 %v2841, %v2859
    %v2863 = vrot.slane %v2861, 4
    %2864 = vrot.lane.b32.xlu0 %v2863, 68
    %v2865 = vpop.permute.xlu0 %2864
    %v2866 = vsel %vm693, %v2865, 0
    %2868 = vmatprep.subr.mxu0 0.0
    %2869 = vmatpush1.msra.mxu0 %v1116
    %2870 = vmatprep.subr.mxu0 0.0
    %2871 = vmatpush1.msra.mxu0 %v1117
    %2872 = vmatprep.subr.mxu0 0.0
    %2873 = vmatpush1.msra.mxu0 %v1132
    %2874 = vmatprep.subr.mxu0 0.0
    %2875 = vmatpush1.msra.mxu0 0.0
    %2876 = vmatprep.subr.mxu0 0.0
    %2877 = vmatpush1.msra.mxu0 0.0
    %2878 = vmatprep.subr.mxu0 0.0
    %2879 = vmatpush1.msra.mxu0 0.0
    %2880 = vmatprep.subr.mxu0 0.0
    %2881 = vmatpush1.msra.mxu0 0.0
    %2882 = vmatprep.subr.mxu0 0.0
    %2883 = vmatpush1.msra.mxu0 0.0
    %2884 = vmatprep.subr.mxu0 0.0
    %2885 = vmatpush1.msra.mxu0 0.0
    %2886 = vmatprep.subr.mxu0 0.0
    %2887 = vmatpush1.msra.mxu0 0.0
    %2888 = vmatprep.subr.mxu0 0.0
    %2889 = vmatpush1.msra.mxu0 0.0
    %2890 = vmatprep.subr.mxu0 0.0
    %2891 = vmatpush1.msra.mxu0 0.0
    %2892 = vmatprep.subr.mxu0 0.0
    %2893 = vmatpush1.msra.mxu0 0.0
    %2894 = vmatprep.subr.mxu0 0.0
    %2895 = vmatpush1.msra.mxu0 0.0
    %2896 = vmatprep.subr.mxu0 0.0
    %2897 = vmatpush1.msra.mxu0 0.0
    %2898 = vmatprep.subr.mxu0 0.0
    %2899 = vmatpush1.msra.mxu0 0.0
    %2900 = vmatprep.subr.mxu0 0.0
    %2901 = vmatpush1.msra.mxu0 0.0
    %2902 = vmatprep.subr.mxu0 0.0
    %2903 = vmatpush1.msra.mxu0 0.0
    %2904 = vmatprep.subr.mxu0 0.0
    %2905 = vmatpush1.msra.mxu0 0.0
    %2906 = vmatprep.subr.mxu0 0.0
    %2907 = vmatpush1.msra.mxu0 0.0
    %2908 = vmatprep.subr.mxu0 0.0
    %2909 = vmatpush1.msra.mxu0 0.0
    %2910 = vmatprep.subr.mxu0 0.0
    %2911 = vmatpush1.msra.mxu0 0.0
    %2912 = vmatprep.subr.mxu0 0.0
    %2913 = vmatpush1.msra.mxu0 0.0
    %2914 = vmatprep.subr.mxu0 0.0
    %2915 = vmatpush1.msra.mxu0 0.0
    %2916 = vmatprep.subr.mxu0 0.0
    %2917 = vmatpush1.msra.mxu0 0.0
    %2918 = vmatprep.subr.mxu0 0.0
    %2919 = vmatpush1.msra.mxu0 0.0
    %2920 = vmatprep.subr.mxu0 0.0
    %2921 = vmatpush1.msra.mxu0 0.0
    %2922 = vmatprep.subr.mxu0 0.0
    %2923 = vmatpush1.msra.mxu0 0.0
    %2924 = vmatprep.subr.mxu0 0.0
    %2925 = vmatpush1.msra.mxu0 0.0
    %2926 = vmatprep.subr.mxu0 0.0
    %2927 = vmatpush1.msra.mxu0 0.0
    %2928 = vmatprep.subr.mxu0 0.0
    %2929 = vmatpush1.msra.mxu0 0.0
    %2930 = vmatprep.subr.mxu0 0.0
    %2931 = vmatpush1.msra.mxu0 0.0
    %2932 = vmatprep.mubr.f32.mxu0 0.0
    %2933 = vmatmul.mubr.f32.gmra.mrb[0].mxu0 %v2866
    %v2934 = vpop.f32.mrb[0].mxu0
    %v2935 = vadd.f32 0.0, %v2934
    %v2936 = vpop.f32.mrb[0].mxu0
    %2937 = vdwg.mxu0
    %v2939 = vrot.slane %v2935, 3
    %v2941 = vadd.f32 %v1113, %v2939
    %v2942 = vxor.u32 %v2941, 2147483648
    %v2943 = vmul.f32 %v2942, 1.442695
    %v2944 = vpow.pop %v2943
    %v2945 = vadd.f32 %v2944, 1.0
    %v2946 = vrcp.pop %v2945
    %v2947 = vmul.f32 1.0, %v2946
    %2948 = vmatprep.subr.mxu0 0.0
    %2949 = vmatpush1.msra.mxu0 %v1119
    %2950 = vmatprep.subr.mxu0 0.0
    %2951 = vmatpush1.msra.mxu0 %v1120
    %2952 = vmatprep.subr.mxu0 0.0
    %2953 = vmatpush1.msra.mxu0 %v1212
    %2954 = vmatprep.subr.mxu0 0.0
    %2955 = vmatpush1.msra.mxu0 0.0
    %2956 = vmatprep.subr.mxu0 0.0
    %2957 = vmatpush1.msra.mxu0 0.0
    %2958 = vmatprep.subr.mxu0 0.0
    %2959 = vmatpush1.msra.mxu0 0.0
    %2960 = vmatprep.subr.mxu0 0.0
    %2961 = vmatpush1.msra.mxu0 0.0
    %2962 = vmatprep.subr.mxu0 0.0
    %2963 = vmatpush1.msra.mxu0 0.0
    %2964 = vmatprep.subr.mxu0 0.0
    %2965 = vmatpush1.msra.mxu0 0.0
    %2966 = vmatprep.subr.mxu0 0.0
    %2967 = vmatpush1.msra.mxu0 0.0
    %2968 = vmatprep.subr.mxu0 0.0
    %2969 = vmatpush1.msra.mxu0 0.0
    %2970 = vmatprep.subr.mxu0 0.0
    %2971 = vmatpush1.msra.mxu0 0.0
    %2972 = vmatprep.subr.mxu0 0.0
    %2973 = vmatpush1.msra.mxu0 0.0
    %2974 = vmatprep.subr.mxu0 0.0
    %2975 = vmatpush1.msra.mxu0 0.0
    %2976 = vmatprep.subr.mxu0 0.0
    %2977 = vmatpush1.msra.mxu0 0.0
    %2978 = vmatprep.subr.mxu0 0.0
    %2979 = vmatpush1.msra.mxu0 0.0
    %2980 = vmatprep.subr.mxu0 0.0
    %2981 = vmatpush1.msra.mxu0 0.0
    %2982 = vmatprep.subr.mxu0 0.0
    %2983 = vmatpush1.msra.mxu0 0.0
    %2984 = vmatprep.subr.mxu0 0.0
    %2985 = vmatpush1.msra.mxu0 0.0
    %2986 = vmatprep.subr.mxu0 0.0
    %2987 = vmatpush1.msra.mxu0 0.0
    %2988 = vmatprep.subr.mxu0 0.0
    %2989 = vmatpush1.msra.mxu0 0.0
    %2990 = vmatprep.subr.mxu0 0.0
    %2991 = vmatpush1.msra.mxu0 0.0
    %2992 = vmatprep.subr.mxu0 0.0
    %2993 = vmatpush1.msra.mxu0 0.0
    %2994 = vmatprep.subr.mxu0 0.0
    %2995 = vmatpush1.msra.mxu0 0.0
    %2996 = vmatprep.subr.mxu0 0.0
    %2997 = vmatpush1.msra.mxu0 0.0
    %2998 = vmatprep.subr.mxu0 0.0
    %2999 = vmatpush1.msra.mxu0 0.0
    %3000 = vmatprep.subr.mxu0 0.0
    %3001 = vmatpush1.msra.mxu0 0.0
    %3002 = vmatprep.subr.mxu0 0.0
    %3003 = vmatpush1.msra.mxu0 0.0
    %3004 = vmatprep.subr.mxu0 0.0
    %3005 = vmatpush1.msra.mxu0 0.0
    %3006 = vmatprep.subr.mxu0 0.0
    %3007 = vmatpush1.msra.mxu0 0.0
    %3008 = vmatprep.subr.mxu0 0.0
    %3009 = vmatpush1.msra.mxu0 0.0
    %3010 = vmatprep.subr.mxu0 0.0
    %3011 = vmatpush1.msra.mxu0 0.0
    %3012 = vmatprep.mubr.f32.mxu0 0.0
    %3013 = vmatmul.mubr.f32.gmra.mrb[0].mxu0 %v2866
    %v3014 = vpop.f32.mrb[0].mxu0
    %v3015 = vadd.f32 0.0, %v3014
    %v3016 = vpop.f32.mrb[0].mxu0
    %3017 = vdwg.mxu0
    %v3019 = vrot.slane %v3015, 3
    %3020 = vrot.lane.b32.xlu0 %v3019, 20
    %v3021 = vpop.permute.xlu0 %3020
    %v3023 = vadd.f32 %v1113, %v3021
    %v3024 = vxor.u32 %v3023, 2147483648
    %v3025 = vmul.f32 %v3024, 1.442695
    %v3026 = vpow.pop %v3025
    %v3027 = vadd.f32 %v3026, 1.0
    %v3028 = vrcp.pop %v3027
    %v3029 = vmul.f32 1.0, %v3028
    %3030 = vmatprep.subr.mxu0 0.0
    %3031 = vmatpush1.msra.mxu0 %v1122
    %3032 = vmatprep.subr.mxu0 0.0
    %3033 = vmatpush1.msra.mxu0 %v1123
    %3034 = vmatprep.subr.mxu0 0.0
    %3035 = vmatpush1.msra.mxu0 %v1296
    %3036 = vmatprep.subr.mxu0 0.0
    %3037 = vmatpush1.msra.mxu0 0.0
    %3038 = vmatprep.subr.mxu0 0.0
    %3039 = vmatpush1.msra.mxu0 0.0
    %3040 = vmatprep.subr.mxu0 0.0
    %3041 = vmatpush1.msra.mxu0 0.0
    %3042 = vmatprep.subr.mxu0 0.0
    %3043 = vmatpush1.msra.mxu0 0.0
    %3044 = vmatprep.subr.mxu0 0.0
    %3045 = vmatpush1.msra.mxu0 0.0
    %3046 = vmatprep.subr.mxu0 0.0
    %3047 = vmatpush1.msra.mxu0 0.0
    %3048 = vmatprep.subr.mxu0 0.0
    %3049 = vmatpush1.msra.mxu0 0.0
    %3050 = vmatprep.subr.mxu0 0.0
    %3051 = vmatpush1.msra.mxu0 0.0
    %3052 = vmatprep.subr.mxu0 0.0
    %3053 = vmatpush1.msra.mxu0 0.0
    %3054 = vmatprep.subr.mxu0 0.0
    %3055 = vmatpush1.msra.mxu0 0.0
    %3056 = vmatprep.subr.mxu0 0.0
    %3057 = vmatpush1.msra.mxu0 0.0
    %3058 = vmatprep.subr.mxu0 0.0
    %3059 = vmatpush1.msra.mxu0 0.0
    %3060 = vmatprep.subr.mxu0 0.0
    %3061 = vmatpush1.msra.mxu0 0.0
    %3062 = vmatprep.subr.mxu0 0.0
    %3063 = vmatpush1.msra.mxu0 0.0
    %3064 = vmatprep.subr.mxu0 0.0
    %3065 = vmatpush1.msra.mxu0 0.0
    %3066 = vmatprep.subr.mxu0 0.0
    %3067 = vmatpush1.msra.mxu0 0.0
    %3068 = vmatprep.subr.mxu0 0.0
    %3069 = vmatpush1.msra.mxu0 0.0
    %3070 = vmatprep.subr.mxu0 0.0
    %3071 = vmatpush1.msra.mxu0 0.0
    %3072 = vmatprep.subr.mxu0 0.0
    %3073 = vmatpush1.msra.mxu0 0.0
    %3074 = vmatprep.subr.mxu0 0.0
    %3075 = vmatpush1.msra.mxu0 0.0
    %3076 = vmatprep.subr.mxu0 0.0
    %3077 = vmatpush1.msra.mxu0 0.0
    %3078 = vmatprep.subr.mxu0 0.0
    %3079 = vmatpush1.msra.mxu0 0.0
    %3080 = vmatprep.subr.mxu0 0.0
    %3081 = vmatpush1.msra.mxu0 0.0
    %3082 = vmatprep.subr.mxu0 0.0
    %3083 = vmatpush1.msra.mxu0 0.0
    %3084 = vmatprep.subr.mxu0 0.0
    %3085 = vmatpush1.msra.mxu0 0.0
    %3086 = vmatprep.subr.mxu0 0.0
    %3087 = vmatpush1.msra.mxu0 0.0
    %3088 = vmatprep.subr.mxu0 0.0
    %3089 = vmatpush1.msra.mxu0 0.0
    %3090 = vmatprep.subr.mxu0 0.0
    %3091 = vmatpush1.msra.mxu0 0.0
    %3092 = vmatprep.subr.mxu0 0.0
    %3093 = vmatpush1.msra.mxu0 0.0
    %3094 = vmatprep.mubr.f32.mxu0 0.0
    %3095 = vmatmul.mubr.f32.gmra.mrb[0].mxu0 %v2866
    %v3096 = vpop.f32.mrb[0].mxu0
    %v3097 = vadd.f32 0.0, %v3096
    %v3098 = vpop.f32.mrb[0].mxu0
    %3099 = vdwg.mxu0
    %v3101 = vrot.slane %v3097, 3
    %3102 = vrot.lane.b32.xlu0 %v3101, 40
    %v3103 = vpop.permute.xlu0 %3102
    %v3105 = vadd.f32 %v1113, %v3103
    %v3106 = vtanh.pop %v3105
    %3107 = vmatprep.subr.mxu0 0.0
    %3108 = vmatpush1.msra.mxu0 %v1125
    %3109 = vmatprep.subr.mxu0 0.0
    %3110 = vmatpush1.msra.mxu0 %v1126
    %3111 = vmatprep.subr.mxu0 0.0
    %3112 = vmatpush1.msra.mxu0 %v1375
    %3113 = vmatprep.subr.mxu0 0.0
    %3114 = vmatpush1.msra.mxu0 0.0
    %3115 = vmatprep.subr.mxu0 0.0
    %3116 = vmatpush1.msra.mxu0 0.0
    %3117 = vmatprep.subr.mxu0 0.0
    %3118 = vmatpush1.msra.mxu0 0.0
    %3119 = vmatprep.subr.mxu0 0.0
    %3120 = vmatpush1.msra.mxu0 0.0
    %3121 = vmatprep.subr.mxu0 0.0
    %3122 = vmatpush1.msra.mxu0 0.0
    %3123 = vmatprep.subr.mxu0 0.0
    %3124 = vmatpush1.msra.mxu0 0.0
    %3125 = vmatprep.subr.mxu0 0.0
    %3126 = vmatpush1.msra.mxu0 0.0
    %3127 = vmatprep.subr.mxu0 0.0
    %3128 = vmatpush1.msra.mxu0 0.0
    %3129 = vmatprep.subr.mxu0 0.0
    %3130 = vmatpush1.msra.mxu0 0.0
    %3131 = vmatprep.subr.mxu0 0.0
    %3132 = vmatpush1.msra.mxu0 0.0
    %3133 = vmatprep.subr.mxu0 0.0
    %3134 = vmatpush1.msra.mxu0 0.0
    %3135 = vmatprep.subr.mxu0 0.0
    %3136 = vmatpush1.msra.mxu0 0.0
    %3137 = vmatprep.subr.mxu0 0.0
    %3138 = vmatpush1.msra.mxu0 0.0
    %3139 = vmatprep.subr.mxu0 0.0
    %3140 = vmatpush1.msra.mxu0 0.0
    %3141 = vmatprep.subr.mxu0 0.0
    %3142 = vmatpush1.msra.mxu0 0.0
    %3143 = vmatprep.subr.mxu0 0.0
    %3144 = vmatpush1.msra.mxu0 0.0
    %3145 = vmatprep.subr.mxu0 0.0
    %3146 = vmatpush1.msra.mxu0 0.0
    %3147 = vmatprep.subr.mxu0 0.0
    %3148 = vmatpush1.msra.mxu0 0.0
    %3149 = vmatprep.subr.mxu0 0.0
    %3150 = vmatpush1.msra.mxu0 0.0
    %3151 = vmatprep.subr.mxu0 0.0
    %3152 = vmatpush1.msra.mxu0 0.0
    %3153 = vmatprep.subr.mxu0 0.0
    %3154 = vmatpush1.msra.mxu0 0.0
    %3155 = vmatprep.subr.mxu0 0.0
    %3156 = vmatpush1.msra.mxu0 0.0
    %3157 = vmatprep.subr.mxu0 0.0
    %3158 = vmatpush1.msra.mxu0 0.0
    %3159 = vmatprep.subr.mxu0 0.0
    %3160 = vmatpush1.msra.mxu0 0.0
    %3161 = vmatprep.subr.mxu0 0.0
    %3162 = vmatpush1.msra.mxu0 0.0
    %3163 = vmatprep.subr.mxu0 0.0
    %3164 = vmatpush1.msra.mxu0 0.0
    %3165 = vmatprep.subr.mxu0 0.0
    %3166 = vmatpush1.msra.mxu0 0.0
    %3167 = vmatprep.subr.mxu0 0.0
    %3168 = vmatpush1.msra.mxu0 0.0
    %3169 = vmatprep.subr.mxu0 0.0
    %3170 = vmatpush1.msra.mxu0 0.0
    %3171 = vmatprep.mubr.f32.mxu0 0.0
    %3172 = vmatmul.mubr.f32.gmra.mrb[0].mxu0 %v2866
    %v3173 = vpop.f32.mrb[0].mxu0
    %v3174 = vadd.f32 0.0, %v3173
    %v3175 = vpop.f32.mrb[0].mxu0
    %3176 = vdwg.mxu0
    %v3178 = vrot.slane %v3174, 3
    %3179 = vrot.lane.b32.xlu0 %v3178, 60
    %v3180 = vpop.permute.xlu0 %3179
    %v3182 = vadd.f32 %v1113, %v3180
    %v3183 = vxor.u32 %v3182, 2147483648
    %v3184 = vmul.f32 %v3183, 1.442695
    %v3185 = vpow.pop %v3184
    %v3186 = vadd.f32 %v3185, 1.0
    %v3187 = vrcp.pop %v3186
    %v3188 = vmul.f32 1.0, %v3187
    %v3190 = vrot.slane %v2855, 7
    %v3192 = vmul.f32 %v3029, %v3190
    %3194 = vrot.lane.b32.xlu0 %v3106, 88
    %v3195 = vpop.permute.xlu0 %3194
    %v3197 = vmul.f32 %v2947, %v3195
    %3199 = vrot.lane.b32.xlu0 %v3197, 20
    %v3200 = vpop.permute.xlu0 %3199
    %v3202 = vadd.f32 %v3192, %v3200
    %v3203 = vtanh.pop %v3202
    %3205 = vrot.lane.b32.xlu0 %v3203, 40
    %v3206 = vpop.permute.xlu0 %3205
    %v3208 = vmul.f32 %v3188, %v3206
    %v3210 = vrot.slane %v3208, 5
    %3211 = vrot.lane.b32.xlu0 %v3210, 68
    %v3212 = vpop.permute.xlu0 %3211
    %v3213 = vsel %vm693, %v3212, 0
    %3215 = vmatprep.subr.mxu0 0.0
    %3216 = vmatpush1.msra.mxu0 %v1116
    %3217 = vmatprep.subr.mxu0 0.0
    %3218 = vmatpush1.msra.mxu0 %v1117
    %3219 = vmatprep.subr.mxu0 0.0
    %3220 = vmatpush1.msra.mxu0 %v1132
    %3221 = vmatprep.subr.mxu0 0.0
    %3222 = vmatpush1.msra.mxu0 0.0
    %3223 = vmatprep.subr.mxu0 0.0
    %3224 = vmatpush1.msra.mxu0 0.0
    %3225 = vmatprep.subr.mxu0 0.0
    %3226 = vmatpush1.msra.mxu0 0.0
    %3227 = vmatprep.subr.mxu0 0.0
    %3228 = vmatpush1.msra.mxu0 0.0
    %3229 = vmatprep.subr.mxu0 0.0
    %3230 = vmatpush1.msra.mxu0 0.0
    %3231 = vmatprep.subr.mxu0 0.0
    %3232 = vmatpush1.msra.mxu0 0.0
    %3233 = vmatprep.subr.mxu0 0.0
    %3234 = vmatpush1.msra.mxu0 0.0
    %3235 = vmatprep.subr.mxu0 0.0
    %3236 = vmatpush1.msra.mxu0 0.0
    %3237 = vmatprep.subr.mxu0 0.0
    %3238 = vmatpush1.msra.mxu0 0.0
    %3239 = vmatprep.subr.mxu0 0.0
    %3240 = vmatpush1.msra.mxu0 0.0
    %3241 = vmatprep.subr.mxu0 0.0
    %3242 = vmatpush1.msra.mxu0 0.0
    %3243 = vmatprep.subr.mxu0 0.0
    %3244 = vmatpush1.msra.mxu0 0.0
    %3245 = vmatprep.subr.mxu0 0.0
    %3246 = vmatpush1.msra.mxu0 0.0
    %3247 = vmatprep.subr.mxu0 0.0
    %3248 = vmatpush1.msra.mxu0 0.0
    %3249 = vmatprep.subr.mxu0 0.0
    %3250 = vmatpush1.msra.mxu0 0.0
    %3251 = vmatprep.subr.mxu0 0.0
    %3252 = vmatpush1.msra.mxu0 0.0
    %3253 = vmatprep.subr.mxu0 0.0
    %3254 = vmatpush1.msra.mxu0 0.0
    %3255 = vmatprep.subr.mxu0 0.0
    %3256 = vmatpush1.msra.mxu0 0.0
    %3257 = vmatprep.subr.mxu0 0.0
    %3258 = vmatpush1.msra.mxu0 0.0
    %3259 = vmatprep.subr.mxu0 0.0
    %3260 = vmatpush1.msra.mxu0 0.0
    %3261 = vmatprep.subr.mxu0 0.0
    %3262 = vmatpush1.msra.mxu0 0.0
    %3263 = vmatprep.subr.mxu0 0.0
    %3264 = vmatpush1.msra.mxu0 0.0
    %3265 = vmatprep.subr.mxu0 0.0
    %3266 = vmatpush1.msra.mxu0 0.0
    %3267 = vmatprep.subr.mxu0 0.0
    %3268 = vmatpush1.msra.mxu0 0.0
    %3269 = vmatprep.subr.mxu0 0.0
    %3270 = vmatpush1.msra.mxu0 0.0
    %3271 = vmatprep.subr.mxu0 0.0
    %3272 = vmatpush1.msra.mxu0 0.0
    %3273 = vmatprep.subr.mxu0 0.0
    %3274 = vmatpush1.msra.mxu0 0.0
    %3275 = vmatprep.subr.mxu0 0.0
    %3276 = vmatpush1.msra.mxu0 0.0
    %3277 = vmatprep.subr.mxu0 0.0
    %3278 = vmatpush1.msra.mxu0 0.0
    %3279 = vmatprep.mubr.f32.mxu0 0.0
    %3280 = vmatmul.mubr.f32.gmra.mrb[0].mxu0 %v3213
    %v3281 = vpop.f32.mrb[0].mxu0
    %v3282 = vadd.f32 0.0, %v3281
    %v3283 = vpop.f32.mrb[0].mxu0
    %3284 = vdwg.mxu0
    %v3286 = vrot.slane %v3282, 2
    %v3288 = vadd.f32 %v1113, %v3286
    %v3289 = vxor.u32 %v3288, 2147483648
    %v3290 = vmul.f32 %v3289, 1.442695
    %v3291 = vpow.pop %v3290
    %v3292 = vadd.f32 %v3291, 1.0
    %v3293 = vrcp.pop %v3292
    %v3294 = vmul.f32 1.0, %v3293
    %3295 = vmatprep.subr.mxu0 0.0
    %3296 = vmatpush1.msra.mxu0 %v1119
    %3297 = vmatprep.subr.mxu0 0.0
    %3298 = vmatpush1.msra.mxu0 %v1120
    %3299 = vmatprep.subr.mxu0 0.0
    %3300 = vmatpush1.msra.mxu0 %v1212
    %3301 = vmatprep.subr.mxu0 0.0
    %3302 = vmatpush1.msra.mxu0 0.0
    %3303 = vmatprep.subr.mxu0 0.0
    %3304 = vmatpush1.msra.mxu0 0.0
    %3305 = vmatprep.subr.mxu0 0.0
    %3306 = vmatpush1.msra.mxu0 0.0
    %3307 = vmatprep.subr.mxu0 0.0
    %3308 = vmatpush1.msra.mxu0 0.0
    %3309 = vmatprep.subr.mxu0 0.0
    %3310 = vmatpush1.msra.mxu0 0.0
    %3311 = vmatprep.subr.mxu0 0.0
    %3312 = vmatpush1.msra.mxu0 0.0
    %3313 = vmatprep.subr.mxu0 0.0
    %3314 = vmatpush1.msra.mxu0 0.0
    %3315 = vmatprep.subr.mxu0 0.0
    %3316 = vmatpush1.msra.mxu0 0.0
    %3317 = vmatprep.subr.mxu0 0.0
    %3318 = vmatpush1.msra.mxu0 0.0
    %3319 = vmatprep.subr.mxu0 0.0
    %3320 = vmatpush1.msra.mxu0 0.0
    %3321 = vmatprep.subr.mxu0 0.0
    %3322 = vmatpush1.msra.mxu0 0.0
    %3323 = vmatprep.subr.mxu0 0.0
    %3324 = vmatpush1.msra.mxu0 0.0
    %3325 = vmatprep.subr.mxu0 0.0
    %3326 = vmatpush1.msra.mxu0 0.0
    %3327 = vmatprep.subr.mxu0 0.0
    %3328 = vmatpush1.msra.mxu0 0.0
    %3329 = vmatprep.subr.mxu0 0.0
    %3330 = vmatpush1.msra.mxu0 0.0
    %3331 = vmatprep.subr.mxu0 0.0
    %3332 = vmatpush1.msra.mxu0 0.0
    %3333 = vmatprep.subr.mxu0 0.0
    %3334 = vmatpush1.msra.mxu0 0.0
    %3335 = vmatprep.subr.mxu0 0.0
    %3336 = vmatpush1.msra.mxu0 0.0
    %3337 = vmatprep.subr.mxu0 0.0
    %3338 = vmatpush1.msra.mxu0 0.0
    %3339 = vmatprep.subr.mxu0 0.0
    %3340 = vmatpush1.msra.mxu0 0.0
    %3341 = vmatprep.subr.mxu0 0.0
    %3342 = vmatpush1.msra.mxu0 0.0
    %3343 = vmatprep.subr.mxu0 0.0
    %3344 = vmatpush1.msra.mxu0 0.0
    %3345 = vmatprep.subr.mxu0 0.0
    %3346 = vmatpush1.msra.mxu0 0.0
    %3347 = vmatprep.subr.mxu0 0.0
    %3348 = vmatpush1.msra.mxu0 0.0
    %3349 = vmatprep.subr.mxu0 0.0
    %3350 = vmatpush1.msra.mxu0 0.0
    %3351 = vmatprep.subr.mxu0 0.0
    %3352 = vmatpush1.msra.mxu0 0.0
    %3353 = vmatprep.subr.mxu0 0.0
    %3354 = vmatpush1.msra.mxu0 0.0
    %3355 = vmatprep.subr.mxu0 0.0
    %3356 = vmatpush1.msra.mxu0 0.0
    %3357 = vmatprep.subr.mxu0 0.0
    %3358 = vmatpush1.msra.mxu0 0.0
    %3359 = vmatprep.mubr.f32.mxu0 0.0
    %3360 = vmatmul.mubr.f32.gmra.mrb[0].mxu0 %v3213
    %v3361 = vpop.f32.mrb[0].mxu0
    %v3362 = vadd.f32 0.0, %v3361
    %v3363 = vpop.f32.mrb[0].mxu0
    %3364 = vdwg.mxu0
    %v3366 = vrot.slane %v3362, 2
    %3367 = vrot.lane.b32.xlu0 %v3366, 20
    %v3368 = vpop.permute.xlu0 %3367
    %v3370 = vadd.f32 %v1113, %v3368
    %v3371 = vxor.u32 %v3370, 2147483648
    %v3372 = vmul.f32 %v3371, 1.442695
    %v3373 = vpow.pop %v3372
    %v3374 = vadd.f32 %v3373, 1.0
    %v3375 = vrcp.pop %v3374
    %v3376 = vmul.f32 1.0, %v3375
    %3377 = vmatprep.subr.mxu0 0.0
    %3378 = vmatpush1.msra.mxu0 %v1122
    %3379 = vmatprep.subr.mxu0 0.0
    %3380 = vmatpush1.msra.mxu0 %v1123
    %3381 = vmatprep.subr.mxu0 0.0
    %3382 = vmatpush1.msra.mxu0 %v1296
    %3383 = vmatprep.subr.mxu0 0.0
    %3384 = vmatpush1.msra.mxu0 0.0
    %3385 = vmatprep.subr.mxu0 0.0
    %3386 = vmatpush1.msra.mxu0 0.0
    %3387 = vmatprep.subr.mxu0 0.0
    %3388 = vmatpush1.msra.mxu0 0.0
    %3389 = vmatprep.subr.mxu0 0.0
    %3390 = vmatpush1.msra.mxu0 0.0
    %3391 = vmatprep.subr.mxu0 0.0
    %3392 = vmatpush1.msra.mxu0 0.0
    %3393 = vmatprep.subr.mxu0 0.0
    %3394 = vmatpush1.msra.mxu0 0.0
    %3395 = vmatprep.subr.mxu0 0.0
    %3396 = vmatpush1.msra.mxu0 0.0
    %3397 = vmatprep.subr.mxu0 0.0
    %3398 = vmatpush1.msra.mxu0 0.0
    %3399 = vmatprep.subr.mxu0 0.0
    %3400 = vmatpush1.msra.mxu0 0.0
    %3401 = vmatprep.subr.mxu0 0.0
    %3402 = vmatpush1.msra.mxu0 0.0
    %3403 = vmatprep.subr.mxu0 0.0
    %3404 = vmatpush1.msra.mxu0 0.0
    %3405 = vmatprep.subr.mxu0 0.0
    %3406 = vmatpush1.msra.mxu0 0.0
    %3407 = vmatprep.subr.mxu0 0.0
    %3408 = vmatpush1.msra.mxu0 0.0
    %3409 = vmatprep.subr.mxu0 0.0
    %3410 = vmatpush1.msra.mxu0 0.0
    %3411 = vmatprep.subr.mxu0 0.0
    %3412 = vmatpush1.msra.mxu0 0.0
    %3413 = vmatprep.subr.mxu0 0.0
    %3414 = vmatpush1.msra.mxu0 0.0
    %3415 = vmatprep.subr.mxu0 0.0
    %3416 = vmatpush1.msra.mxu0 0.0
    %3417 = vmatprep.subr.mxu0 0.0
    %3418 = vmatpush1.msra.mxu0 0.0
    %3419 = vmatprep.subr.mxu0 0.0
    %3420 = vmatpush1.msra.mxu0 0.0
    %3421 = vmatprep.subr.mxu0 0.0
    %3422 = vmatpush1.msra.mxu0 0.0
    %3423 = vmatprep.subr.mxu0 0.0
    %3424 = vmatpush1.msra.mxu0 0.0
    %3425 = vmatprep.subr.mxu0 0.0
    %3426 = vmatpush1.msra.mxu0 0.0
    %3427 = vmatprep.subr.mxu0 0.0
    %3428 = vmatpush1.msra.mxu0 0.0
    %3429 = vmatprep.subr.mxu0 0.0
    %3430 = vmatpush1.msra.mxu0 0.0
    %3431 = vmatprep.subr.mxu0 0.0
    %3432 = vmatpush1.msra.mxu0 0.0
    %3433 = vmatprep.subr.mxu0 0.0
    %3434 = vmatpush1.msra.mxu0 0.0
    %3435 = vmatprep.subr.mxu0 0.0
    %3436 = vmatpush1.msra.mxu0 0.0
    %3437 = vmatprep.subr.mxu0 0.0
    %3438 = vmatpush1.msra.mxu0 0.0
    %3439 = vmatprep.subr.mxu0 0.0
    %3440 = vmatpush1.msra.mxu0 0.0
    %3441 = vmatprep.mubr.f32.mxu0 0.0
    %3442 = vmatmul.mubr.f32.gmra.mrb[0].mxu0 %v3213
    %v3443 = vpop.f32.mrb[0].mxu0
    %v3444 = vadd.f32 0.0, %v3443
    %v3445 = vpop.f32.mrb[0].mxu0
    %3446 = vdwg.mxu0
    %v3448 = vrot.slane %v3444, 2
    %3449 = vrot.lane.b32.xlu0 %v3448, 40
    %v3450 = vpop.permute.xlu0 %3449
    %v3452 = vadd.f32 %v1113, %v3450
    %v3453 = vtanh.pop %v3452
    %3454 = vmatprep.subr.mxu0 0.0
    %3455 = vmatpush1.msra.mxu0 %v1125
    %3456 = vmatprep.subr.mxu0 0.0
    %3457 = vmatpush1.msra.mxu0 %v1126
    %3458 = vmatprep.subr.mxu0 0.0
    %3459 = vmatpush1.msra.mxu0 %v1375
    %3460 = vmatprep.subr.mxu0 0.0
    %3461 = vmatpush1.msra.mxu0 0.0
    %3462 = vmatprep.subr.mxu0 0.0
    %3463 = vmatpush1.msra.mxu0 0.0
    %3464 = vmatprep.subr.mxu0 0.0
    %3465 = vmatpush1.msra.mxu0 0.0
    %3466 = vmatprep.subr.mxu0 0.0
    %3467 = vmatpush1.msra.mxu0 0.0
    %3468 = vmatprep.subr.mxu0 0.0
    %3469 = vmatpush1.msra.mxu0 0.0
    %3470 = vmatprep.subr.mxu0 0.0
    %3471 = vmatpush1.msra.mxu0 0.0
    %3472 = vmatprep.subr.mxu0 0.0
    %3473 = vmatpush1.msra.mxu0 0.0
    %3474 = vmatprep.subr.mxu0 0.0
    %3475 = vmatpush1.msra.mxu0 0.0
    %3476 = vmatprep.subr.mxu0 0.0
    %3477 = vmatpush1.msra.mxu0 0.0
    %3478 = vmatprep.subr.mxu0 0.0
    %3479 = vmatpush1.msra.mxu0 0.0
    %3480 = vmatprep.subr.mxu0 0.0
    %3481 = vmatpush1.msra.mxu0 0.0
    %3482 = vmatprep.subr.mxu0 0.0
    %3483 = vmatpush1.msra.mxu0 0.0
    %3484 = vmatprep.subr.mxu0 0.0
    %3485 = vmatpush1.msra.mxu0 0.0
    %3486 = vmatprep.subr.mxu0 0.0
    %3487 = vmatpush1.msra.mxu0 0.0
    %3488 = vmatprep.subr.mxu0 0.0
    %3489 = vmatpush1.msra.mxu0 0.0
    %3490 = vmatprep.subr.mxu0 0.0
    %3491 = vmatpush1.msra.mxu0 0.0
    %3492 = vmatprep.subr.mxu0 0.0
    %3493 = vmatpush1.msra.mxu0 0.0
    %3494 = vmatprep.subr.mxu0 0.0
    %3495 = vmatpush1.msra.mxu0 0.0
    %3496 = vmatprep.subr.mxu0 0.0
    %3497 = vmatpush1.msra.mxu0 0.0
    %3498 = vmatprep.subr.mxu0 0.0
    %3499 = vmatpush1.msra.mxu0 0.0
    %3500 = vmatprep.subr.mxu0 0.0
    %3501 = vmatpush1.msra.mxu0 0.0
    %3502 = vmatprep.subr.mxu0 0.0
    %3503 = vmatpush1.msra.mxu0 0.0
    %3504 = vmatprep.subr.mxu0 0.0
    %3505 = vmatpush1.msra.mxu0 0.0
    %3506 = vmatprep.subr.mxu0 0.0
    %3507 = vmatpush1.msra.mxu0 0.0
    %3508 = vmatprep.subr.mxu0 0.0
    %3509 = vmatpush1.msra.mxu0 0.0
    %3510 = vmatprep.subr.mxu0 0.0
    %3511 = vmatpush1.msra.mxu0 0.0
    %3512 = vmatprep.subr.mxu0 0.0
    %3513 = vmatpush1.msra.mxu0 0.0
    %3514 = vmatprep.subr.mxu0 0.0
    %3515 = vmatpush1.msra.mxu0 0.0
    %3516 = vmatprep.subr.mxu0 0.0
    %3517 = vmatpush1.msra.mxu0 0.0
    %3518 = vmatprep.mubr.f32.mxu0 0.0
    %3519 = vmatmul.mubr.f32.gmra.mrb[0].mxu0 %v3213
    %v3520 = vpop.f32.mrb[0].mxu0
    %v3521 = vadd.f32 0.0, %v3520
    %v3522 = vpop.f32.mrb[0].mxu0
    %3523 = vdwg.mxu0
    %v3525 = vrot.slane %v3521, 2
    %3526 = vrot.lane.b32.xlu0 %v3525, 60
    %v3527 = vpop.permute.xlu0 %3526
    %v3529 = vadd.f32 %v1113, %v3527
    %v3530 = vxor.u32 %v3529, 2147483648
    %v3531 = vmul.f32 %v3530, 1.442695
    %v3532 = vpow.pop %v3531
    %v3533 = vadd.f32 %v3532, 1.0
    %v3534 = vrcp.pop %v3533
    %v3535 = vmul.f32 1.0, %v3534
    %v3537 = vrot.slane %v3202, 7
    %v3539 = vmul.f32 %v3376, %v3537
    %3541 = vrot.lane.b32.xlu0 %v3453, 88
    %v3542 = vpop.permute.xlu0 %3541
    %v3544 = vmul.f32 %v3294, %v3542
    %3546 = vrot.lane.b32.xlu0 %v3544, 20
    %v3547 = vpop.permute.xlu0 %3546
    %v3549 = vadd.f32 %v3539, %v3547
    %v3550 = vtanh.pop %v3549
    %3552 = vrot.lane.b32.xlu0 %v3550, 40
    %v3553 = vpop.permute.xlu0 %3552
    %v3555 = vmul.f32 %v3535, %v3553
    %v3557 = vrot.slane %v3555, 6
    %3558 = vrot.lane.b32.xlu0 %v3557, 68
    %v3559 = vpop.permute.xlu0 %3558
    %v3560 = vsel %vm693, %v3559, 0
    %3562 = vmatprep.subr.mxu0 0.0
    %3563 = vmatpush1.msra.mxu0 %v1116
    %3564 = vmatprep.subr.mxu0 0.0
    %3565 = vmatpush1.msra.mxu0 %v1117
    %3566 = vmatprep.subr.mxu0 0.0
    %3567 = vmatpush1.msra.mxu0 %v1132
    %3568 = vmatprep.subr.mxu0 0.0
    %3569 = vmatpush1.msra.mxu0 0.0
    %3570 = vmatprep.subr.mxu0 0.0
    %3571 = vmatpush1.msra.mxu0 0.0
    %3572 = vmatprep.subr.mxu0 0.0
    %3573 = vmatpush1.msra.mxu0 0.0
    %3574 = vmatprep.subr.mxu0 0.0
    %3575 = vmatpush1.msra.mxu0 0.0
    %3576 = vmatprep.subr.mxu0 0.0
    %3577 = vmatpush1.msra.mxu0 0.0
    %3578 = vmatprep.subr.mxu0 0.0
    %3579 = vmatpush1.msra.mxu0 0.0
    %3580 = vmatprep.subr.mxu0 0.0
    %3581 = vmatpush1.msra.mxu0 0.0
    %3582 = vmatprep.subr.mxu0 0.0
    %3583 = vmatpush1.msra.mxu0 0.0
    %3584 = vmatprep.subr.mxu0 0.0
    %3585 = vmatpush1.msra.mxu0 0.0
    %3586 = vmatprep.subr.mxu0 0.0
    %3587 = vmatpush1.msra.mxu0 0.0
    %3588 = vmatprep.subr.mxu0 0.0
    %3589 = vmatpush1.msra.mxu0 0.0
    %3590 = vmatprep.subr.mxu0 0.0
    %3591 = vmatpush1.msra.mxu0 0.0
    %3592 = vmatprep.subr.mxu0 0.0
    %3593 = vmatpush1.msra.mxu0 0.0
    %3594 = vmatprep.subr.mxu0 0.0
    %3595 = vmatpush1.msra.mxu0 0.0
    %3596 = vmatprep.subr.mxu0 0.0
    %3597 = vmatpush1.msra.mxu0 0.0
    %3598 = vmatprep.subr.mxu0 0.0
    %3599 = vmatpush1.msra.mxu0 0.0
    %3600 = vmatprep.subr.mxu0 0.0
    %3601 = vmatpush1.msra.mxu0 0.0
    %3602 = vmatprep.subr.mxu0 0.0
    %3603 = vmatpush1.msra.mxu0 0.0
    %3604 = vmatprep.subr.mxu0 0.0
    %3605 = vmatpush1.msra.mxu0 0.0
    %3606 = vmatprep.subr.mxu0 0.0
    %3607 = vmatpush1.msra.mxu0 0.0
    %3608 = vmatprep.subr.mxu0 0.0
    %3609 = vmatpush1.msra.mxu0 0.0
    %3610 = vmatprep.subr.mxu0 0.0
    %3611 = vmatpush1.msra.mxu0 0.0
    %3612 = vmatprep.subr.mxu0 0.0
    %3613 = vmatpush1.msra.mxu0 0.0
    %3614 = vmatprep.subr.mxu0 0.0
    %3615 = vmatpush1.msra.mxu0 0.0
    %3616 = vmatprep.subr.mxu0 0.0
    %3617 = vmatpush1.msra.mxu0 0.0
    %3618 = vmatprep.subr.mxu0 0.0
    %3619 = vmatpush1.msra.mxu0 0.0
    %3620 = vmatprep.subr.mxu0 0.0
    %3621 = vmatpush1.msra.mxu0 0.0
    %3622 = vmatprep.subr.mxu0 0.0
    %3623 = vmatpush1.msra.mxu0 0.0
    %3624 = vmatprep.subr.mxu0 0.0
    %3625 = vmatpush1.msra.mxu0 0.0
    %3626 = vmatprep.mubr.f32.mxu0 0.0
    %3627 = vmatmul.mubr.f32.gmra.mrb[0].mxu0 %v3560
    %v3628 = vpop.f32.mrb[0].mxu0
    %v3629 = vadd.f32 0.0, %v3628
    %v3630 = vpop.f32.mrb[0].mxu0
    %3631 = vdwg.mxu0
    %v3633 = vrot.slane %v3629, 1
    %v3635 = vadd.f32 %v1113, %v3633
    %v3636 = vxor.u32 %v3635, 2147483648
    %v3637 = vmul.f32 %v3636, 1.442695
    %v3638 = vpow.pop %v3637
    %v3639 = vadd.f32 %v3638, 1.0
    %v3640 = vrcp.pop %v3639
    %v3641 = vmul.f32 1.0, %v3640
    %3642 = vmatprep.subr.mxu0 0.0
    %3643 = vmatpush1.msra.mxu0 %v1119
    %3644 = vmatprep.subr.mxu0 0.0
    %3645 = vmatpush1.msra.mxu0 %v1120
    %3646 = vmatprep.subr.mxu0 0.0
    %3647 = vmatpush1.msra.mxu0 %v1212
    %3648 = vmatprep.subr.mxu0 0.0
    %3649 = vmatpush1.msra.mxu0 0.0
    %3650 = vmatprep.subr.mxu0 0.0
    %3651 = vmatpush1.msra.mxu0 0.0
    %3652 = vmatprep.subr.mxu0 0.0
    %3653 = vmatpush1.msra.mxu0 0.0
    %3654 = vmatprep.subr.mxu0 0.0
    %3655 = vmatpush1.msra.mxu0 0.0
    %3656 = vmatprep.subr.mxu0 0.0
    %3657 = vmatpush1.msra.mxu0 0.0
    %3658 = vmatprep.subr.mxu0 0.0
    %3659 = vmatpush1.msra.mxu0 0.0
    %3660 = vmatprep.subr.mxu0 0.0
    %3661 = vmatpush1.msra.mxu0 0.0
    %3662 = vmatprep.subr.mxu0 0.0
    %3663 = vmatpush1.msra.mxu0 0.0
    %3664 = vmatprep.subr.mxu0 0.0
    %3665 = vmatpush1.msra.mxu0 0.0
    %3666 = vmatprep.subr.mxu0 0.0
    %3667 = vmatpush1.msra.mxu0 0.0
    %3668 = vmatprep.subr.mxu0 0.0
    %3669 = vmatpush1.msra.mxu0 0.0
    %3670 = vmatprep.subr.mxu0 0.0
    %3671 = vmatpush1.msra.mxu0 0.0
    %3672 = vmatprep.subr.mxu0 0.0
    %3673 = vmatpush1.msra.mxu0 0.0
    %3674 = vmatprep.subr.mxu0 0.0
    %3675 = vmatpush1.msra.mxu0 0.0
    %3676 = vmatprep.subr.mxu0 0.0
    %3677 = vmatpush1.msra.mxu0 0.0
    %3678 = vmatprep.subr.mxu0 0.0
    %3679 = vmatpush1.msra.mxu0 0.0
    %3680 = vmatprep.subr.mxu0 0.0
    %3681 = vmatpush1.msra.mxu0 0.0
    %3682 = vmatprep.subr.mxu0 0.0
    %3683 = vmatpush1.msra.mxu0 0.0
    %3684 = vmatprep.subr.mxu0 0.0
    %3685 = vmatpush1.msra.mxu0 0.0
    %3686 = vmatprep.subr.mxu0 0.0
    %3687 = vmatpush1.msra.mxu0 0.0
    %3688 = vmatprep.subr.mxu0 0.0
    %3689 = vmatpush1.msra.mxu0 0.0
    %3690 = vmatprep.subr.mxu0 0.0
    %3691 = vmatpush1.msra.mxu0 0.0
    %3692 = vmatprep.subr.mxu0 0.0
    %3693 = vmatpush1.msra.mxu0 0.0
    %3694 = vmatprep.subr.mxu0 0.0
    %3695 = vmatpush1.msra.mxu0 0.0
    %3696 = vmatprep.subr.mxu0 0.0
    %3697 = vmatpush1.msra.mxu0 0.0
    %3698 = vmatprep.subr.mxu0 0.0
    %3699 = vmatpush1.msra.mxu0 0.0
    %3700 = vmatprep.subr.mxu0 0.0
    %3701 = vmatpush1.msra.mxu0 0.0
    %3702 = vmatprep.subr.mxu0 0.0
    %3703 = vmatpush1.msra.mxu0 0.0
    %3704 = vmatprep.subr.mxu0 0.0
    %3705 = vmatpush1.msra.mxu0 0.0
    %3706 = vmatprep.mubr.f32.mxu0 0.0
    %3707 = vmatmul.mubr.f32.gmra.mrb[0].mxu0 %v3560
    %v3708 = vpop.f32.mrb[0].mxu0
    %v3709 = vadd.f32 0.0, %v3708
    %v3710 = vpop.f32.mrb[0].mxu0
    %3711 = vdwg.mxu0
    %v3713 = vrot.slane %v3709, 1
    %3714 = vrot.lane.b32.xlu0 %v3713, 20
    %v3715 = vpop.permute.xlu0 %3714
    %v3717 = vadd.f32 %v1113, %v3715
    %v3718 = vxor.u32 %v3717, 2147483648
    %v3719 = vmul.f32 %v3718, 1.442695
    %v3720 = vpow.pop %v3719
    %v3721 = vadd.f32 %v3720, 1.0
    %v3722 = vrcp.pop %v3721
    %v3723 = vmul.f32 1.0, %v3722
    %3724 = vmatprep.subr.mxu0 0.0
    %3725 = vmatpush1.msra.mxu0 %v1122
    %3726 = vmatprep.subr.mxu0 0.0
    %3727 = vmatpush1.msra.mxu0 %v1123
    %3728 = vmatprep.subr.mxu0 0.0
    %3729 = vmatpush1.msra.mxu0 %v1296
    %3730 = vmatprep.subr.mxu0 0.0
    %3731 = vmatpush1.msra.mxu0 0.0
    %3732 = vmatprep.subr.mxu0 0.0
    %3733 = vmatpush1.msra.mxu0 0.0
    %3734 = vmatprep.subr.mxu0 0.0
    %3735 = vmatpush1.msra.mxu0 0.0
    %3736 = vmatprep.subr.mxu0 0.0
    %3737 = vmatpush1.msra.mxu0 0.0
    %3738 = vmatprep.subr.mxu0 0.0
    %3739 = vmatpush1.msra.mxu0 0.0
    %3740 = vmatprep.subr.mxu0 0.0
    %3741 = vmatpush1.msra.mxu0 0.0
    %3742 = vmatprep.subr.mxu0 0.0
    %3743 = vmatpush1.msra.mxu0 0.0
    %3744 = vmatprep.subr.mxu0 0.0
    %3745 = vmatpush1.msra.mxu0 0.0
    %3746 = vmatprep.subr.mxu0 0.0
    %3747 = vmatpush1.msra.mxu0 0.0
    %3748 = vmatprep.subr.mxu0 0.0
    %3749 = vmatpush1.msra.mxu0 0.0
    %3750 = vmatprep.subr.mxu0 0.0
    %3751 = vmatpush1.msra.mxu0 0.0
    %3752 = vmatprep.subr.mxu0 0.0
    %3753 = vmatpush1.msra.mxu0 0.0
    %3754 = vmatprep.subr.mxu0 0.0
    %3755 = vmatpush1.msra.mxu0 0.0
    %3756 = vmatprep.subr.mxu0 0.0
    %3757 = vmatpush1.msra.mxu0 0.0
    %3758 = vmatprep.subr.mxu0 0.0
    %3759 = vmatpush1.msra.mxu0 0.0
    %3760 = vmatprep.subr.mxu0 0.0
    %3761 = vmatpush1.msra.mxu0 0.0
    %3762 = vmatprep.subr.mxu0 0.0
    %3763 = vmatpush1.msra.mxu0 0.0
    %3764 = vmatprep.subr.mxu0 0.0
    %3765 = vmatpush1.msra.mxu0 0.0
    %3766 = vmatprep.subr.mxu0 0.0
    %3767 = vmatpush1.msra.mxu0 0.0
    %3768 = vmatprep.subr.mxu0 0.0
    %3769 = vmatpush1.msra.mxu0 0.0
    %3770 = vmatprep.subr.mxu0 0.0
    %3771 = vmatpush1.msra.mxu0 0.0
    %3772 = vmatprep.subr.mxu0 0.0
    %3773 = vmatpush1.msra.mxu0 0.0
    %3774 = vmatprep.subr.mxu0 0.0
    %3775 = vmatpush1.msra.mxu0 0.0
    %3776 = vmatprep.subr.mxu0 0.0
    %3777 = vmatpush1.msra.mxu0 0.0
    %3778 = vmatprep.subr.mxu0 0.0
    %3779 = vmatpush1.msra.mxu0 0.0
    %3780 = vmatprep.subr.mxu0 0.0
    %3781 = vmatpush1.msra.mxu0 0.0
    %3782 = vmatprep.subr.mxu0 0.0
    %3783 = vmatpush1.msra.mxu0 0.0
    %3784 = vmatprep.subr.mxu0 0.0
    %3785 = vmatpush1.msra.mxu0 0.0
    %3786 = vmatprep.subr.mxu0 0.0
    %3787 = vmatpush1.msra.mxu0 0.0
    %3788 = vmatprep.mubr.f32.mxu0 0.0
    %3789 = vmatmul.mubr.f32.gmra.mrb[0].mxu0 %v3560
    %v3790 = vpop.f32.mrb[0].mxu0
    %v3791 = vadd.f32 0.0, %v3790
    %v3792 = vpop.f32.mrb[0].mxu0
    %3793 = vdwg.mxu0
    %v3795 = vrot.slane %v3791, 1
    %3796 = vrot.lane.b32.xlu0 %v3795, 40
    %v3797 = vpop.permute.xlu0 %3796
    %v3799 = vadd.f32 %v1113, %v3797
    %v3800 = vtanh.pop %v3799
    %3801 = vmatprep.subr.mxu0 0.0
    %3802 = vmatpush1.msra.mxu0 %v1125
    %3803 = vmatprep.subr.mxu0 0.0
    %3804 = vmatpush1.msra.mxu0 %v1126
    %3805 = vmatprep.subr.mxu0 0.0
    %3806 = vmatpush1.msra.mxu0 %v1375
    %3807 = vmatprep.subr.mxu0 0.0
    %3808 = vmatpush1.msra.mxu0 0.0
    %3809 = vmatprep.subr.mxu0 0.0
    %3810 = vmatpush1.msra.mxu0 0.0
    %3811 = vmatprep.subr.mxu0 0.0
    %3812 = vmatpush1.msra.mxu0 0.0
    %3813 = vmatprep.subr.mxu0 0.0
    %3814 = vmatpush1.msra.mxu0 0.0
    %3815 = vmatprep.subr.mxu0 0.0
    %3816 = vmatpush1.msra.mxu0 0.0
    %3817 = vmatprep.subr.mxu0 0.0
    %3818 = vmatpush1.msra.mxu0 0.0
    %3819 = vmatprep.subr.mxu0 0.0
    %3820 = vmatpush1.msra.mxu0 0.0
    %3821 = vmatprep.subr.mxu0 0.0
    %3822 = vmatpush1.msra.mxu0 0.0
    %3823 = vmatprep.subr.mxu0 0.0
    %3824 = vmatpush1.msra.mxu0 0.0
    %3825 = vmatprep.subr.mxu0 0.0
    %3826 = vmatpush1.msra.mxu0 0.0
    %3827 = vmatprep.subr.mxu0 0.0
    %3828 = vmatpush1.msra.mxu0 0.0
    %3829 = vmatprep.subr.mxu0 0.0
    %3830 = vmatpush1.msra.mxu0 0.0
    %3831 = vmatprep.subr.mxu0 0.0
    %3832 = vmatpush1.msra.mxu0 0.0
    %3833 = vmatprep.subr.mxu0 0.0
    %3834 = vmatpush1.msra.mxu0 0.0
    %3835 = vmatprep.subr.mxu0 0.0
    %3836 = vmatpush1.msra.mxu0 0.0
    %3837 = vmatprep.subr.mxu0 0.0
    %3838 = vmatpush1.msra.mxu0 0.0
    %3839 = vmatprep.subr.mxu0 0.0
    %3840 = vmatpush1.msra.mxu0 0.0
    %3841 = vmatprep.subr.mxu0 0.0
    %3842 = vmatpush1.msra.mxu0 0.0
    %3843 = vmatprep.subr.mxu0 0.0
    %3844 = vmatpush1.msra.mxu0 0.0
    %3845 = vmatprep.subr.mxu0 0.0
    %3846 = vmatpush1.msra.mxu0 0.0
    %3847 = vmatprep.subr.mxu0 0.0
    %3848 = vmatpush1.msra.mxu0 0.0
    %3849 = vmatprep.subr.mxu0 0.0
    %3850 = vmatpush1.msra.mxu0 0.0
    %3851 = vmatprep.subr.mxu0 0.0
    %3852 = vmatpush1.msra.mxu0 0.0
    %3853 = vmatprep.subr.mxu0 0.0
    %3854 = vmatpush1.msra.mxu0 0.0
    %3855 = vmatprep.subr.mxu0 0.0
    %3856 = vmatpush1.msra.mxu0 0.0
    %3857 = vmatprep.subr.mxu0 0.0
    %3858 = vmatpush1.msra.mxu0 0.0
    %3859 = vmatprep.subr.mxu0 0.0
    %3860 = vmatpush1.msra.mxu0 0.0
    %3861 = vmatprep.subr.mxu0 0.0
    %3862 = vmatpush1.msra.mxu0 0.0
    %3863 = vmatprep.subr.mxu0 0.0
    %3864 = vmatpush1.msra.mxu0 0.0
    %3865 = vmatprep.mubr.f32.mxu0 0.0
    %3866 = vmatmul.mubr.f32.gmra.mrb[0].mxu0 %v3560
    %v3867 = vpop.f32.mrb[0].mxu0
    %v3868 = vadd.f32 0.0, %v3867
    %v3869 = vpop.f32.mrb[0].mxu0
    %3870 = vdwg.mxu0
    %v3872 = vrot.slane %v3868, 1
    %3873 = vrot.lane.b32.xlu0 %v3872, 60
    %v3874 = vpop.permute.xlu0 %3873
    %v3876 = vadd.f32 %v1113, %v3874
    %v3877 = vxor.u32 %v3876, 2147483648
    %v3878 = vmul.f32 %v3877, 1.442695
    %v3879 = vpow.pop %v3878
    %v3880 = vadd.f32 %v3879, 1.0
    %v3881 = vrcp.pop %v3880
    %v3882 = vmul.f32 1.0, %v3881
    %v3884 = vrot.slane %v3549, 7
    %v3886 = vmul.f32 %v3723, %v3884
    %3888 = vrot.lane.b32.xlu0 %v3800, 88
    %v3889 = vpop.permute.xlu0 %3888
    %v3891 = vmul.f32 %v3641, %v3889
    %3893 = vrot.lane.b32.xlu0 %v3891, 20
    %v3894 = vpop.permute.xlu0 %3893
    %v3896 = vadd.f32 %v3886, %v3894
    %v3897 = vtanh.pop %v3896
    %3899 = vrot.lane.b32.xlu0 %v3897, 40
    %v3900 = vpop.permute.xlu0 %3899
    %v3902 = vmul.f32 %v3882, %v3900
    %v3903 = vld [vmem:[%s18] sm:$0xff]
    %v3904 = vld [vmem:[%s18 + $0x8] sm:$0xff]
    %v3905 = vld [vmem:[%s18 + $0x10] sm:$0xf]
    %v3907 = vrot.slane %v3902, 7
    %3908 = vrot.lane.b32.xlu0 %v3907, 68
    %v3909 = vpop.permute.xlu0 %3908
    %v3910 = vsel %vm693, %v3909, 0
    %v3913 = vsel %vm697, %v3905, 0
    %3915 = vmatprep.subr.mxu0 0.0
    %3916 = vmatpush1.msra.mxu0 %v3903
    %3917 = vmatprep.subr.mxu0 0.0
    %3918 = vmatpush1.msra.mxu0 %v3904
    %3919 = vmatprep.subr.mxu0 0.0
    %3920 = vmatpush1.msra.mxu0 %v3913
    %3921 = vmatprep.subr.mxu0 0.0
    %3922 = vmatpush1.msra.mxu0 0.0
    %3923 = vmatprep.subr.mxu0 0.0
    %3924 = vmatpush1.msra.mxu0 0.0
    %3925 = vmatprep.subr.mxu0 0.0
    %3926 = vmatpush1.msra.mxu0 0.0
    %3927 = vmatprep.subr.mxu0 0.0
    %3928 = vmatpush1.msra.mxu0 0.0
    %3929 = vmatprep.subr.mxu0 0.0
    %3930 = vmatpush1.msra.mxu0 0.0
    %3931 = vmatprep.subr.mxu0 0.0
    %3932 = vmatpush1.msra.mxu0 0.0
    %3933 = vmatprep.subr.mxu0 0.0
    %3934 = vmatpush1.msra.mxu0 0.0
    %3935 = vmatprep.subr.mxu0 0.0
    %3936 = vmatpush1.msra.mxu0 0.0
    %3937 = vmatprep.subr.mxu0 0.0
    %3938 = vmatpush1.msra.mxu0 0.0
    %3939 = vmatprep.subr.mxu0 0.0
    %3940 = vmatpush1.msra.mxu0 0.0
    %3941 = vmatprep.subr.mxu0 0.0
    %3942 = vmatpush1.msra.mxu0 0.0
    %3943 = vmatprep.subr.mxu0 0.0
    %3944 = vmatpush1.msra.mxu0 0.0
    %3945 = vmatprep.subr.mxu0 0.0
    %3946 = vmatpush1.msra.mxu0 0.0
    %3947 = vmatprep.subr.mxu0 0.0
    %3948 = vmatpush1.msra.mxu0 0.0
    %3949 = vmatprep.subr.mxu0 0.0
    %3950 = vmatpush1.msra.mxu0 0.0
    %3951 = vmatprep.subr.mxu0 0.0
    %3952 = vmatpush1.msra.mxu0 0.0
    %3953 = vmatprep.subr.mxu0 0.0
    %3954 = vmatpush1.msra.mxu0 0.0
    %3955 = vmatprep.subr.mxu0 0.0
    %3956 = vmatpush1.msra.mxu0 0.0
    %3957 = vmatprep.subr.mxu0 0.0
    %3958 = vmatpush1.msra.mxu0 0.0
    %3959 = vmatprep.subr.mxu0 0.0
    %3960 = vmatpush1.msra.mxu0 0.0
    %3961 = vmatprep.subr.mxu0 0.0
    %3962 = vmatpush1.msra.mxu0 0.0
    %3963 = vmatprep.subr.mxu0 0.0
    %3964 = vmatpush1.msra.mxu0 0.0
    %3965 = vmatprep.subr.mxu0 0.0
    %3966 = vmatpush1.msra.mxu0 0.0
    %3967 = vmatprep.subr.mxu0 0.0
    %3968 = vmatpush1.msra.mxu0 0.0
    %3969 = vmatprep.subr.mxu0 0.0
    %3970 = vmatpush1.msra.mxu0 0.0
    %3971 = vmatprep.subr.mxu0 0.0
    %3972 = vmatpush1.msra.mxu0 0.0
    %3973 = vmatprep.subr.mxu0 0.0
    %3974 = vmatpush1.msra.mxu0 0.0
    %3975 = vmatprep.subr.mxu0 0.0
    %3976 = vmatpush1.msra.mxu0 0.0
    %3977 = vmatprep.subr.mxu0 0.0
    %3978 = vmatpush1.msra.mxu0 0.0
    %3979 = vmatprep.mubr.f32.mxu0 0.0
    %3980 = vmatmul.mubr.f32.gmra.mrb[0].mxu0 %v3910
    %v3981 = vpop.f32.mrb[0].mxu0
    %v3982 = vadd.f32 %v1004, %v3981
    %v3983 = vpop.f32.mrb[0].mxu0
    %3984 = vdwg.mxu0
    %v3985 = vmax.f32 %v3982, 0.0
    %v3986 = vld [vmem:[%s21] sm:$0xff]
    %v3987 = vld [vmem:[%s21 + $0x8] sm:$0xff]
    %v3988 = vld [vmem:[%s22] sm:$0x1]
    %v3990 = vsel %vm856, %v3985, 0
    %3992 = vmatprep.subr.mxu0 0.0
    %3993 = vmatpush1.msra.mxu0 %v3986
    %3994 = vmatprep.subr.mxu0 0.0
    %3995 = vmatpush1.msra.mxu0 %v3987
    %3996 = vmatprep.subr.mxu0 0.0
    %3997 = vmatpush1.msra.mxu0 0.0
    %3998 = vmatprep.subr.mxu0 0.0
    %3999 = vmatpush1.msra.mxu0 0.0
    %4000 = vmatprep.subr.mxu0 0.0
    %4001 = vmatpush1.msra.mxu0 0.0
    %4002 = vmatprep.subr.mxu0 0.0
    %4003 = vmatpush1.msra.mxu0 0.0
    %4004 = vmatprep.subr.mxu0 0.0
    %4005 = vmatpush1.msra.mxu0 0.0
    %4006 = vmatprep.subr.mxu0 0.0
    %4007 = vmatpush1.msra.mxu0 0.0
    %4008 = vmatprep.subr.mxu0 0.0
    %4009 = vmatpush1.msra.mxu0 0.0
    %4010 = vmatprep.subr.mxu0 0.0
    %4011 = vmatpush1.msra.mxu0 0.0
    %4012 = vmatprep.subr.mxu0 0.0
    %4013 = vmatpush1.msra.mxu0 0.0
    %4014 = vmatprep.subr.mxu0 0.0
    %4015 = vmatpush1.msra.mxu0 0.0
    %4016 = vmatprep.subr.mxu0 0.0
    %4017 = vmatpush1.msra.mxu0 0.0
    %4018 = vmatprep.subr.mxu0 0.0
    %4019 = vmatpush1.msra.mxu0 0.0
    %4020 = vmatprep.subr.mxu0 0.0
    %4021 = vmatpush1.msra.mxu0 0.0
    %4022 = vmatprep.subr.mxu0 0.0
    %4023 = vmatpush1.msra.mxu0 0.0
    %4024 = vmatprep.subr.mxu0 0.0
    %4025 = vmatpush1.msra.mxu0 0.0
    %4026 = vmatprep.subr.mxu0 0.0
    %4027 = vmatpush1.msra.mxu0 0.0
    %4028 = vmatprep.subr.mxu0 0.0
    %4029 = vmatpush1.msra.mxu0 0.0
    %4030 = vmatprep.subr.mxu0 0.0
    %4031 = vmatpush1.msra.mxu0 0.0
    %4032 = vmatprep.subr.mxu0 0.0
    %4033 = vmatpush1.msra.mxu0 0.0
    %4034 = vmatprep.subr.mxu0 0.0
    %4035 = vmatpush1.msra.mxu0 0.0
    %4036 = vmatprep.subr.mxu0 0.0
    %4037 = vmatpush1.msra.mxu0 0.0
    %4038 = vmatprep.subr.mxu0 0.0
    %4039 = vmatpush1.msra.mxu0 0.0
    %4040 = vmatprep.subr.mxu0 0.0
    %4041 = vmatpush1.msra.mxu0 0.0
    %4042 = vmatprep.subr.mxu0 0.0
    %4043 = vmatpush1.msra.mxu0 0.0
    %4044 = vmatprep.subr.mxu0 0.0
    %4045 = vmatpush1.msra.mxu0 0.0
    %4046 = vmatprep.subr.mxu0 0.0
    %4047 = vmatpush1.msra.mxu0 0.0
    %4048 = vmatprep.subr.mxu0 0.0
    %4049 = vmatpush1.msra.mxu0 0.0
    %4050 = vmatprep.subr.mxu0 0.0
    %4051 = vmatpush1.msra.mxu0 0.0
    %4052 = vmatprep.subr.mxu0 0.0
    %4053 = vmatpush1.msra.mxu0 0.0
    %4054 = vmatprep.subr.mxu0 0.0
    %4055 = vmatpush1.msra.mxu0 0.0
    %4056 = vmatprep.mubr.f32.mxu0 0.0
    %4057 = vmatmul.mubr.f32.gmra.mrb[0].mxu0 %v3990
    %v4058 = vpop.f32.mrb[0].mxu0
    %v4059 = vadd.f32 %v3988, %v4058
    %v4060 = vpop.f32.mrb[0].mxu0
    %4061 = vdwg.mxu0
    %vm4062 = vcmask 40960
    %v4063 = vsel %vm4062, %v4059, -inf
    %4064 = vmax.xlane.f32.xlu0 %v4063
    %v4065 = vpop.xlane.xlu0 %4064
    %v4066 = vsub.f32 %v4059, %v4065
    %v4067 = vmul.f32 %v4066, 1.442695
    %v4068 = vpow.pop %v4067
    %v4069 = vsel %vm4062, %v4068, 0.0
    %4070 = vadd.xlane.f32.xlu0 %v4069
    %v4071 = vpop.xlane.xlu0 %4070
    %v4072 = vrcp.pop %v4071
    %v4073 = vmul.f32 %v4068, %v4072
    %4074 = vst.msk [vmem:[#allocation27] sm:$0x1] %vm4062, %v4073
    // Predicated region
    $region370: #{tpu_custom_call.1} parent=1 // pred_check
      _
    $region371: #{tpu_custom_call.1} parent=1 // pred_check_branch
      %4076 = sbr.rel (0) target = $region373
    $region372: #{tpu_custom_call.1} parent=1 // pred_region
      %s4078 = ssub.s32 16, 16
      %4079 = vsyncadd [#allocation9], %s4078
      %s4081 = sshll.u32 [#allocation27], 4
      %s4082 = int_to_ptr.vmem [resolvable:$true] %s4081
      %4084 = dma.vmem_to_hbm [thread:$0]  %s4082, 16, %s23, [#allocation9]
    $region373: #{tpu_custom_call.1} parent=1 // pred_fallthru
      _
    // Predicated region
    $region374: #{tpu_custom_call.1} parent=1 // pred_check
      _
    $region375: #{tpu_custom_call.1} parent=1 // pred_check_branch
      %4086 = sbr.rel (0) target = $region377
    $region376: #{tpu_custom_call.1} parent=1 // pred_region
      %4087 = dma.done [#allocation9], 16
    $region377: #{tpu_custom_call.1} parent=1 // pred_fallthru
      _
    %4088 = vsyncpa [#allocation8], 1
    %4089 = vsyncpa [#allocation11], 1
    %4090 = vsyncpa [#allocation14], 1
    %4091 = vsyncpa [#allocation17], 1
    %4092 = vsyncpa [#allocation20], 1
    %4093 = vsyncpa [#allocation23], 1
    %4094 = vsyncpa [#allocation26], 1
    %4095 = vsyncpa [#allocation9], 1
  %4096 = vsyncmov [#allocation3]
  %s4097 = vpop.sfrf %4096
  %p4098 = scmp.eq.s32.totalorder %s4097, 0
  %p4099 = pneg %p4098
  %4101 = shalt.err (%p4099)
  %s4102 = scalar_lea.sflag [#allocation3], 1
  %4103 = vsyncmov %s4102
  %s4104 = vpop.sfrf %4103
  %p4105 = scmp.eq.s32.totalorder %s4104, 0
  %p4106 = pneg %p4105
  %4108 = shalt.err (%p4106)
  %s4109 = scalar_lea.sflag [#allocation3], 2
  %4110 = vsyncmov %s4109
  %s4111 = vpop.sfrf %4110
  %p4112 = scmp.eq.s32.totalorder %s4111, 0
  %p4113 = pneg %p4112
  %4115 = shalt.err (%p4113)
  %s4116 = scalar_lea.sflag [#allocation3], 3
  %4117 = vsyncmov %s4116
  %s4118 = vpop.sfrf %4117
  %p4119 = scmp.eq.s32.totalorder %s4118, 0
  %p4120 = pneg %p4119
  %4122 = shalt.err (%p4120)
  %s4123 = scalar_lea.sflag [#allocation3], 4
  %4124 = vsyncmov %s4123
  %s4125 = vpop.sfrf %4124
  %p4126 = scmp.eq.s32.totalorder %s4125, 0
  %p4127 = pneg %p4126
  %4129 = shalt.err (%p4127)
  %s4130 = scalar_lea.sflag [#allocation3], 5
  %4131 = vsyncmov %s4130
  %s4132 = vpop.sfrf %4131
  %p4133 = scmp.eq.s32.totalorder %s4132, 0
  %p4134 = pneg %p4133
  %4136 = shalt.err (%p4134)
  %s4137 = scalar_lea.sflag [#allocation3], 6
  %4138 = vsyncmov %s4137
  %s4139 = vpop.sfrf %4138
  %p4140 = scmp.eq.s32.totalorder %s4139, 0
  %p4141 = pneg %p4140
  %4143 = shalt.err (%p4141)
  %s4144 = scalar_lea.sflag [#allocation3], 7
  %4145 = vsyncmov %s4144
  %s4146 = vpop.sfrf %4145
  %p4147 = scmp.eq.s32.totalorder %s4146, 0
  %p4148 = pneg %p4147
  %4150 = shalt.err (%p4148)

</llo_original>
